<compile_context>
chip_gen: v7x
topology: tpu7x:2x2x1
jax: 0.10.0
libtpu: 0.0.40
codegen_flags: <defaults>
</compile_context>

<pallas_src>
import functools

import jax
import jax.numpy as jnp
from jax.experimental import pallas as pl
from jax.experimental.pallas import tpu as pltpu


def _interp_nearest_kernel(x_ref, o_ref, *, scale: int, w: int, k: int):
    # x_ref: (TR, k*W) input tile (k consecutive NCH rows merged along lanes).
    # o_ref: (TR, k*s*W*s) output tile; lane m*s*W*s + a*W*s + j of row r
    #        equals x[row r, chunk m, j // s]  (a = 0..s-1 row replicas).
    x = x_ref[...]
    if scale == 1:
        o_ref[...] = x
        return
    parts = []
    for m in range(k):
        chunk = x[:, m * w:(m + 1) * w]               # (TR, W)     static slice
        xw = jnp.repeat(chunk, scale, axis=-1)        # (TR, W*s)   lane interleave
        parts.extend([xw] * scale)                    # s row-replication copies
    slab = parts[0] if len(parts) == 1 else jnp.concatenate(parts, axis=-1)
    o_ref[...] = slab                                 # single dense full-tile store


def _sublane(itemsize: int) -> int:
    # Sublane packing: 8 for f32, 16 for bf16, 32 for int8.
    return 8 * max(1, 4 // itemsize)


def _default_vmem_config():
    """(budget_bytes, vmem_limit_bytes) picked per chip generation."""
    phys = None
    try:
        phys = pltpu.get_tpu_info().vmem_capacity_bytes
    except Exception:
        phys = None
    if phys is None or phys <= (64 << 20):
        # v7x-class (64 MiB VMEM) or unknown: stay conservative.
        return 24 << 20, 40 << 20
    # v5e / v6e class (128 MiB physical VMEM).
    return 40 << 20, 64 << 20


def _choose_lane_merge(rows: int, w: int, s: int, *, min_lanes: int = 512,
                       max_lanes: int = 4096, max_parts: int = 32) -> int:
    """Number of consecutive rows merged into one output row (must divide rows)."""
    base = s * s * w
    if base % 128 == 0 and base >= min_lanes:
        return 1
    cands = [k for k in range(1, rows + 1)
             if rows % k == 0 and k * base <= max_lanes and k * s <= max_parts]
    if not cands:
        return 1

    def score(k):
        out = k * base
        # Prefer 128-lane-aligned output rows, then width up to min_lanes,
        # then the fewest merged chunks.
        return (out % 128 == 0, min(out, min_lanes), -k)

    return max(cands, key=score)


def _choose_row_tile(rows: int, in_w: int, out_w: int, itemsize: int,
                     budget_bytes: int) -> int:
    """Rows per grid step: biggest sublane-aligned tile fitting the VMEM budget."""
    # Double-buffered input + output blocks, plus one output-sized VMEM temp
    # for the concatenated slab.
    per_row = (2 * in_w + 3 * out_w) * itemsize
    cap = max(1, budget_bytes // per_row)
    if rows <= cap:
        return rows
    sub = _sublane(itemsize)
    return max(sub, (cap // sub) * sub)


def interpolate_nearest(x: jax.Array, scale_factor, *,
                        vmem_budget_bytes: int | None = None,
                        vmem_limit_bytes: int | None = None) -> jax.Array:
    """Nearest-neighbor upsampling of an NCHW tensor by an integer scale factor."""
    s = int(scale_factor)
    # TODO(synk): non-integer / per-axis scale factors (fractional nearest index
    # math) are not implemented.
    assert s == scale_factor and s >= 1, "only integer scale_factor supported"

    N, C, H, W = x.shape
    Ho, Wo = H * s, W * s
    itemsize = jnp.dtype(x.dtype).itemsize

    d_budget, d_limit = _default_vmem_config()
    budget = d_budget if vmem_budget_bytes is None else int(vmem_budget_bytes)
    limit = d_limit if vmem_limit_bytes is None else int(vmem_limit_bytes)

    rows = N * C * H                       # total flattened NCH rows
    k = _choose_lane_merge(rows, W, s)     # rows merged per output row
    rm = rows // k                         # merged row count
    kw = k * W                             # input row width (lanes)
    ow = k * s * s * W                     # output row width (lanes)

    tr = _choose_row_tile(rm, kw, ow, itemsize, budget)
    grid = (pl.cdiv(rm, tr),)

    # Free, contiguous reshape: (N, C, H, W) -> (rm, k*W).
    xr = x.reshape(rm, kw)

    kernel = functools.partial(_interp_nearest_kernel, scale=s, w=W, k=k)

    flat = pl.pallas_call(
        kernel,
        # (rm, k*s*W*s) is row-major-identical to (N, C, Ho, Wo).
        out_shape=jax.ShapeDtypeStruct((rm, ow), x.dtype),
        grid=grid,
        in_specs=[pl.BlockSpec((tr, kw), lambda r: (r, 0))],
        out_specs=pl.BlockSpec((tr, ow), lambda r: (r, 0)),
        compiler_params=pltpu.CompilerParams(
            dimension_semantics=("parallel",),
            vmem_limit_bytes=limit,
        ),
        cost_estimate=pl.CostEstimate(
            flops=0,
            transcendentals=0,
            bytes_accessed=rows * W * itemsize * (1 + s * s),
        ),
    )(xr)

    # Free reshape (contiguous view): (rm, k*s*Wo) -> (N, C, Ho, Wo).
    return flat.reshape(N, C, Ho, Wo)


def _reference(x, s):
    return jnp.repeat(jnp.repeat(x, s, axis=2), s, axis=3)


if __name__ == "__main__":
    key = jax.random.PRNGKey(0)

    # Test 1: the module-sized example (N=2, C=4, 16x16 spatial, f32, scale 2).
    # Lane merge k=8 -> 512-lane output rows, single grid step.
    x1 = jax.random.normal(key, (2, 4, 16, 16), dtype=jnp.float32)
    out1 = jax.block_until_ready(interpolate_nearest(x1, 2))
    ref1 = _reference(x1, 2)
    assert out1.shape == (2, 4, 32, 32), out1.shape
    assert out1.dtype == x1.dtype
    assert jnp.array_equal(out1, ref1), "mismatch vs nearest reference (f32)"

    # Test 2: bf16 with a tiny VMEM budget to exercise a multi-block row grid.
    x2 = jax.random.normal(jax.random.PRNGKey(0), (1, 2, 32, 128),
                           dtype=jnp.bfloat16)
    out2 = jax.block_until_ready(
        interpolate_nearest(x2, 2, vmem_budget_bytes=64 * 1024))
    ref2 = _reference(x2, 2)
    assert out2.shape == ref2.shape and out2.dtype == x2.dtype
    assert jnp.array_equal(out2, ref2), "mismatch vs nearest reference (bf16 tiled)"

    # Test 3: scale 3 with lane merging (output rows 1152 = 9*128 lanes).
    x3 = jax.random.normal(jax.random.PRNGKey(0), (2, 3, 8, 16),
                           dtype=jnp.float32)
    out3 = jax.block_until_ready(interpolate_nearest(x3, 3))
    ref3 = _reference(x3, 3)
    assert out3.shape == ref3.shape and out3.dtype == x3.dtype
    assert jnp.array_equal(out3, ref3), "mismatch vs nearest reference (scale 3)"

    print("KERNEL_OK")
</pallas_src>

<mosaic_0001>
module attributes {stable_mosaic.version = 11 : i64} {
  func.func @_interp_nearest_kernel(%arg0: i32, %arg1: memref<16x128xf32, #tpu.memory_space<vmem>>, %arg2: memref<16x512xf32, #tpu.memory_space<vmem>>) attributes {dimension_semantics = [#tpu.dimension_semantics<parallel>], iteration_bounds = array<i64: 1>, scalar_prefetch = 0 : i64, scratch_operands = 0 : i64, tpu.core_type = #tpu.core_type<tc>, window_params = [{transform_indices = @transform_0, window_bounds = array<i64: 16, 128>}, {transform_indices = @transform_1, window_bounds = array<i64: 16, 512>}]} {
    %c0 = arith.constant 0 : index
    %c0_0 = arith.constant 0 : index
    %0 = vector.load %arg1[%c0, %c0_0] : memref<16x128xf32, #tpu.memory_space<vmem>>, vector<16x128xf32>
    %1 = vector.extract_strided_slice %0 {offsets = [0, 0], sizes = [16, 16], strides = [1, 1]} : vector<16x128xf32> to vector<16x16xf32>
    %2 = vector.shape_cast %1 : vector<16x16xf32> to vector<16x16x1xf32>
    %3 = vector.broadcast %2 : vector<16x16x1xf32> to vector<16x16x2xf32>
    %4 = vector.shape_cast %3 : vector<16x16x2xf32> to vector<16x32xf32>
    %5 = vector.extract_strided_slice %0 {offsets = [0, 16], sizes = [16, 16], strides = [1, 1]} : vector<16x128xf32> to vector<16x16xf32>
    %6 = vector.shape_cast %5 : vector<16x16xf32> to vector<16x16x1xf32>
    %7 = vector.broadcast %6 : vector<16x16x1xf32> to vector<16x16x2xf32>
    %8 = vector.shape_cast %7 : vector<16x16x2xf32> to vector<16x32xf32>
    %9 = vector.extract_strided_slice %0 {offsets = [0, 32], sizes = [16, 16], strides = [1, 1]} : vector<16x128xf32> to vector<16x16xf32>
    %10 = vector.shape_cast %9 : vector<16x16xf32> to vector<16x16x1xf32>
    %11 = vector.broadcast %10 : vector<16x16x1xf32> to vector<16x16x2xf32>
    %12 = vector.shape_cast %11 : vector<16x16x2xf32> to vector<16x32xf32>
    %13 = vector.extract_strided_slice %0 {offsets = [0, 48], sizes = [16, 16], strides = [1, 1]} : vector<16x128xf32> to vector<16x16xf32>
    %14 = vector.shape_cast %13 : vector<16x16xf32> to vector<16x16x1xf32>
    %15 = vector.broadcast %14 : vector<16x16x1xf32> to vector<16x16x2xf32>
    %16 = vector.shape_cast %15 : vector<16x16x2xf32> to vector<16x32xf32>
    %17 = vector.extract_strided_slice %0 {offsets = [0, 64], sizes = [16, 16], strides = [1, 1]} : vector<16x128xf32> to vector<16x16xf32>
    %18 = vector.shape_cast %17 : vector<16x16xf32> to vector<16x16x1xf32>
    %19 = vector.broadcast %18 : vector<16x16x1xf32> to vector<16x16x2xf32>
    %20 = vector.shape_cast %19 : vector<16x16x2xf32> to vector<16x32xf32>
    %21 = vector.extract_strided_slice %0 {offsets = [0, 80], sizes = [16, 16], strides = [1, 1]} : vector<16x128xf32> to vector<16x16xf32>
    %22 = vector.shape_cast %21 : vector<16x16xf32> to vector<16x16x1xf32>
    %23 = vector.broadcast %22 : vector<16x16x1xf32> to vector<16x16x2xf32>
    %24 = vector.shape_cast %23 : vector<16x16x2xf32> to vector<16x32xf32>
    %25 = vector.extract_strided_slice %0 {offsets = [0, 96], sizes = [16, 16], strides = [1, 1]} : vector<16x128xf32> to vector<16x16xf32>
    %26 = vector.shape_cast %25 : vector<16x16xf32> to vector<16x16x1xf32>
    %27 = vector.broadcast %26 : vector<16x16x1xf32> to vector<16x16x2xf32>
    %28 = vector.shape_cast %27 : vector<16x16x2xf32> to vector<16x32xf32>
    %29 = vector.extract_strided_slice %0 {offsets = [0, 112], sizes = [16, 16], strides = [1, 1]} : vector<16x128xf32> to vector<16x16xf32>
    %30 = vector.shape_cast %29 : vector<16x16xf32> to vector<16x16x1xf32>
    %31 = vector.broadcast %30 : vector<16x16x1xf32> to vector<16x16x2xf32>
    %32 = vector.shape_cast %31 : vector<16x16x2xf32> to vector<16x32xf32>
    %33 = tpu.concatenate %4, %4, %8, %8, %12, %12, %16, %16, %20, %20, %24, %24, %28, %28, %32, %32 in 1 : vector<16x32xf32>, vector<16x32xf32>, vector<16x32xf32>, vector<16x32xf32>, vector<16x32xf32>, vector<16x32xf32>, vector<16x32xf32>, vector<16x32xf32>, vector<16x32xf32>, vector<16x32xf32>, vector<16x32xf32>, vector<16x32xf32>, vector<16x32xf32>, vector<16x32xf32>, vector<16x32xf32>, vector<16x32xf32> -> vector<16x512xf32>
    %c0_1 = arith.constant 0 : index
    %c0_2 = arith.constant 0 : index
    %34 = vector.load %arg2[%c0_1, %c0_2] : memref<16x512xf32, #tpu.memory_space<vmem>>, vector<16x512xf32>
    tpu.vector_store %arg2[%c0_1, %c0_2], %33 {strides = array<i32>} : memref<16x512xf32, #tpu.memory_space<vmem>>, vector<16x512xf32>,
    return
  }
  func.func @transform_0(%arg0: i32) -> (i32, i32) {
    %c0_i32 = arith.constant 0 : i32
    %c0_i32_0 = arith.constant 0 : i32
    return %arg0, %c0_i32 : i32, i32
  }
  func.func @transform_1(%arg0: i32) -> (i32, i32) {
    %c0_i32 = arith.constant 0 : i32
    %c0_i32_0 = arith.constant 0 : i32
    return %arg0, %c0_i32 : i32, i32
  }
}

</mosaic_0001>

<llo_original>
// kernel: tpu_custom_call.1
$region0: #{tpu_custom_call.1}
  #allocation0 [shape = 'u32[]', space=smem, size = 0x4, offset = 0x4, fixed_abs, tag = 'smem constant byte address 0x4 - core index']
  #allocation1 [shape = 'u32[144,128]{1,0:T(1,128)}', space=vmem, size = 0x12000, scoped, tag = 'internal scratch']
  %s0 = inlined_call_operand.hbm [shape: f32[16,128], index: 0, kind: input, shape index: {}]
  %s1 = inlined_call_operand.hbm [shape: f32[16,512], index: 1, kind: output, shape index: {}]
  %s2 = sld [smem:[#allocation0]]
  $region18: #{tpu_custom_call.1} parent=0
    _
  %s4 = ssub.s32 1, %s2
  %s5 = scalar_select 0, %s4, %s2
  $region1: #{tpu_custom_call.1} parent=0
    #allocation2 [shape = 'u8[8192]{0}', space=vmem, size = 0x2000, scoped, tag = 'input window, operand 0, single buffered']
    #allocation3 [shape = 's32[1]{0}', space=sflag, size = 0x4, scoped, tag = 'scoped memory for tpu_custom_call.1']
    #allocation4 [shape = 's32[1]{0}', space=sflag, size = 0x4, scoped, tag = 'scoped memory for tpu_custom_call.1']
    #allocation5 [shape = 'u8[32768]{0}', space=vmem, size = 0x8000, scoped, tag = 'output window, operand 0, single buffered']
    %6 = vsyncpa [#allocation3], 0
    %7 = vsyncpa [#allocation4], 0
    // Predicated region
    $region2: #{tpu_custom_call.1} parent=1 // pred_check
      _
    $region3: #{tpu_custom_call.1} parent=1 // pred_check_branch
      %9 = sbr.rel (0) target = $region5
    $region4: #{tpu_custom_call.1} parent=1 // pred_region
      %s11 = ssub.s32 256, 256
      %12 = vsyncadd [#allocation3], %s11
      %s13 = sshll.u32 [#allocation2], 4
      %s14 = int_to_ptr.vmem [resolvable:$true] %s13
      %19 = dma.hbm_to_vmem [thread:$0]  %s0, 256, %s14, [#allocation3], 128, 128, 8
    $region5: #{tpu_custom_call.1} parent=1 // pred_fallthru
      _
    // Predicated region
    $region6: #{tpu_custom_call.1} parent=1 // pred_check
      _
    $region7: #{tpu_custom_call.1} parent=1 // pred_check_branch
      %21 = sbr.rel (0) target = $region9
    $region8: #{tpu_custom_call.1} parent=1 // pred_region
      %22 = dma.done [#allocation3], 256
    $region9: #{tpu_custom_call.1} parent=1 // pred_fallthru
      _
    %v23 = vld [vmem:[#allocation2] sm:$0xff]
    %v24 = vld [vmem:[#allocation2 + $0x8] sm:$0xff]
    %v25 = vlaneseq
    %v26 = vshrl.u32 %v25, 7
    %v27 = vsub.s32 0, %v26
    %v28 = vrot.slane %v23, %v27
    %30 = vbcast.lane.b32.xlu0 %v28, 256
    %v31 = vpop.permute.xlu0 %30
    %s33 = sor.u32 256, 8
    %34 = vbcast.lane.b32.xlu0 %v28, %s33
    %v35 = vpop.permute.xlu0 %34
    %v36 = vlaneseq
    %v37 = vshrl.u32 %v36, 7
    %v38 = vsub.s32 1, %v37
    %v39 = vrot.slane %v23, %v38
    %41 = vbcast.lane.b32.xlu0 %v39, 256
    %v42 = vpop.permute.xlu0 %41
    %s44 = sor.u32 256, 8
    %45 = vbcast.lane.b32.xlu0 %v39, %s44
    %v46 = vpop.permute.xlu0 %45
    %v47 = vlaneseq
    %v48 = vshrl.u32 %v47, 7
    %v49 = vsub.s32 2, %v48
    %v50 = vrot.slane %v23, %v49
    %52 = vbcast.lane.b32.xlu0 %v50, 256
    %v53 = vpop.permute.xlu0 %52
    %s55 = sor.u32 256, 8
    %56 = vbcast.lane.b32.xlu0 %v50, %s55
    %v57 = vpop.permute.xlu0 %56
    %v58 = vlaneseq
    %v59 = vshrl.u32 %v58, 7
    %v60 = vsub.s32 3, %v59
    %v61 = vrot.slane %v23, %v60
    %63 = vbcast.lane.b32.xlu0 %v61, 256
    %v64 = vpop.permute.xlu0 %63
    %s66 = sor.u32 256, 8
    %67 = vbcast.lane.b32.xlu0 %v61, %s66
    %v68 = vpop.permute.xlu0 %67
    %v69 = vlaneseq
    %v70 = vshrl.u32 %v69, 7
    %v71 = vsub.s32 4, %v70
    %v72 = vrot.slane %v23, %v71
    %74 = vbcast.lane.b32.xlu0 %v72, 256
    %v75 = vpop.permute.xlu0 %74
    %s77 = sor.u32 256, 8
    %78 = vbcast.lane.b32.xlu0 %v72, %s77
    %v79 = vpop.permute.xlu0 %78
    %v80 = vlaneseq
    %v81 = vshrl.u32 %v80, 7
    %v82 = vsub.s32 5, %v81
    %v83 = vrot.slane %v23, %v82
    %85 = vbcast.lane.b32.xlu0 %v83, 256
    %v86 = vpop.permute.xlu0 %85
    %s88 = sor.u32 256, 8
    %89 = vbcast.lane.b32.xlu0 %v83, %s88
    %v90 = vpop.permute.xlu0 %89
    %v91 = vlaneseq
    %v92 = vshrl.u32 %v91, 7
    %v93 = vsub.s32 6, %v92
    %v94 = vrot.slane %v23, %v93
    %96 = vbcast.lane.b32.xlu0 %v94, 256
    %v97 = vpop.permute.xlu0 %96
    %s99 = sor.u32 256, 8
    %100 = vbcast.lane.b32.xlu0 %v94, %s99
    %v101 = vpop.permute.xlu0 %100
    %v102 = vlaneseq
    %v103 = vshrl.u32 %v102, 7
    %v104 = vsub.s32 7, %v103
    %v105 = vrot.slane %v23, %v104
    %107 = vbcast.lane.b32.xlu0 %v105, 256
    %v108 = vpop.permute.xlu0 %107
    %s110 = sor.u32 256, 8
    %111 = vbcast.lane.b32.xlu0 %v105, %s110
    %v112 = vpop.permute.xlu0 %111
    %v113 = vlaneseq
    %v114 = vshrl.u32 %v113, 7
    %v115 = vsub.s32 0, %v114
    %v116 = vrot.slane %v24, %v115
    %118 = vbcast.lane.b32.xlu0 %v116, 256
    %v119 = vpop.permute.xlu0 %118
    %s121 = sor.u32 256, 8
    %122 = vbcast.lane.b32.xlu0 %v116, %s121
    %v123 = vpop.permute.xlu0 %122
    %v124 = vlaneseq
    %v125 = vshrl.u32 %v124, 7
    %v126 = vsub.s32 1, %v125
    %v127 = vrot.slane %v24, %v126
    %129 = vbcast.lane.b32.xlu0 %v127, 256
    %v130 = vpop.permute.xlu0 %129
    %s132 = sor.u32 256, 8
    %133 = vbcast.lane.b32.xlu0 %v127, %s132
    %v134 = vpop.permute.xlu0 %133
    %v135 = vlaneseq
    %v136 = vshrl.u32 %v135, 7
    %v137 = vsub.s32 2, %v136
    %v138 = vrot.slane %v24, %v137
    %140 = vbcast.lane.b32.xlu0 %v138, 256
    %v141 = vpop.permute.xlu0 %140
    %s143 = sor.u32 256, 8
    %144 = vbcast.lane.b32.xlu0 %v138, %s143
    %v145 = vpop.permute.xlu0 %144
    %v146 = vlaneseq
    %v147 = vshrl.u32 %v146, 7
    %v148 = vsub.s32 3, %v147
    %v149 = vrot.slane %v24, %v148
    %151 = vbcast.lane.b32.xlu0 %v149, 256
    %v152 = vpop.permute.xlu0 %151
    %s154 = sor.u32 256, 8
    %155 = vbcast.lane.b32.xlu0 %v149, %s154
    %v156 = vpop.permute.xlu0 %155
    %v157 = vlaneseq
    %v158 = vshrl.u32 %v157, 7
    %v159 = vsub.s32 4, %v158
    %v160 = vrot.slane %v24, %v159
    %162 = vbcast.lane.b32.xlu0 %v160, 256
    %v163 = vpop.permute.xlu0 %162
    %s165 = sor.u32 256, 8
    %166 = vbcast.lane.b32.xlu0 %v160, %s165
    %v167 = vpop.permute.xlu0 %166
    %v168 = vlaneseq
    %v169 = vshrl.u32 %v168, 7
    %v170 = vsub.s32 5, %v169
    %v171 = vrot.slane %v24, %v170
    %173 = vbcast.lane.b32.xlu0 %v171, 256
    %v174 = vpop.permute.xlu0 %173
    %s176 = sor.u32 256, 8
    %177 = vbcast.lane.b32.xlu0 %v171, %s176
    %v178 = vpop.permute.xlu0 %177
    %v179 = vlaneseq
    %v180 = vshrl.u32 %v179, 7
    %v181 = vsub.s32 6, %v180
    %v182 = vrot.slane %v24, %v181
    %184 = vbcast.lane.b32.xlu0 %v182, 256
    %v185 = vpop.permute.xlu0 %184
    %s187 = sor.u32 256, 8
    %188 = vbcast.lane.b32.xlu0 %v182, %s187
    %v189 = vpop.permute.xlu0 %188
    %v190 = vlaneseq
    %v191 = vshrl.u32 %v190, 7
    %v192 = vsub.s32 7, %v191
    %v193 = vrot.slane %v24, %v192
    %195 = vbcast.lane.b32.xlu0 %v193, 256
    %v196 = vpop.permute.xlu0 %195
    %s198 = sor.u32 256, 8
    %199 = vbcast.lane.b32.xlu0 %v193, %s198
    %v200 = vpop.permute.xlu0 %199
    %v201 = vcombine.low %v31, %v53
    %v202 = vcombine.high %v31, %v53
    %v204 = vunpack.c.l.s4 1983009808
    %v205 = vunpack.c.0.s8 %v204
    %v206 = vlaneseq
    %v207 = vshrl.u32 %v206, 7
    %v208 = vsub.s32 %v205, %v207
    %v209 = vrot.slane %v201, %v208
    %v211 = vunpack.c.l.s4 1983009808
    %v212 = vunpack.c.0.s8 %v211
    %v213 = vlaneseq
    %v214 = vshrl.u32 %v213, 7
    %v215 = vsub.s32 %v212, %v214
    %v216 = vrot.slane %v202, %v215
    %v217 = vcombine.low %v42, %v64
    %v218 = vcombine.high %v42, %v64
    %v220 = vunpack.c.l.s4 1983009808
    %v221 = vunpack.c.0.s8 %v220
    %v222 = vlaneseq
    %v223 = vshrl.u32 %v222, 7
    %v224 = vsub.s32 %v221, %v223
    %v225 = vrot.slane %v217, %v224
    %v227 = vunpack.c.l.s4 1983009808
    %v228 = vunpack.c.0.s8 %v227
    %v229 = vlaneseq
    %v230 = vshrl.u32 %v229, 7
    %v231 = vsub.s32 %v228, %v230
    %v232 = vrot.slane %v218, %v231
    %v233 = vcombine.low %v75, %v97
    %v234 = vcombine.high %v75, %v97
    %v236 = vunpack.c.l.s4 1983009808
    %v237 = vunpack.c.0.s8 %v236
    %v238 = vlaneseq
    %v239 = vshrl.u32 %v238, 7
    %v240 = vsub.s32 %v237, %v239
    %v241 = vrot.slane %v233, %v240
    %v243 = vunpack.c.l.s4 1983009808
    %v244 = vunpack.c.0.s8 %v243
    %v245 = vlaneseq
    %v246 = vshrl.u32 %v245, 7
    %v247 = vsub.s32 %v244, %v246
    %v248 = vrot.slane %v234, %v247
    %v249 = vcombine.low %v86, %v108
    %v250 = vcombine.high %v86, %v108
    %v252 = vunpack.c.l.s4 1983009808
    %v253 = vunpack.c.0.s8 %v252
    %v254 = vlaneseq
    %v255 = vshrl.u32 %v254, 7
    %v256 = vsub.s32 %v253, %v255
    %v257 = vrot.slane %v249, %v256
    %v259 = vunpack.c.l.s4 1983009808
    %v260 = vunpack.c.0.s8 %v259
    %v261 = vlaneseq
    %v262 = vshrl.u32 %v261, 7
    %v263 = vsub.s32 %v260, %v262
    %v264 = vrot.slane %v250, %v263
    %v265 = vcombine.low %v209, %v225
    %v266 = vcombine.high %v209, %v225
    %v268 = vunpack.c.l.s4 1934713408
    %v269 = vunpack.c.0.s8 %v268
    %v270 = vlaneseq
    %v271 = vshrl.u32 %v270, 7
    %v272 = vsub.s32 %v269, %v271
    %v273 = vrot.slane %v265, %v272
    %v275 = vunpack.c.l.s4 1934713408
    %v276 = vunpack.c.0.s8 %v275
    %v277 = vlaneseq
    %v278 = vshrl.u32 %v277, 7
    %v279 = vsub.s32 %v276, %v278
    %v280 = vrot.slane %v266, %v279
    %v281 = vcombine.low %v216, %v232
    %v282 = vcombine.high %v216, %v232
    %v284 = vunpack.c.l.s4 1934713408
    %v285 = vunpack.c.0.s8 %v284
    %v286 = vlaneseq
    %v287 = vshrl.u32 %v286, 7
    %v288 = vsub.s32 %v285, %v287
    %v289 = vrot.slane %v281, %v288
    %v291 = vunpack.c.l.s4 1934713408
    %v292 = vunpack.c.0.s8 %v291
    %v293 = vlaneseq
    %v294 = vshrl.u32 %v293, 7
    %v295 = vsub.s32 %v292, %v294
    %v296 = vrot.slane %v282, %v295
    %v297 = vcombine.low %v241, %v257
    %v298 = vcombine.high %v241, %v257
    %v300 = vunpack.c.l.s4 1934713408
    %v301 = vunpack.c.0.s8 %v300
    %v302 = vlaneseq
    %v303 = vshrl.u32 %v302, 7
    %v304 = vsub.s32 %v301, %v303
    %v305 = vrot.slane %v297, %v304
    %v307 = vunpack.c.l.s4 1934713408
    %v308 = vunpack.c.0.s8 %v307
    %v309 = vlaneseq
    %v310 = vshrl.u32 %v309, 7
    %v311 = vsub.s32 %v308, %v310
    %v312 = vrot.slane %v298, %v311
    %v313 = vcombine.low %v248, %v264
    %v314 = vcombine.high %v248, %v264
    %v316 = vunpack.c.l.s4 1934713408
    %v317 = vunpack.c.0.s8 %v316
    %v318 = vlaneseq
    %v319 = vshrl.u32 %v318, 7
    %v320 = vsub.s32 %v317, %v319
    %v321 = vrot.slane %v313, %v320
    %v323 = vunpack.c.l.s4 1934713408
    %v324 = vunpack.c.0.s8 %v323
    %v325 = vlaneseq
    %v326 = vshrl.u32 %v325, 7
    %v327 = vsub.s32 %v324, %v326
    %v328 = vrot.slane %v314, %v327
    %v329 = vcombine.low %v273, %v305
    %v330 = vcombine.high %v273, %v305
    %v331 = vcombine.low %v280, %v312
    %v332 = vcombine.high %v280, %v312
    %v333 = vcombine.low %v289, %v321
    %v334 = vcombine.high %v289, %v321
    %v335 = vcombine.low %v296, %v328
    %v336 = vcombine.high %v296, %v328
    %v337 = vcombine.low %v119, %v141
    %v338 = vcombine.high %v119, %v141
    %v340 = vunpack.c.l.s4 1983009808
    %v341 = vunpack.c.0.s8 %v340
    %v342 = vlaneseq
    %v343 = vshrl.u32 %v342, 7
    %v344 = vsub.s32 %v341, %v343
    %v345 = vrot.slane %v337, %v344
    %v347 = vunpack.c.l.s4 1983009808
    %v348 = vunpack.c.0.s8 %v347
    %v349 = vlaneseq
    %v350 = vshrl.u32 %v349, 7
    %v351 = vsub.s32 %v348, %v350
    %v352 = vrot.slane %v338, %v351
    %v353 = vcombine.low %v130, %v152
    %v354 = vcombine.high %v130, %v152
    %v356 = vunpack.c.l.s4 1983009808
    %v357 = vunpack.c.0.s8 %v356
    %v358 = vlaneseq
    %v359 = vshrl.u32 %v358, 7
    %v360 = vsub.s32 %v357, %v359
    %v361 = vrot.slane %v353, %v360
    %v363 = vunpack.c.l.s4 1983009808
    %v364 = vunpack.c.0.s8 %v363
    %v365 = vlaneseq
    %v366 = vshrl.u32 %v365, 7
    %v367 = vsub.s32 %v364, %v366
    %v368 = vrot.slane %v354, %v367
    %v369 = vcombine.low %v163, %v185
    %v370 = vcombine.high %v163, %v185
    %v372 = vunpack.c.l.s4 1983009808
    %v373 = vunpack.c.0.s8 %v372
    %v374 = vlaneseq
    %v375 = vshrl.u32 %v374, 7
    %v376 = vsub.s32 %v373, %v375
    %v377 = vrot.slane %v369, %v376
    %v379 = vunpack.c.l.s4 1983009808
    %v380 = vunpack.c.0.s8 %v379
    %v381 = vlaneseq
    %v382 = vshrl.u32 %v381, 7
    %v383 = vsub.s32 %v380, %v382
    %v384 = vrot.slane %v370, %v383
    %v385 = vcombine.low %v174, %v196
    %v386 = vcombine.high %v174, %v196
    %v388 = vunpack.c.l.s4 1983009808
    %v389 = vunpack.c.0.s8 %v388
    %v390 = vlaneseq
    %v391 = vshrl.u32 %v390, 7
    %v392 = vsub.s32 %v389, %v391
    %v393 = vrot.slane %v385, %v392
    %v395 = vunpack.c.l.s4 1983009808
    %v396 = vunpack.c.0.s8 %v395
    %v397 = vlaneseq
    %v398 = vshrl.u32 %v397, 7
    %v399 = vsub.s32 %v396, %v398
    %v400 = vrot.slane %v386, %v399
    %v401 = vcombine.low %v345, %v361
    %v402 = vcombine.high %v345, %v361
    %v404 = vunpack.c.l.s4 1934713408
    %v405 = vunpack.c.0.s8 %v404
    %v406 = vlaneseq
    %v407 = vshrl.u32 %v406, 7
    %v408 = vsub.s32 %v405, %v407
    %v409 = vrot.slane %v401, %v408
    %v411 = vunpack.c.l.s4 1934713408
    %v412 = vunpack.c.0.s8 %v411
    %v413 = vlaneseq
    %v414 = vshrl.u32 %v413, 7
    %v415 = vsub.s32 %v412, %v414
    %v416 = vrot.slane %v402, %v415
    %v417 = vcombine.low %v352, %v368
    %v418 = vcombine.high %v352, %v368
    %v420 = vunpack.c.l.s4 1934713408
    %v421 = vunpack.c.0.s8 %v420
    %v422 = vlaneseq
    %v423 = vshrl.u32 %v422, 7
    %v424 = vsub.s32 %v421, %v423
    %v425 = vrot.slane %v417, %v424
    %v427 = vunpack.c.l.s4 1934713408
    %v428 = vunpack.c.0.s8 %v427
    %v429 = vlaneseq
    %v430 = vshrl.u32 %v429, 7
    %v431 = vsub.s32 %v428, %v430
    %v432 = vrot.slane %v418, %v431
    %v433 = vcombine.low %v377, %v393
    %v434 = vcombine.high %v377, %v393
    %v436 = vunpack.c.l.s4 1934713408
    %v437 = vunpack.c.0.s8 %v436
    %v438 = vlaneseq
    %v439 = vshrl.u32 %v438, 7
    %v440 = vsub.s32 %v437, %v439
    %v441 = vrot.slane %v433, %v440
    %v443 = vunpack.c.l.s4 1934713408
    %v444 = vunpack.c.0.s8 %v443
    %v445 = vlaneseq
    %v446 = vshrl.u32 %v445, 7
    %v447 = vsub.s32 %v444, %v446
    %v448 = vrot.slane %v434, %v447
    %v449 = vcombine.low %v384, %v400
    %v450 = vcombine.high %v384, %v400
    %v452 = vunpack.c.l.s4 1934713408
    %v453 = vunpack.c.0.s8 %v452
    %v454 = vlaneseq
    %v455 = vshrl.u32 %v454, 7
    %v456 = vsub.s32 %v453, %v455
    %v457 = vrot.slane %v449, %v456
    %v459 = vunpack.c.l.s4 1934713408
    %v460 = vunpack.c.0.s8 %v459
    %v461 = vlaneseq
    %v462 = vshrl.u32 %v461, 7
    %v463 = vsub.s32 %v460, %v462
    %v464 = vrot.slane %v450, %v463
    %v465 = vcombine.low %v409, %v441
    %v466 = vcombine.high %v409, %v441
    %v467 = vcombine.low %v416, %v448
    %v468 = vcombine.high %v416, %v448
    %v469 = vcombine.low %v425, %v457
    %v470 = vcombine.high %v425, %v457
    %v471 = vcombine.low %v432, %v464
    %v472 = vcombine.high %v432, %v464
    %v473 = vcombine.low %v35, %v57
    %v474 = vcombine.high %v35, %v57
    %v476 = vunpack.c.l.s4 1983009808
    %v477 = vunpack.c.0.s8 %v476
    %v478 = vlaneseq
    %v479 = vshrl.u32 %v478, 7
    %v480 = vsub.s32 %v477, %v479
    %v481 = vrot.slane %v473, %v480
    %v483 = vunpack.c.l.s4 1983009808
    %v484 = vunpack.c.0.s8 %v483
    %v485 = vlaneseq
    %v486 = vshrl.u32 %v485, 7
    %v487 = vsub.s32 %v484, %v486
    %v488 = vrot.slane %v474, %v487
    %v489 = vcombine.low %v46, %v68
    %v490 = vcombine.high %v46, %v68
    %v492 = vunpack.c.l.s4 1983009808
    %v493 = vunpack.c.0.s8 %v492
    %v494 = vlaneseq
    %v495 = vshrl.u32 %v494, 7
    %v496 = vsub.s32 %v493, %v495
    %v497 = vrot.slane %v489, %v496
    %v499 = vunpack.c.l.s4 1983009808
    %v500 = vunpack.c.0.s8 %v499
    %v501 = vlaneseq
    %v502 = vshrl.u32 %v501, 7
    %v503 = vsub.s32 %v500, %v502
    %v504 = vrot.slane %v490, %v503
    %v505 = vcombine.low %v79, %v101
    %v506 = vcombine.high %v79, %v101
    %v508 = vunpack.c.l.s4 1983009808
    %v509 = vunpack.c.0.s8 %v508
    %v510 = vlaneseq
    %v511 = vshrl.u32 %v510, 7
    %v512 = vsub.s32 %v509, %v511
    %v513 = vrot.slane %v505, %v512
    %v515 = vunpack.c.l.s4 1983009808
    %v516 = vunpack.c.0.s8 %v515
    %v517 = vlaneseq
    %v518 = vshrl.u32 %v517, 7
    %v519 = vsub.s32 %v516, %v518
    %v520 = vrot.slane %v506, %v519
    %v521 = vcombine.low %v90, %v112
    %v522 = vcombine.high %v90, %v112
    %v524 = vunpack.c.l.s4 1983009808
    %v525 = vunpack.c.0.s8 %v524
    %v526 = vlaneseq
    %v527 = vshrl.u32 %v526, 7
    %v528 = vsub.s32 %v525, %v527
    %v529 = vrot.slane %v521, %v528
    %v531 = vunpack.c.l.s4 1983009808
    %v532 = vunpack.c.0.s8 %v531
    %v533 = vlaneseq
    %v534 = vshrl.u32 %v533, 7
    %v535 = vsub.s32 %v532, %v534
    %v536 = vrot.slane %v522, %v535
    %v537 = vcombine.low %v481, %v497
    %v538 = vcombine.high %v481, %v497
    %v540 = vunpack.c.l.s4 1934713408
    %v541 = vunpack.c.0.s8 %v540
    %v542 = vlaneseq
    %v543 = vshrl.u32 %v542, 7
    %v544 = vsub.s32 %v541, %v543
    %v545 = vrot.slane %v537, %v544
    %v547 = vunpack.c.l.s4 1934713408
    %v548 = vunpack.c.0.s8 %v547
    %v549 = vlaneseq
    %v550 = vshrl.u32 %v549, 7
    %v551 = vsub.s32 %v548, %v550
    %v552 = vrot.slane %v538, %v551
    %v553 = vcombine.low %v488, %v504
    %v554 = vcombine.high %v488, %v504
    %v556 = vunpack.c.l.s4 1934713408
    %v557 = vunpack.c.0.s8 %v556
    %v558 = vlaneseq
    %v559 = vshrl.u32 %v558, 7
    %v560 = vsub.s32 %v557, %v559
    %v561 = vrot.slane %v553, %v560
    %v563 = vunpack.c.l.s4 1934713408
    %v564 = vunpack.c.0.s8 %v563
    %v565 = vlaneseq
    %v566 = vshrl.u32 %v565, 7
    %v567 = vsub.s32 %v564, %v566
    %v568 = vrot.slane %v554, %v567
    %v569 = vcombine.low %v513, %v529
    %v570 = vcombine.high %v513, %v529
    %v572 = vunpack.c.l.s4 1934713408
    %v573 = vunpack.c.0.s8 %v572
    %v574 = vlaneseq
    %v575 = vshrl.u32 %v574, 7
    %v576 = vsub.s32 %v573, %v575
    %v577 = vrot.slane %v569, %v576
    %v579 = vunpack.c.l.s4 1934713408
    %v580 = vunpack.c.0.s8 %v579
    %v581 = vlaneseq
    %v582 = vshrl.u32 %v581, 7
    %v583 = vsub.s32 %v580, %v582
    %v584 = vrot.slane %v570, %v583
    %v585 = vcombine.low %v520, %v536
    %v586 = vcombine.high %v520, %v536
    %v588 = vunpack.c.l.s4 1934713408
    %v589 = vunpack.c.0.s8 %v588
    %v590 = vlaneseq
    %v591 = vshrl.u32 %v590, 7
    %v592 = vsub.s32 %v589, %v591
    %v593 = vrot.slane %v585, %v592
    %v595 = vunpack.c.l.s4 1934713408
    %v596 = vunpack.c.0.s8 %v595
    %v597 = vlaneseq
    %v598 = vshrl.u32 %v597, 7
    %v599 = vsub.s32 %v596, %v598
    %v600 = vrot.slane %v586, %v599
    %v601 = vcombine.low %v545, %v577
    %v602 = vcombine.high %v545, %v577
    %v603 = vcombine.low %v552, %v584
    %v604 = vcombine.high %v552, %v584
    %v605 = vcombine.low %v561, %v593
    %v606 = vcombine.high %v561, %v593
    %v607 = vcombine.low %v568, %v600
    %v608 = vcombine.high %v568, %v600
    %v609 = vcombine.low %v123, %v145
    %v610 = vcombine.high %v123, %v145
    %v612 = vunpack.c.l.s4 1983009808
    %v613 = vunpack.c.0.s8 %v612
    %v614 = vlaneseq
    %v615 = vshrl.u32 %v614, 7
    %v616 = vsub.s32 %v613, %v615
    %v617 = vrot.slane %v609, %v616
    %v619 = vunpack.c.l.s4 1983009808
    %v620 = vunpack.c.0.s8 %v619
    %v621 = vlaneseq
    %v622 = vshrl.u32 %v621, 7
    %v623 = vsub.s32 %v620, %v622
    %v624 = vrot.slane %v610, %v623
    %v625 = vcombine.low %v134, %v156
    %v626 = vcombine.high %v134, %v156
    %v628 = vunpack.c.l.s4 1983009808
    %v629 = vunpack.c.0.s8 %v628
    %v630 = vlaneseq
    %v631 = vshrl.u32 %v630, 7
    %v632 = vsub.s32 %v629, %v631
    %v633 = vrot.slane %v625, %v632
    %v635 = vunpack.c.l.s4 1983009808
    %v636 = vunpack.c.0.s8 %v635
    %v637 = vlaneseq
    %v638 = vshrl.u32 %v637, 7
    %v639 = vsub.s32 %v636, %v638
    %v640 = vrot.slane %v626, %v639
    %v641 = vcombine.low %v167, %v189
    %v642 = vcombine.high %v167, %v189
    %v644 = vunpack.c.l.s4 1983009808
    %v645 = vunpack.c.0.s8 %v644
    %v646 = vlaneseq
    %v647 = vshrl.u32 %v646, 7
    %v648 = vsub.s32 %v645, %v647
    %v649 = vrot.slane %v641, %v648
    %v651 = vunpack.c.l.s4 1983009808
    %v652 = vunpack.c.0.s8 %v651
    %v653 = vlaneseq
    %v654 = vshrl.u32 %v653, 7
    %v655 = vsub.s32 %v652, %v654
    %v656 = vrot.slane %v642, %v655
    %v657 = vcombine.low %v178, %v200
    %v658 = vcombine.high %v178, %v200
    %v660 = vunpack.c.l.s4 1983009808
    %v661 = vunpack.c.0.s8 %v660
    %v662 = vlaneseq
    %v663 = vshrl.u32 %v662, 7
    %v664 = vsub.s32 %v661, %v663
    %v665 = vrot.slane %v657, %v664
    %v667 = vunpack.c.l.s4 1983009808
    %v668 = vunpack.c.0.s8 %v667
    %v669 = vlaneseq
    %v670 = vshrl.u32 %v669, 7
    %v671 = vsub.s32 %v668, %v670
    %v672 = vrot.slane %v658, %v671
    %v673 = vcombine.low %v617, %v633
    %v674 = vcombine.high %v617, %v633
    %v676 = vunpack.c.l.s4 1934713408
    %v677 = vunpack.c.0.s8 %v676
    %v678 = vlaneseq
    %v679 = vshrl.u32 %v678, 7
    %v680 = vsub.s32 %v677, %v679
    %v681 = vrot.slane %v673, %v680
    %v683 = vunpack.c.l.s4 1934713408
    %v684 = vunpack.c.0.s8 %v683
    %v685 = vlaneseq
    %v686 = vshrl.u32 %v685, 7
    %v687 = vsub.s32 %v684, %v686
    %v688 = vrot.slane %v674, %v687
    %v689 = vcombine.low %v624, %v640
    %v690 = vcombine.high %v624, %v640
    %v692 = vunpack.c.l.s4 1934713408
    %v693 = vunpack.c.0.s8 %v692
    %v694 = vlaneseq
    %v695 = vshrl.u32 %v694, 7
    %v696 = vsub.s32 %v693, %v695
    %v697 = vrot.slane %v689, %v696
    %v699 = vunpack.c.l.s4 1934713408
    %v700 = vunpack.c.0.s8 %v699
    %v701 = vlaneseq
    %v702 = vshrl.u32 %v701, 7
    %v703 = vsub.s32 %v700, %v702
    %v704 = vrot.slane %v690, %v703
    %v705 = vcombine.low %v649, %v665
    %v706 = vcombine.high %v649, %v665
    %v708 = vunpack.c.l.s4 1934713408
    %v709 = vunpack.c.0.s8 %v708
    %v710 = vlaneseq
    %v711 = vshrl.u32 %v710, 7
    %v712 = vsub.s32 %v709, %v711
    %v713 = vrot.slane %v705, %v712
    %v715 = vunpack.c.l.s4 1934713408
    %v716 = vunpack.c.0.s8 %v715
    %v717 = vlaneseq
    %v718 = vshrl.u32 %v717, 7
    %v719 = vsub.s32 %v716, %v718
    %v720 = vrot.slane %v706, %v719
    %v721 = vcombine.low %v656, %v672
    %v722 = vcombine.high %v656, %v672
    %v724 = vunpack.c.l.s4 1934713408
    %v725 = vunpack.c.0.s8 %v724
    %v726 = vlaneseq
    %v727 = vshrl.u32 %v726, 7
    %v728 = vsub.s32 %v725, %v727
    %v729 = vrot.slane %v721, %v728
    %v731 = vunpack.c.l.s4 1934713408
    %v732 = vunpack.c.0.s8 %v731
    %v733 = vlaneseq
    %v734 = vshrl.u32 %v733, 7
    %v735 = vsub.s32 %v732, %v734
    %v736 = vrot.slane %v722, %v735
    %v737 = vcombine.low %v681, %v713
    %v738 = vcombine.high %v681, %v713
    %v739 = vcombine.low %v688, %v720
    %v740 = vcombine.high %v688, %v720
    %v741 = vcombine.low %v697, %v729
    %v742 = vcombine.high %v697, %v729
    %v743 = vcombine.low %v704, %v736
    %v744 = vcombine.high %v704, %v736
    %747 = vrot.lane.b32.xlu0 %v330, 2
    %v748 = vpop.permute.xlu0 %747
    %749 = vrot.lane.b32.xlu0 %v466, 2
    %v750 = vpop.permute.xlu0 %749
    %755 = vrot.lane.b32.xlu0 %v331, 4
    %v756 = vpop.permute.xlu0 %755
    %757 = vrot.lane.b32.xlu0 %v467, 4
    %v758 = vpop.permute.xlu0 %757
    %763 = vrot.lane.b32.xlu0 %v332, 6
    %v764 = vpop.permute.xlu0 %763
    %765 = vrot.lane.b32.xlu0 %v468, 6
    %v766 = vpop.permute.xlu0 %765
    %771 = vrot.lane.b32.xlu0 %v333, 8
    %v772 = vpop.permute.xlu0 %771
    %773 = vrot.lane.b32.xlu0 %v469, 8
    %v774 = vpop.permute.xlu0 %773
    %779 = vrot.lane.b32.xlu0 %v334, 10
    %v780 = vpop.permute.xlu0 %779
    %781 = vrot.lane.b32.xlu0 %v470, 10
    %v782 = vpop.permute.xlu0 %781
    %787 = vrot.lane.b32.xlu0 %v335, 12
    %v788 = vpop.permute.xlu0 %787
    %789 = vrot.lane.b32.xlu0 %v471, 12
    %v790 = vpop.permute.xlu0 %789
    %795 = vrot.lane.b32.xlu0 %v336, 14
    %v796 = vpop.permute.xlu0 %795
    %797 = vrot.lane.b32.xlu0 %v472, 14
    %v798 = vpop.permute.xlu0 %797
    %803 = vrot.lane.b32.xlu0 %v601, 16
    %v804 = vpop.permute.xlu0 %803
    %805 = vrot.lane.b32.xlu0 %v737, 16
    %v806 = vpop.permute.xlu0 %805
    %811 = vrot.lane.b32.xlu0 %v602, 18
    %v812 = vpop.permute.xlu0 %811
    %813 = vrot.lane.b32.xlu0 %v738, 18
    %v814 = vpop.permute.xlu0 %813
    %819 = vrot.lane.b32.xlu0 %v603, 20
    %v820 = vpop.permute.xlu0 %819
    %821 = vrot.lane.b32.xlu0 %v739, 20
    %v822 = vpop.permute.xlu0 %821
    %827 = vrot.lane.b32.xlu0 %v604, 22
    %v828 = vpop.permute.xlu0 %827
    %829 = vrot.lane.b32.xlu0 %v740, 22
    %v830 = vpop.permute.xlu0 %829
    %835 = vrot.lane.b32.xlu0 %v605, 24
    %v836 = vpop.permute.xlu0 %835
    %837 = vrot.lane.b32.xlu0 %v741, 24
    %v838 = vpop.permute.xlu0 %837
    %843 = vrot.lane.b32.xlu0 %v606, 26
    %v844 = vpop.permute.xlu0 %843
    %845 = vrot.lane.b32.xlu0 %v742, 26
    %v846 = vpop.permute.xlu0 %845
    %851 = vrot.lane.b32.xlu0 %v607, 28
    %v852 = vpop.permute.xlu0 %851
    %853 = vrot.lane.b32.xlu0 %v743, 28
    %v854 = vpop.permute.xlu0 %853
    %859 = vrot.lane.b32.xlu0 %v608, 30
    %v860 = vpop.permute.xlu0 %859
    %861 = vrot.lane.b32.xlu0 %v744, 30
    %v862 = vpop.permute.xlu0 %861
    %vm865 = vcmask 15360
    %v866 = vsel %vm865, %v329, %v748
    %v867 = vsel %vm865, %v465, %v750
    %vm868 = vcmask 31744
    %v869 = vsel %vm868, %v866, %v756
    %v870 = vsel %vm868, %v867, %v758
    %vm871 = vcmask 48128
    %v872 = vsel %vm871, %v869, %v764
    %v873 = vsel %vm871, %v870, %v766
    %vm874 = vcmask 64512
    %v875 = vsel %vm874, %v872, %v772
    %v876 = vsel %vm874, %v873, %v774
    %vm877 = vcmask 80896
    %v878 = vsel %vm877, %v875, %v780
    %v879 = vsel %vm877, %v876, %v782
    %vm880 = vcmask 97280
    %v881 = vsel %vm880, %v878, %v788
    %v882 = vsel %vm880, %v879, %v790
    %vm883 = vcmask 113664
    %v884 = vsel %vm883, %v881, %v796
    %v885 = vsel %vm883, %v882, %v798
    %vm886 = vcmask 130048
    %v887 = vsel %vm886, %v884, %v804
    %v888 = vsel %vm886, %v885, %v806
    %vm889 = vcmask 146432
    %v890 = vsel %vm889, %v887, %v812
    %v891 = vsel %vm889, %v888, %v814
    %vm892 = vcmask 162816
    %v893 = vsel %vm892, %v890, %v820
    %v894 = vsel %vm892, %v891, %v822
    %vm895 = vcmask 179200
    %v896 = vsel %vm895, %v893, %v828
    %v897 = vsel %vm895, %v894, %v830
    %vm898 = vcmask 195584
    %v899 = vsel %vm898, %v896, %v836
    %v900 = vsel %vm898, %v897, %v838
    %vm901 = vcmask 211968
    %v902 = vsel %vm901, %v899, %v844
    %v903 = vsel %vm901, %v900, %v846
    %vm904 = vcmask 228352
    %v905 = vsel %vm904, %v902, %v852
    %v906 = vsel %vm904, %v903, %v854
    %vm907 = vcmask 244736
    %v908 = vsel %vm907, %v905, %v860
    %v909 = vsel %vm907, %v906, %v862
    %s911 = sor.u32 256, 16
    %912 = vbcast.lane.b32.xlu0 %v28, %s911
    %v913 = vpop.permute.xlu0 %912
    %s915 = sor.u32 256, 24
    %916 = vbcast.lane.b32.xlu0 %v28, %s915
    %v917 = vpop.permute.xlu0 %916
    %s919 = sor.u32 256, 16
    %920 = vbcast.lane.b32.xlu0 %v39, %s919
    %v921 = vpop.permute.xlu0 %920
    %s923 = sor.u32 256, 24
    %924 = vbcast.lane.b32.xlu0 %v39, %s923
    %v925 = vpop.permute.xlu0 %924
    %s927 = sor.u32 256, 16
    %928 = vbcast.lane.b32.xlu0 %v50, %s927
    %v929 = vpop.permute.xlu0 %928
    %s931 = sor.u32 256, 24
    %932 = vbcast.lane.b32.xlu0 %v50, %s931
    %v933 = vpop.permute.xlu0 %932
    %s935 = sor.u32 256, 16
    %936 = vbcast.lane.b32.xlu0 %v61, %s935
    %v937 = vpop.permute.xlu0 %936
    %s939 = sor.u32 256, 24
    %940 = vbcast.lane.b32.xlu0 %v61, %s939
    %v941 = vpop.permute.xlu0 %940
    %s943 = sor.u32 256, 16
    %944 = vbcast.lane.b32.xlu0 %v72, %s943
    %v945 = vpop.permute.xlu0 %944
    %s947 = sor.u32 256, 24
    %948 = vbcast.lane.b32.xlu0 %v72, %s947
    %v949 = vpop.permute.xlu0 %948
    %s951 = sor.u32 256, 16
    %952 = vbcast.lane.b32.xlu0 %v83, %s951
    %v953 = vpop.permute.xlu0 %952
    %s955 = sor.u32 256, 24
    %956 = vbcast.lane.b32.xlu0 %v83, %s955
    %v957 = vpop.permute.xlu0 %956
    %s959 = sor.u32 256, 16
    %960 = vbcast.lane.b32.xlu0 %v94, %s959
    %v961 = vpop.permute.xlu0 %960
    %s963 = sor.u32 256, 24
    %964 = vbcast.lane.b32.xlu0 %v94, %s963
    %v965 = vpop.permute.xlu0 %964
    %s967 = sor.u32 256, 16
    %968 = vbcast.lane.b32.xlu0 %v105, %s967
    %v969 = vpop.permute.xlu0 %968
    %s971 = sor.u32 256, 24
    %972 = vbcast.lane.b32.xlu0 %v105, %s971
    %v973 = vpop.permute.xlu0 %972
    %s975 = sor.u32 256, 16
    %976 = vbcast.lane.b32.xlu0 %v116, %s975
    %v977 = vpop.permute.xlu0 %976
    %s979 = sor.u32 256, 24
    %980 = vbcast.lane.b32.xlu0 %v116, %s979
    %v981 = vpop.permute.xlu0 %980
    %s983 = sor.u32 256, 16
    %984 = vbcast.lane.b32.xlu0 %v127, %s983
    %v985 = vpop.permute.xlu0 %984
    %s987 = sor.u32 256, 24
    %988 = vbcast.lane.b32.xlu0 %v127, %s987
    %v989 = vpop.permute.xlu0 %988
    %s991 = sor.u32 256, 16
    %992 = vbcast.lane.b32.xlu0 %v138, %s991
    %v993 = vpop.permute.xlu0 %992
    %s995 = sor.u32 256, 24
    %996 = vbcast.lane.b32.xlu0 %v138, %s995
    %v997 = vpop.permute.xlu0 %996
    %s999 = sor.u32 256, 16
    %1000 = vbcast.lane.b32.xlu0 %v149, %s999
    %v1001 = vpop.permute.xlu0 %1000
    %s1003 = sor.u32 256, 24
    %1004 = vbcast.lane.b32.xlu0 %v149, %s1003
    %v1005 = vpop.permute.xlu0 %1004
    %s1007 = sor.u32 256, 16
    %1008 = vbcast.lane.b32.xlu0 %v160, %s1007
    %v1009 = vpop.permute.xlu0 %1008
    %s1011 = sor.u32 256, 24
    %1012 = vbcast.lane.b32.xlu0 %v160, %s1011
    %v1013 = vpop.permute.xlu0 %1012
    %s1015 = sor.u32 256, 16
    %1016 = vbcast.lane.b32.xlu0 %v171, %s1015
    %v1017 = vpop.permute.xlu0 %1016
    %s1019 = sor.u32 256, 24
    %1020 = vbcast.lane.b32.xlu0 %v171, %s1019
    %v1021 = vpop.permute.xlu0 %1020
    %s1023 = sor.u32 256, 16
    %1024 = vbcast.lane.b32.xlu0 %v182, %s1023
    %v1025 = vpop.permute.xlu0 %1024
    %s1027 = sor.u32 256, 24
    %1028 = vbcast.lane.b32.xlu0 %v182, %s1027
    %v1029 = vpop.permute.xlu0 %1028
    %s1031 = sor.u32 256, 16
    %1032 = vbcast.lane.b32.xlu0 %v193, %s1031
    %v1033 = vpop.permute.xlu0 %1032
    %s1035 = sor.u32 256, 24
    %1036 = vbcast.lane.b32.xlu0 %v193, %s1035
    %v1037 = vpop.permute.xlu0 %1036
    %v1038 = vcombine.low %v913, %v929
    %v1039 = vcombine.high %v913, %v929
    %v1041 = vunpack.c.l.s4 1983009808
    %v1042 = vunpack.c.0.s8 %v1041
    %v1043 = vlaneseq
    %v1044 = vshrl.u32 %v1043, 7
    %v1045 = vsub.s32 %v1042, %v1044
    %v1046 = vrot.slane %v1038, %v1045
    %v1048 = vunpack.c.l.s4 1983009808
    %v1049 = vunpack.c.0.s8 %v1048
    %v1050 = vlaneseq
    %v1051 = vshrl.u32 %v1050, 7
    %v1052 = vsub.s32 %v1049, %v1051
    %v1053 = vrot.slane %v1039, %v1052
    %v1054 = vcombine.low %v921, %v937
    %v1055 = vcombine.high %v921, %v937
    %v1057 = vunpack.c.l.s4 1983009808
    %v1058 = vunpack.c.0.s8 %v1057
    %v1059 = vlaneseq
    %v1060 = vshrl.u32 %v1059, 7
    %v1061 = vsub.s32 %v1058, %v1060
    %v1062 = vrot.slane %v1054, %v1061
    %v1064 = vunpack.c.l.s4 1983009808
    %v1065 = vunpack.c.0.s8 %v1064
    %v1066 = vlaneseq
    %v1067 = vshrl.u32 %v1066, 7
    %v1068 = vsub.s32 %v1065, %v1067
    %v1069 = vrot.slane %v1055, %v1068
    %v1070 = vcombine.low %v945, %v961
    %v1071 = vcombine.high %v945, %v961
    %v1073 = vunpack.c.l.s4 1983009808
    %v1074 = vunpack.c.0.s8 %v1073
    %v1075 = vlaneseq
    %v1076 = vshrl.u32 %v1075, 7
    %v1077 = vsub.s32 %v1074, %v1076
    %v1078 = vrot.slane %v1070, %v1077
    %v1080 = vunpack.c.l.s4 1983009808
    %v1081 = vunpack.c.0.s8 %v1080
    %v1082 = vlaneseq
    %v1083 = vshrl.u32 %v1082, 7
    %v1084 = vsub.s32 %v1081, %v1083
    %v1085 = vrot.slane %v1071, %v1084
    %v1086 = vcombine.low %v953, %v969
    %v1087 = vcombine.high %v953, %v969
    %v1089 = vunpack.c.l.s4 1983009808
    %v1090 = vunpack.c.0.s8 %v1089
    %v1091 = vlaneseq
    %v1092 = vshrl.u32 %v1091, 7
    %v1093 = vsub.s32 %v1090, %v1092
    %v1094 = vrot.slane %v1086, %v1093
    %v1096 = vunpack.c.l.s4 1983009808
    %v1097 = vunpack.c.0.s8 %v1096
    %v1098 = vlaneseq
    %v1099 = vshrl.u32 %v1098, 7
    %v1100 = vsub.s32 %v1097, %v1099
    %v1101 = vrot.slane %v1087, %v1100
    %v1102 = vcombine.low %v1046, %v1062
    %v1103 = vcombine.high %v1046, %v1062
    %v1105 = vunpack.c.l.s4 1934713408
    %v1106 = vunpack.c.0.s8 %v1105
    %v1107 = vlaneseq
    %v1108 = vshrl.u32 %v1107, 7
    %v1109 = vsub.s32 %v1106, %v1108
    %v1110 = vrot.slane %v1102, %v1109
    %v1112 = vunpack.c.l.s4 1934713408
    %v1113 = vunpack.c.0.s8 %v1112
    %v1114 = vlaneseq
    %v1115 = vshrl.u32 %v1114, 7
    %v1116 = vsub.s32 %v1113, %v1115
    %v1117 = vrot.slane %v1103, %v1116
    %v1118 = vcombine.low %v1053, %v1069
    %v1119 = vcombine.high %v1053, %v1069
    %v1121 = vunpack.c.l.s4 1934713408
    %v1122 = vunpack.c.0.s8 %v1121
    %v1123 = vlaneseq
    %v1124 = vshrl.u32 %v1123, 7
    %v1125 = vsub.s32 %v1122, %v1124
    %v1126 = vrot.slane %v1118, %v1125
    %v1128 = vunpack.c.l.s4 1934713408
    %v1129 = vunpack.c.0.s8 %v1128
    %v1130 = vlaneseq
    %v1131 = vshrl.u32 %v1130, 7
    %v1132 = vsub.s32 %v1129, %v1131
    %v1133 = vrot.slane %v1119, %v1132
    %v1134 = vcombine.low %v1078, %v1094
    %v1135 = vcombine.high %v1078, %v1094
    %v1137 = vunpack.c.l.s4 1934713408
    %v1138 = vunpack.c.0.s8 %v1137
    %v1139 = vlaneseq
    %v1140 = vshrl.u32 %v1139, 7
    %v1141 = vsub.s32 %v1138, %v1140
    %v1142 = vrot.slane %v1134, %v1141
    %v1144 = vunpack.c.l.s4 1934713408
    %v1145 = vunpack.c.0.s8 %v1144
    %v1146 = vlaneseq
    %v1147 = vshrl.u32 %v1146, 7
    %v1148 = vsub.s32 %v1145, %v1147
    %v1149 = vrot.slane %v1135, %v1148
    %v1150 = vcombine.low %v1085, %v1101
    %v1151 = vcombine.high %v1085, %v1101
    %v1153 = vunpack.c.l.s4 1934713408
    %v1154 = vunpack.c.0.s8 %v1153
    %v1155 = vlaneseq
    %v1156 = vshrl.u32 %v1155, 7
    %v1157 = vsub.s32 %v1154, %v1156
    %v1158 = vrot.slane %v1150, %v1157
    %v1160 = vunpack.c.l.s4 1934713408
    %v1161 = vunpack.c.0.s8 %v1160
    %v1162 = vlaneseq
    %v1163 = vshrl.u32 %v1162, 7
    %v1164 = vsub.s32 %v1161, %v1163
    %v1165 = vrot.slane %v1151, %v1164
    %v1166 = vcombine.low %v1110, %v1142
    %v1167 = vcombine.high %v1110, %v1142
    %v1168 = vcombine.low %v1117, %v1149
    %v1169 = vcombine.high %v1117, %v1149
    %v1170 = vcombine.low %v1126, %v1158
    %v1171 = vcombine.high %v1126, %v1158
    %v1172 = vcombine.low %v1133, %v1165
    %v1173 = vcombine.high %v1133, %v1165
    %v1174 = vcombine.low %v977, %v993
    %v1175 = vcombine.high %v977, %v993
    %v1177 = vunpack.c.l.s4 1983009808
    %v1178 = vunpack.c.0.s8 %v1177
    %v1179 = vlaneseq
    %v1180 = vshrl.u32 %v1179, 7
    %v1181 = vsub.s32 %v1178, %v1180
    %v1182 = vrot.slane %v1174, %v1181
    %v1184 = vunpack.c.l.s4 1983009808
    %v1185 = vunpack.c.0.s8 %v1184
    %v1186 = vlaneseq
    %v1187 = vshrl.u32 %v1186, 7
    %v1188 = vsub.s32 %v1185, %v1187
    %v1189 = vrot.slane %v1175, %v1188
    %v1190 = vcombine.low %v985, %v1001
    %v1191 = vcombine.high %v985, %v1001
    %v1193 = vunpack.c.l.s4 1983009808
    %v1194 = vunpack.c.0.s8 %v1193
    %v1195 = vlaneseq
    %v1196 = vshrl.u32 %v1195, 7
    %v1197 = vsub.s32 %v1194, %v1196
    %v1198 = vrot.slane %v1190, %v1197
    %v1200 = vunpack.c.l.s4 1983009808
    %v1201 = vunpack.c.0.s8 %v1200
    %v1202 = vlaneseq
    %v1203 = vshrl.u32 %v1202, 7
    %v1204 = vsub.s32 %v1201, %v1203
    %v1205 = vrot.slane %v1191, %v1204
    %v1206 = vcombine.low %v1009, %v1025
    %v1207 = vcombine.high %v1009, %v1025
    %v1209 = vunpack.c.l.s4 1983009808
    %v1210 = vunpack.c.0.s8 %v1209
    %v1211 = vlaneseq
    %v1212 = vshrl.u32 %v1211, 7
    %v1213 = vsub.s32 %v1210, %v1212
    %v1214 = vrot.slane %v1206, %v1213
    %v1216 = vunpack.c.l.s4 1983009808
    %v1217 = vunpack.c.0.s8 %v1216
    %v1218 = vlaneseq
    %v1219 = vshrl.u32 %v1218, 7
    %v1220 = vsub.s32 %v1217, %v1219
    %v1221 = vrot.slane %v1207, %v1220
    %v1222 = vcombine.low %v1017, %v1033
    %v1223 = vcombine.high %v1017, %v1033
    %v1225 = vunpack.c.l.s4 1983009808
    %v1226 = vunpack.c.0.s8 %v1225
    %v1227 = vlaneseq
    %v1228 = vshrl.u32 %v1227, 7
    %v1229 = vsub.s32 %v1226, %v1228
    %v1230 = vrot.slane %v1222, %v1229
    %v1232 = vunpack.c.l.s4 1983009808
    %v1233 = vunpack.c.0.s8 %v1232
    %v1234 = vlaneseq
    %v1235 = vshrl.u32 %v1234, 7
    %v1236 = vsub.s32 %v1233, %v1235
    %v1237 = vrot.slane %v1223, %v1236
    %v1238 = vcombine.low %v1182, %v1198
    %v1239 = vcombine.high %v1182, %v1198
    %v1241 = vunpack.c.l.s4 1934713408
    %v1242 = vunpack.c.0.s8 %v1241
    %v1243 = vlaneseq
    %v1244 = vshrl.u32 %v1243, 7
    %v1245 = vsub.s32 %v1242, %v1244
    %v1246 = vrot.slane %v1238, %v1245
    %v1248 = vunpack.c.l.s4 1934713408
    %v1249 = vunpack.c.0.s8 %v1248
    %v1250 = vlaneseq
    %v1251 = vshrl.u32 %v1250, 7
    %v1252 = vsub.s32 %v1249, %v1251
    %v1253 = vrot.slane %v1239, %v1252
    %v1254 = vcombine.low %v1189, %v1205
    %v1255 = vcombine.high %v1189, %v1205
    %v1257 = vunpack.c.l.s4 1934713408
    %v1258 = vunpack.c.0.s8 %v1257
    %v1259 = vlaneseq
    %v1260 = vshrl.u32 %v1259, 7
    %v1261 = vsub.s32 %v1258, %v1260
    %v1262 = vrot.slane %v1254, %v1261
    %v1264 = vunpack.c.l.s4 1934713408
    %v1265 = vunpack.c.0.s8 %v1264
    %v1266 = vlaneseq
    %v1267 = vshrl.u32 %v1266, 7
    %v1268 = vsub.s32 %v1265, %v1267
    %v1269 = vrot.slane %v1255, %v1268
    %v1270 = vcombine.low %v1214, %v1230
    %v1271 = vcombine.high %v1214, %v1230
    %v1273 = vunpack.c.l.s4 1934713408
    %v1274 = vunpack.c.0.s8 %v1273
    %v1275 = vlaneseq
    %v1276 = vshrl.u32 %v1275, 7
    %v1277 = vsub.s32 %v1274, %v1276
    %v1278 = vrot.slane %v1270, %v1277
    %v1280 = vunpack.c.l.s4 1934713408
    %v1281 = vunpack.c.0.s8 %v1280
    %v1282 = vlaneseq
    %v1283 = vshrl.u32 %v1282, 7
    %v1284 = vsub.s32 %v1281, %v1283
    %v1285 = vrot.slane %v1271, %v1284
    %v1286 = vcombine.low %v1221, %v1237
    %v1287 = vcombine.high %v1221, %v1237
    %v1289 = vunpack.c.l.s4 1934713408
    %v1290 = vunpack.c.0.s8 %v1289
    %v1291 = vlaneseq
    %v1292 = vshrl.u32 %v1291, 7
    %v1293 = vsub.s32 %v1290, %v1292
    %v1294 = vrot.slane %v1286, %v1293
    %v1296 = vunpack.c.l.s4 1934713408
    %v1297 = vunpack.c.0.s8 %v1296
    %v1298 = vlaneseq
    %v1299 = vshrl.u32 %v1298, 7
    %v1300 = vsub.s32 %v1297, %v1299
    %v1301 = vrot.slane %v1287, %v1300
    %v1302 = vcombine.low %v1246, %v1278
    %v1303 = vcombine.high %v1246, %v1278
    %v1304 = vcombine.low %v1253, %v1285
    %v1305 = vcombine.high %v1253, %v1285
    %v1306 = vcombine.low %v1262, %v1294
    %v1307 = vcombine.high %v1262, %v1294
    %v1308 = vcombine.low %v1269, %v1301
    %v1309 = vcombine.high %v1269, %v1301
    %v1310 = vcombine.low %v917, %v933
    %v1311 = vcombine.high %v917, %v933
    %v1313 = vunpack.c.l.s4 1983009808
    %v1314 = vunpack.c.0.s8 %v1313
    %v1315 = vlaneseq
    %v1316 = vshrl.u32 %v1315, 7
    %v1317 = vsub.s32 %v1314, %v1316
    %v1318 = vrot.slane %v1310, %v1317
    %v1320 = vunpack.c.l.s4 1983009808
    %v1321 = vunpack.c.0.s8 %v1320
    %v1322 = vlaneseq
    %v1323 = vshrl.u32 %v1322, 7
    %v1324 = vsub.s32 %v1321, %v1323
    %v1325 = vrot.slane %v1311, %v1324
    %v1326 = vcombine.low %v925, %v941
    %v1327 = vcombine.high %v925, %v941
    %v1329 = vunpack.c.l.s4 1983009808
    %v1330 = vunpack.c.0.s8 %v1329
    %v1331 = vlaneseq
    %v1332 = vshrl.u32 %v1331, 7
    %v1333 = vsub.s32 %v1330, %v1332
    %v1334 = vrot.slane %v1326, %v1333
    %v1336 = vunpack.c.l.s4 1983009808
    %v1337 = vunpack.c.0.s8 %v1336
    %v1338 = vlaneseq
    %v1339 = vshrl.u32 %v1338, 7
    %v1340 = vsub.s32 %v1337, %v1339
    %v1341 = vrot.slane %v1327, %v1340
    %v1342 = vcombine.low %v949, %v965
    %v1343 = vcombine.high %v949, %v965
    %v1345 = vunpack.c.l.s4 1983009808
    %v1346 = vunpack.c.0.s8 %v1345
    %v1347 = vlaneseq
    %v1348 = vshrl.u32 %v1347, 7
    %v1349 = vsub.s32 %v1346, %v1348
    %v1350 = vrot.slane %v1342, %v1349
    %v1352 = vunpack.c.l.s4 1983009808
    %v1353 = vunpack.c.0.s8 %v1352
    %v1354 = vlaneseq
    %v1355 = vshrl.u32 %v1354, 7
    %v1356 = vsub.s32 %v1353, %v1355
    %v1357 = vrot.slane %v1343, %v1356
    %v1358 = vcombine.low %v957, %v973
    %v1359 = vcombine.high %v957, %v973
    %v1361 = vunpack.c.l.s4 1983009808
    %v1362 = vunpack.c.0.s8 %v1361
    %v1363 = vlaneseq
    %v1364 = vshrl.u32 %v1363, 7
    %v1365 = vsub.s32 %v1362, %v1364
    %v1366 = vrot.slane %v1358, %v1365
    %v1368 = vunpack.c.l.s4 1983009808
    %v1369 = vunpack.c.0.s8 %v1368
    %v1370 = vlaneseq
    %v1371 = vshrl.u32 %v1370, 7
    %v1372 = vsub.s32 %v1369, %v1371
    %v1373 = vrot.slane %v1359, %v1372
    %v1374 = vcombine.low %v1318, %v1334
    %v1375 = vcombine.high %v1318, %v1334
    %v1377 = vunpack.c.l.s4 1934713408
    %v1378 = vunpack.c.0.s8 %v1377
    %v1379 = vlaneseq
    %v1380 = vshrl.u32 %v1379, 7
    %v1381 = vsub.s32 %v1378, %v1380
    %v1382 = vrot.slane %v1374, %v1381
    %v1384 = vunpack.c.l.s4 1934713408
    %v1385 = vunpack.c.0.s8 %v1384
    %v1386 = vlaneseq
    %v1387 = vshrl.u32 %v1386, 7
    %v1388 = vsub.s32 %v1385, %v1387
    %v1389 = vrot.slane %v1375, %v1388
    %v1390 = vcombine.low %v1325, %v1341
    %v1391 = vcombine.high %v1325, %v1341
    %v1393 = vunpack.c.l.s4 1934713408
    %v1394 = vunpack.c.0.s8 %v1393
    %v1395 = vlaneseq
    %v1396 = vshrl.u32 %v1395, 7
    %v1397 = vsub.s32 %v1394, %v1396
    %v1398 = vrot.slane %v1390, %v1397
    %v1400 = vunpack.c.l.s4 1934713408
    %v1401 = vunpack.c.0.s8 %v1400
    %v1402 = vlaneseq
    %v1403 = vshrl.u32 %v1402, 7
    %v1404 = vsub.s32 %v1401, %v1403
    %v1405 = vrot.slane %v1391, %v1404
    %v1406 = vcombine.low %v1350, %v1366
    %v1407 = vcombine.high %v1350, %v1366
    %v1409 = vunpack.c.l.s4 1934713408
    %v1410 = vunpack.c.0.s8 %v1409
    %v1411 = vlaneseq
    %v1412 = vshrl.u32 %v1411, 7
    %v1413 = vsub.s32 %v1410, %v1412
    %v1414 = vrot.slane %v1406, %v1413
    %v1416 = vunpack.c.l.s4 1934713408
    %v1417 = vunpack.c.0.s8 %v1416
    %v1418 = vlaneseq
    %v1419 = vshrl.u32 %v1418, 7
    %v1420 = vsub.s32 %v1417, %v1419
    %v1421 = vrot.slane %v1407, %v1420
    %v1422 = vcombine.low %v1357, %v1373
    %v1423 = vcombine.high %v1357, %v1373
    %v1425 = vunpack.c.l.s4 1934713408
    %v1426 = vunpack.c.0.s8 %v1425
    %v1427 = vlaneseq
    %v1428 = vshrl.u32 %v1427, 7
    %v1429 = vsub.s32 %v1426, %v1428
    %v1430 = vrot.slane %v1422, %v1429
    %v1432 = vunpack.c.l.s4 1934713408
    %v1433 = vunpack.c.0.s8 %v1432
    %v1434 = vlaneseq
    %v1435 = vshrl.u32 %v1434, 7
    %v1436 = vsub.s32 %v1433, %v1435
    %v1437 = vrot.slane %v1423, %v1436
    %v1438 = vcombine.low %v1382, %v1414
    %v1439 = vcombine.high %v1382, %v1414
    %v1440 = vcombine.low %v1389, %v1421
    %v1441 = vcombine.high %v1389, %v1421
    %v1442 = vcombine.low %v1398, %v1430
    %v1443 = vcombine.high %v1398, %v1430
    %v1444 = vcombine.low %v1405, %v1437
    %v1445 = vcombine.high %v1405, %v1437
    %v1446 = vcombine.low %v981, %v997
    %v1447 = vcombine.high %v981, %v997
    %v1449 = vunpack.c.l.s4 1983009808
    %v1450 = vunpack.c.0.s8 %v1449
    %v1451 = vlaneseq
    %v1452 = vshrl.u32 %v1451, 7
    %v1453 = vsub.s32 %v1450, %v1452
    %v1454 = vrot.slane %v1446, %v1453
    %v1456 = vunpack.c.l.s4 1983009808
    %v1457 = vunpack.c.0.s8 %v1456
    %v1458 = vlaneseq
    %v1459 = vshrl.u32 %v1458, 7
    %v1460 = vsub.s32 %v1457, %v1459
    %v1461 = vrot.slane %v1447, %v1460
    %v1462 = vcombine.low %v989, %v1005
    %v1463 = vcombine.high %v989, %v1005
    %v1465 = vunpack.c.l.s4 1983009808
    %v1466 = vunpack.c.0.s8 %v1465
    %v1467 = vlaneseq
    %v1468 = vshrl.u32 %v1467, 7
    %v1469 = vsub.s32 %v1466, %v1468
    %v1470 = vrot.slane %v1462, %v1469
    %v1472 = vunpack.c.l.s4 1983009808
    %v1473 = vunpack.c.0.s8 %v1472
    %v1474 = vlaneseq
    %v1475 = vshrl.u32 %v1474, 7
    %v1476 = vsub.s32 %v1473, %v1475
    %v1477 = vrot.slane %v1463, %v1476
    %v1478 = vcombine.low %v1013, %v1029
    %v1479 = vcombine.high %v1013, %v1029
    %v1481 = vunpack.c.l.s4 1983009808
    %v1482 = vunpack.c.0.s8 %v1481
    %v1483 = vlaneseq
    %v1484 = vshrl.u32 %v1483, 7
    %v1485 = vsub.s32 %v1482, %v1484
    %v1486 = vrot.slane %v1478, %v1485
    %v1488 = vunpack.c.l.s4 1983009808
    %v1489 = vunpack.c.0.s8 %v1488
    %v1490 = vlaneseq
    %v1491 = vshrl.u32 %v1490, 7
    %v1492 = vsub.s32 %v1489, %v1491
    %v1493 = vrot.slane %v1479, %v1492
    %v1494 = vcombine.low %v1021, %v1037
    %v1495 = vcombine.high %v1021, %v1037
    %v1497 = vunpack.c.l.s4 1983009808
    %v1498 = vunpack.c.0.s8 %v1497
    %v1499 = vlaneseq
    %v1500 = vshrl.u32 %v1499, 7
    %v1501 = vsub.s32 %v1498, %v1500
    %v1502 = vrot.slane %v1494, %v1501
    %v1504 = vunpack.c.l.s4 1983009808
    %v1505 = vunpack.c.0.s8 %v1504
    %v1506 = vlaneseq
    %v1507 = vshrl.u32 %v1506, 7
    %v1508 = vsub.s32 %v1505, %v1507
    %v1509 = vrot.slane %v1495, %v1508
    %v1510 = vcombine.low %v1454, %v1470
    %v1511 = vcombine.high %v1454, %v1470
    %v1513 = vunpack.c.l.s4 1934713408
    %v1514 = vunpack.c.0.s8 %v1513
    %v1515 = vlaneseq
    %v1516 = vshrl.u32 %v1515, 7
    %v1517 = vsub.s32 %v1514, %v1516
    %v1518 = vrot.slane %v1510, %v1517
    %v1520 = vunpack.c.l.s4 1934713408
    %v1521 = vunpack.c.0.s8 %v1520
    %v1522 = vlaneseq
    %v1523 = vshrl.u32 %v1522, 7
    %v1524 = vsub.s32 %v1521, %v1523
    %v1525 = vrot.slane %v1511, %v1524
    %v1526 = vcombine.low %v1461, %v1477
    %v1527 = vcombine.high %v1461, %v1477
    %v1529 = vunpack.c.l.s4 1934713408
    %v1530 = vunpack.c.0.s8 %v1529
    %v1531 = vlaneseq
    %v1532 = vshrl.u32 %v1531, 7
    %v1533 = vsub.s32 %v1530, %v1532
    %v1534 = vrot.slane %v1526, %v1533
    %v1536 = vunpack.c.l.s4 1934713408
    %v1537 = vunpack.c.0.s8 %v1536
    %v1538 = vlaneseq
    %v1539 = vshrl.u32 %v1538, 7
    %v1540 = vsub.s32 %v1537, %v1539
    %v1541 = vrot.slane %v1527, %v1540
    %v1542 = vcombine.low %v1486, %v1502
    %v1543 = vcombine.high %v1486, %v1502
    %v1545 = vunpack.c.l.s4 1934713408
    %v1546 = vunpack.c.0.s8 %v1545
    %v1547 = vlaneseq
    %v1548 = vshrl.u32 %v1547, 7
    %v1549 = vsub.s32 %v1546, %v1548
    %v1550 = vrot.slane %v1542, %v1549
    %v1552 = vunpack.c.l.s4 1934713408
    %v1553 = vunpack.c.0.s8 %v1552
    %v1554 = vlaneseq
    %v1555 = vshrl.u32 %v1554, 7
    %v1556 = vsub.s32 %v1553, %v1555
    %v1557 = vrot.slane %v1543, %v1556
    %v1558 = vcombine.low %v1493, %v1509
    %v1559 = vcombine.high %v1493, %v1509
    %v1561 = vunpack.c.l.s4 1934713408
    %v1562 = vunpack.c.0.s8 %v1561
    %v1563 = vlaneseq
    %v1564 = vshrl.u32 %v1563, 7
    %v1565 = vsub.s32 %v1562, %v1564
    %v1566 = vrot.slane %v1558, %v1565
    %v1568 = vunpack.c.l.s4 1934713408
    %v1569 = vunpack.c.0.s8 %v1568
    %v1570 = vlaneseq
    %v1571 = vshrl.u32 %v1570, 7
    %v1572 = vsub.s32 %v1569, %v1571
    %v1573 = vrot.slane %v1559, %v1572
    %v1574 = vcombine.low %v1518, %v1550
    %v1575 = vcombine.high %v1518, %v1550
    %v1576 = vcombine.low %v1525, %v1557
    %v1577 = vcombine.high %v1525, %v1557
    %v1578 = vcombine.low %v1534, %v1566
    %v1579 = vcombine.high %v1534, %v1566
    %v1580 = vcombine.low %v1541, %v1573
    %v1581 = vcombine.high %v1541, %v1573
    %1584 = vrot.lane.b32.xlu0 %v1167, 2
    %v1585 = vpop.permute.xlu0 %1584
    %1586 = vrot.lane.b32.xlu0 %v1303, 2
    %v1587 = vpop.permute.xlu0 %1586
    %1592 = vrot.lane.b32.xlu0 %v1168, 4
    %v1593 = vpop.permute.xlu0 %1592
    %1594 = vrot.lane.b32.xlu0 %v1304, 4
    %v1595 = vpop.permute.xlu0 %1594
    %1600 = vrot.lane.b32.xlu0 %v1169, 6
    %v1601 = vpop.permute.xlu0 %1600
    %1602 = vrot.lane.b32.xlu0 %v1305, 6
    %v1603 = vpop.permute.xlu0 %1602
    %1608 = vrot.lane.b32.xlu0 %v1170, 8
    %v1609 = vpop.permute.xlu0 %1608
    %1610 = vrot.lane.b32.xlu0 %v1306, 8
    %v1611 = vpop.permute.xlu0 %1610
    %1616 = vrot.lane.b32.xlu0 %v1171, 10
    %v1617 = vpop.permute.xlu0 %1616
    %1618 = vrot.lane.b32.xlu0 %v1307, 10
    %v1619 = vpop.permute.xlu0 %1618
    %1624 = vrot.lane.b32.xlu0 %v1172, 12
    %v1625 = vpop.permute.xlu0 %1624
    %1626 = vrot.lane.b32.xlu0 %v1308, 12
    %v1627 = vpop.permute.xlu0 %1626
    %1632 = vrot.lane.b32.xlu0 %v1173, 14
    %v1633 = vpop.permute.xlu0 %1632
    %1634 = vrot.lane.b32.xlu0 %v1309, 14
    %v1635 = vpop.permute.xlu0 %1634
    %1640 = vrot.lane.b32.xlu0 %v1438, 16
    %v1641 = vpop.permute.xlu0 %1640
    %1642 = vrot.lane.b32.xlu0 %v1574, 16
    %v1643 = vpop.permute.xlu0 %1642
    %1648 = vrot.lane.b32.xlu0 %v1439, 18
    %v1649 = vpop.permute.xlu0 %1648
    %1650 = vrot.lane.b32.xlu0 %v1575, 18
    %v1651 = vpop.permute.xlu0 %1650
    %1656 = vrot.lane.b32.xlu0 %v1440, 20
    %v1657 = vpop.permute.xlu0 %1656
    %1658 = vrot.lane.b32.xlu0 %v1576, 20
    %v1659 = vpop.permute.xlu0 %1658
    %1664 = vrot.lane.b32.xlu0 %v1441, 22
    %v1665 = vpop.permute.xlu0 %1664
    %1666 = vrot.lane.b32.xlu0 %v1577, 22
    %v1667 = vpop.permute.xlu0 %1666
    %1672 = vrot.lane.b32.xlu0 %v1442, 24
    %v1673 = vpop.permute.xlu0 %1672
    %1674 = vrot.lane.b32.xlu0 %v1578, 24
    %v1675 = vpop.permute.xlu0 %1674
    %1680 = vrot.lane.b32.xlu0 %v1443, 26
    %v1681 = vpop.permute.xlu0 %1680
    %1682 = vrot.lane.b32.xlu0 %v1579, 26
    %v1683 = vpop.permute.xlu0 %1682
    %1688 = vrot.lane.b32.xlu0 %v1444, 28
    %v1689 = vpop.permute.xlu0 %1688
    %1690 = vrot.lane.b32.xlu0 %v1580, 28
    %v1691 = vpop.permute.xlu0 %1690
    %1696 = vrot.lane.b32.xlu0 %v1445, 30
    %v1697 = vpop.permute.xlu0 %1696
    %1698 = vrot.lane.b32.xlu0 %v1581, 30
    %v1699 = vpop.permute.xlu0 %1698
    %v1702 = vsel %vm865, %v1166, %v1585
    %v1703 = vsel %vm865, %v1302, %v1587
    %v1704 = vsel %vm868, %v1702, %v1593
    %v1705 = vsel %vm868, %v1703, %v1595
    %v1706 = vsel %vm871, %v1704, %v1601
    %v1707 = vsel %vm871, %v1705, %v1603
    %v1708 = vsel %vm874, %v1706, %v1609
    %v1709 = vsel %vm874, %v1707, %v1611
    %v1710 = vsel %vm877, %v1708, %v1617
    %v1711 = vsel %vm877, %v1709, %v1619
    %v1712 = vsel %vm880, %v1710, %v1625
    %v1713 = vsel %vm880, %v1711, %v1627
    %v1714 = vsel %vm883, %v1712, %v1633
    %v1715 = vsel %vm883, %v1713, %v1635
    %v1716 = vsel %vm886, %v1714, %v1641
    %v1717 = vsel %vm886, %v1715, %v1643
    %v1718 = vsel %vm889, %v1716, %v1649
    %v1719 = vsel %vm889, %v1717, %v1651
    %v1720 = vsel %vm892, %v1718, %v1657
    %v1721 = vsel %vm892, %v1719, %v1659
    %v1722 = vsel %vm895, %v1720, %v1665
    %v1723 = vsel %vm895, %v1721, %v1667
    %v1724 = vsel %vm898, %v1722, %v1673
    %v1725 = vsel %vm898, %v1723, %v1675
    %v1726 = vsel %vm901, %v1724, %v1681
    %v1727 = vsel %vm901, %v1725, %v1683
    %v1728 = vsel %vm904, %v1726, %v1689
    %v1729 = vsel %vm904, %v1727, %v1691
    %v1730 = vsel %vm907, %v1728, %v1697
    %v1731 = vsel %vm907, %v1729, %v1699
    %s1733 = sor.u32 256, 32
    %1734 = vbcast.lane.b32.xlu0 %v28, %s1733
    %v1735 = vpop.permute.xlu0 %1734
    %s1737 = sor.u32 256, 40
    %1738 = vbcast.lane.b32.xlu0 %v28, %s1737
    %v1739 = vpop.permute.xlu0 %1738
    %s1741 = sor.u32 256, 32
    %1742 = vbcast.lane.b32.xlu0 %v39, %s1741
    %v1743 = vpop.permute.xlu0 %1742
    %s1745 = sor.u32 256, 40
    %1746 = vbcast.lane.b32.xlu0 %v39, %s1745
    %v1747 = vpop.permute.xlu0 %1746
    %s1749 = sor.u32 256, 32
    %1750 = vbcast.lane.b32.xlu0 %v50, %s1749
    %v1751 = vpop.permute.xlu0 %1750
    %s1753 = sor.u32 256, 40
    %1754 = vbcast.lane.b32.xlu0 %v50, %s1753
    %v1755 = vpop.permute.xlu0 %1754
    %s1757 = sor.u32 256, 32
    %1758 = vbcast.lane.b32.xlu0 %v61, %s1757
    %v1759 = vpop.permute.xlu0 %1758
    %s1761 = sor.u32 256, 40
    %1762 = vbcast.lane.b32.xlu0 %v61, %s1761
    %v1763 = vpop.permute.xlu0 %1762
    %s1765 = sor.u32 256, 32
    %1766 = vbcast.lane.b32.xlu0 %v72, %s1765
    %v1767 = vpop.permute.xlu0 %1766
    %s1769 = sor.u32 256, 40
    %1770 = vbcast.lane.b32.xlu0 %v72, %s1769
    %v1771 = vpop.permute.xlu0 %1770
    %s1773 = sor.u32 256, 32
    %1774 = vbcast.lane.b32.xlu0 %v83, %s1773
    %v1775 = vpop.permute.xlu0 %1774
    %s1777 = sor.u32 256, 40
    %1778 = vbcast.lane.b32.xlu0 %v83, %s1777
    %v1779 = vpop.permute.xlu0 %1778
    %s1781 = sor.u32 256, 32
    %1782 = vbcast.lane.b32.xlu0 %v94, %s1781
    %v1783 = vpop.permute.xlu0 %1782
    %s1785 = sor.u32 256, 40
    %1786 = vbcast.lane.b32.xlu0 %v94, %s1785
    %v1787 = vpop.permute.xlu0 %1786
    %s1789 = sor.u32 256, 32
    %1790 = vbcast.lane.b32.xlu0 %v105, %s1789
    %v1791 = vpop.permute.xlu0 %1790
    %s1793 = sor.u32 256, 40
    %1794 = vbcast.lane.b32.xlu0 %v105, %s1793
    %v1795 = vpop.permute.xlu0 %1794
    %s1797 = sor.u32 256, 32
    %1798 = vbcast.lane.b32.xlu0 %v116, %s1797
    %v1799 = vpop.permute.xlu0 %1798
    %s1801 = sor.u32 256, 40
    %1802 = vbcast.lane.b32.xlu0 %v116, %s1801
    %v1803 = vpop.permute.xlu0 %1802
    %s1805 = sor.u32 256, 32
    %1806 = vbcast.lane.b32.xlu0 %v127, %s1805
    %v1807 = vpop.permute.xlu0 %1806
    %s1809 = sor.u32 256, 40
    %1810 = vbcast.lane.b32.xlu0 %v127, %s1809
    %v1811 = vpop.permute.xlu0 %1810
    %s1813 = sor.u32 256, 32
    %1814 = vbcast.lane.b32.xlu0 %v138, %s1813
    %v1815 = vpop.permute.xlu0 %1814
    %s1817 = sor.u32 256, 40
    %1818 = vbcast.lane.b32.xlu0 %v138, %s1817
    %v1819 = vpop.permute.xlu0 %1818
    %s1821 = sor.u32 256, 32
    %1822 = vbcast.lane.b32.xlu0 %v149, %s1821
    %v1823 = vpop.permute.xlu0 %1822
    %s1825 = sor.u32 256, 40
    %1826 = vbcast.lane.b32.xlu0 %v149, %s1825
    %v1827 = vpop.permute.xlu0 %1826
    %s1829 = sor.u32 256, 32
    %1830 = vbcast.lane.b32.xlu0 %v160, %s1829
    %v1831 = vpop.permute.xlu0 %1830
    %s1833 = sor.u32 256, 40
    %1834 = vbcast.lane.b32.xlu0 %v160, %s1833
    %v1835 = vpop.permute.xlu0 %1834
    %s1837 = sor.u32 256, 32
    %1838 = vbcast.lane.b32.xlu0 %v171, %s1837
    %v1839 = vpop.permute.xlu0 %1838
    %s1841 = sor.u32 256, 40
    %1842 = vbcast.lane.b32.xlu0 %v171, %s1841
    %v1843 = vpop.permute.xlu0 %1842
    %s1845 = sor.u32 256, 32
    %1846 = vbcast.lane.b32.xlu0 %v182, %s1845
    %v1847 = vpop.permute.xlu0 %1846
    %s1849 = sor.u32 256, 40
    %1850 = vbcast.lane.b32.xlu0 %v182, %s1849
    %v1851 = vpop.permute.xlu0 %1850
    %s1853 = sor.u32 256, 32
    %1854 = vbcast.lane.b32.xlu0 %v193, %s1853
    %v1855 = vpop.permute.xlu0 %1854
    %s1857 = sor.u32 256, 40
    %1858 = vbcast.lane.b32.xlu0 %v193, %s1857
    %v1859 = vpop.permute.xlu0 %1858
    %v1860 = vcombine.low %v1735, %v1751
    %v1861 = vcombine.high %v1735, %v1751
    %v1863 = vunpack.c.l.s4 1983009808
    %v1864 = vunpack.c.0.s8 %v1863
    %v1865 = vlaneseq
    %v1866 = vshrl.u32 %v1865, 7
    %v1867 = vsub.s32 %v1864, %v1866
    %v1868 = vrot.slane %v1860, %v1867
    %v1870 = vunpack.c.l.s4 1983009808
    %v1871 = vunpack.c.0.s8 %v1870
    %v1872 = vlaneseq
    %v1873 = vshrl.u32 %v1872, 7
    %v1874 = vsub.s32 %v1871, %v1873
    %v1875 = vrot.slane %v1861, %v1874
    %v1876 = vcombine.low %v1743, %v1759
    %v1877 = vcombine.high %v1743, %v1759
    %v1879 = vunpack.c.l.s4 1983009808
    %v1880 = vunpack.c.0.s8 %v1879
    %v1881 = vlaneseq
    %v1882 = vshrl.u32 %v1881, 7
    %v1883 = vsub.s32 %v1880, %v1882
    %v1884 = vrot.slane %v1876, %v1883
    %v1886 = vunpack.c.l.s4 1983009808
    %v1887 = vunpack.c.0.s8 %v1886
    %v1888 = vlaneseq
    %v1889 = vshrl.u32 %v1888, 7
    %v1890 = vsub.s32 %v1887, %v1889
    %v1891 = vrot.slane %v1877, %v1890
    %v1892 = vcombine.low %v1767, %v1783
    %v1893 = vcombine.high %v1767, %v1783
    %v1895 = vunpack.c.l.s4 1983009808
    %v1896 = vunpack.c.0.s8 %v1895
    %v1897 = vlaneseq
    %v1898 = vshrl.u32 %v1897, 7
    %v1899 = vsub.s32 %v1896, %v1898
    %v1900 = vrot.slane %v1892, %v1899
    %v1902 = vunpack.c.l.s4 1983009808
    %v1903 = vunpack.c.0.s8 %v1902
    %v1904 = vlaneseq
    %v1905 = vshrl.u32 %v1904, 7
    %v1906 = vsub.s32 %v1903, %v1905
    %v1907 = vrot.slane %v1893, %v1906
    %v1908 = vcombine.low %v1775, %v1791
    %v1909 = vcombine.high %v1775, %v1791
    %v1911 = vunpack.c.l.s4 1983009808
    %v1912 = vunpack.c.0.s8 %v1911
    %v1913 = vlaneseq
    %v1914 = vshrl.u32 %v1913, 7
    %v1915 = vsub.s32 %v1912, %v1914
    %v1916 = vrot.slane %v1908, %v1915
    %v1918 = vunpack.c.l.s4 1983009808
    %v1919 = vunpack.c.0.s8 %v1918
    %v1920 = vlaneseq
    %v1921 = vshrl.u32 %v1920, 7
    %v1922 = vsub.s32 %v1919, %v1921
    %v1923 = vrot.slane %v1909, %v1922
    %v1924 = vcombine.low %v1868, %v1884
    %v1925 = vcombine.high %v1868, %v1884
    %v1927 = vunpack.c.l.s4 1934713408
    %v1928 = vunpack.c.0.s8 %v1927
    %v1929 = vlaneseq
    %v1930 = vshrl.u32 %v1929, 7
    %v1931 = vsub.s32 %v1928, %v1930
    %v1932 = vrot.slane %v1924, %v1931
    %v1934 = vunpack.c.l.s4 1934713408
    %v1935 = vunpack.c.0.s8 %v1934
    %v1936 = vlaneseq
    %v1937 = vshrl.u32 %v1936, 7
    %v1938 = vsub.s32 %v1935, %v1937
    %v1939 = vrot.slane %v1925, %v1938
    %v1940 = vcombine.low %v1875, %v1891
    %v1941 = vcombine.high %v1875, %v1891
    %v1943 = vunpack.c.l.s4 1934713408
    %v1944 = vunpack.c.0.s8 %v1943
    %v1945 = vlaneseq
    %v1946 = vshrl.u32 %v1945, 7
    %v1947 = vsub.s32 %v1944, %v1946
    %v1948 = vrot.slane %v1940, %v1947
    %v1950 = vunpack.c.l.s4 1934713408
    %v1951 = vunpack.c.0.s8 %v1950
    %v1952 = vlaneseq
    %v1953 = vshrl.u32 %v1952, 7
    %v1954 = vsub.s32 %v1951, %v1953
    %v1955 = vrot.slane %v1941, %v1954
    %v1956 = vcombine.low %v1900, %v1916
    %v1957 = vcombine.high %v1900, %v1916
    %v1959 = vunpack.c.l.s4 1934713408
    %v1960 = vunpack.c.0.s8 %v1959
    %v1961 = vlaneseq
    %v1962 = vshrl.u32 %v1961, 7
    %v1963 = vsub.s32 %v1960, %v1962
    %v1964 = vrot.slane %v1956, %v1963
    %v1966 = vunpack.c.l.s4 1934713408
    %v1967 = vunpack.c.0.s8 %v1966
    %v1968 = vlaneseq
    %v1969 = vshrl.u32 %v1968, 7
    %v1970 = vsub.s32 %v1967, %v1969
    %v1971 = vrot.slane %v1957, %v1970
    %v1972 = vcombine.low %v1907, %v1923
    %v1973 = vcombine.high %v1907, %v1923
    %v1975 = vunpack.c.l.s4 1934713408
    %v1976 = vunpack.c.0.s8 %v1975
    %v1977 = vlaneseq
    %v1978 = vshrl.u32 %v1977, 7
    %v1979 = vsub.s32 %v1976, %v1978
    %v1980 = vrot.slane %v1972, %v1979
    %v1982 = vunpack.c.l.s4 1934713408
    %v1983 = vunpack.c.0.s8 %v1982
    %v1984 = vlaneseq
    %v1985 = vshrl.u32 %v1984, 7
    %v1986 = vsub.s32 %v1983, %v1985
    %v1987 = vrot.slane %v1973, %v1986
    %v1988 = vcombine.low %v1932, %v1964
    %v1989 = vcombine.high %v1932, %v1964
    %v1990 = vcombine.low %v1939, %v1971
    %v1991 = vcombine.high %v1939, %v1971
    %v1992 = vcombine.low %v1948, %v1980
    %v1993 = vcombine.high %v1948, %v1980
    %v1994 = vcombine.low %v1955, %v1987
    %v1995 = vcombine.high %v1955, %v1987
    %v1996 = vcombine.low %v1799, %v1815
    %v1997 = vcombine.high %v1799, %v1815
    %v1999 = vunpack.c.l.s4 1983009808
    %v2000 = vunpack.c.0.s8 %v1999
    %v2001 = vlaneseq
    %v2002 = vshrl.u32 %v2001, 7
    %v2003 = vsub.s32 %v2000, %v2002
    %v2004 = vrot.slane %v1996, %v2003
    %v2006 = vunpack.c.l.s4 1983009808
    %v2007 = vunpack.c.0.s8 %v2006
    %v2008 = vlaneseq
    %v2009 = vshrl.u32 %v2008, 7
    %v2010 = vsub.s32 %v2007, %v2009
    %v2011 = vrot.slane %v1997, %v2010
    %v2012 = vcombine.low %v1807, %v1823
    %v2013 = vcombine.high %v1807, %v1823
    %v2015 = vunpack.c.l.s4 1983009808
    %v2016 = vunpack.c.0.s8 %v2015
    %v2017 = vlaneseq
    %v2018 = vshrl.u32 %v2017, 7
    %v2019 = vsub.s32 %v2016, %v2018
    %v2020 = vrot.slane %v2012, %v2019
    %v2022 = vunpack.c.l.s4 1983009808
    %v2023 = vunpack.c.0.s8 %v2022
    %v2024 = vlaneseq
    %v2025 = vshrl.u32 %v2024, 7
    %v2026 = vsub.s32 %v2023, %v2025
    %v2027 = vrot.slane %v2013, %v2026
    %v2028 = vcombine.low %v1831, %v1847
    %v2029 = vcombine.high %v1831, %v1847
    %v2031 = vunpack.c.l.s4 1983009808
    %v2032 = vunpack.c.0.s8 %v2031
    %v2033 = vlaneseq
    %v2034 = vshrl.u32 %v2033, 7
    %v2035 = vsub.s32 %v2032, %v2034
    %v2036 = vrot.slane %v2028, %v2035
    %v2038 = vunpack.c.l.s4 1983009808
    %v2039 = vunpack.c.0.s8 %v2038
    %v2040 = vlaneseq
    %v2041 = vshrl.u32 %v2040, 7
    %v2042 = vsub.s32 %v2039, %v2041
    %v2043 = vrot.slane %v2029, %v2042
    %v2044 = vcombine.low %v1839, %v1855
    %v2045 = vcombine.high %v1839, %v1855
    %v2047 = vunpack.c.l.s4 1983009808
    %v2048 = vunpack.c.0.s8 %v2047
    %v2049 = vlaneseq
    %v2050 = vshrl.u32 %v2049, 7
    %v2051 = vsub.s32 %v2048, %v2050
    %v2052 = vrot.slane %v2044, %v2051
    %v2054 = vunpack.c.l.s4 1983009808
    %v2055 = vunpack.c.0.s8 %v2054
    %v2056 = vlaneseq
    %v2057 = vshrl.u32 %v2056, 7
    %v2058 = vsub.s32 %v2055, %v2057
    %v2059 = vrot.slane %v2045, %v2058
    %v2060 = vcombine.low %v2004, %v2020
    %v2061 = vcombine.high %v2004, %v2020
    %v2063 = vunpack.c.l.s4 1934713408
    %v2064 = vunpack.c.0.s8 %v2063
    %v2065 = vlaneseq
    %v2066 = vshrl.u32 %v2065, 7
    %v2067 = vsub.s32 %v2064, %v2066
    %v2068 = vrot.slane %v2060, %v2067
    %v2070 = vunpack.c.l.s4 1934713408
    %v2071 = vunpack.c.0.s8 %v2070
    %v2072 = vlaneseq
    %v2073 = vshrl.u32 %v2072, 7
    %v2074 = vsub.s32 %v2071, %v2073
    %v2075 = vrot.slane %v2061, %v2074
    %v2076 = vcombine.low %v2011, %v2027
    %v2077 = vcombine.high %v2011, %v2027
    %v2079 = vunpack.c.l.s4 1934713408
    %v2080 = vunpack.c.0.s8 %v2079
    %v2081 = vlaneseq
    %v2082 = vshrl.u32 %v2081, 7
    %v2083 = vsub.s32 %v2080, %v2082
    %v2084 = vrot.slane %v2076, %v2083
    %v2086 = vunpack.c.l.s4 1934713408
    %v2087 = vunpack.c.0.s8 %v2086
    %v2088 = vlaneseq
    %v2089 = vshrl.u32 %v2088, 7
    %v2090 = vsub.s32 %v2087, %v2089
    %v2091 = vrot.slane %v2077, %v2090
    %v2092 = vcombine.low %v2036, %v2052
    %v2093 = vcombine.high %v2036, %v2052
    %v2095 = vunpack.c.l.s4 1934713408
    %v2096 = vunpack.c.0.s8 %v2095
    %v2097 = vlaneseq
    %v2098 = vshrl.u32 %v2097, 7
    %v2099 = vsub.s32 %v2096, %v2098
    %v2100 = vrot.slane %v2092, %v2099
    %v2102 = vunpack.c.l.s4 1934713408
    %v2103 = vunpack.c.0.s8 %v2102
    %v2104 = vlaneseq
    %v2105 = vshrl.u32 %v2104, 7
    %v2106 = vsub.s32 %v2103, %v2105
    %v2107 = vrot.slane %v2093, %v2106
    %v2108 = vcombine.low %v2043, %v2059
    %v2109 = vcombine.high %v2043, %v2059
    %v2111 = vunpack.c.l.s4 1934713408
    %v2112 = vunpack.c.0.s8 %v2111
    %v2113 = vlaneseq
    %v2114 = vshrl.u32 %v2113, 7
    %v2115 = vsub.s32 %v2112, %v2114
    %v2116 = vrot.slane %v2108, %v2115
    %v2118 = vunpack.c.l.s4 1934713408
    %v2119 = vunpack.c.0.s8 %v2118
    %v2120 = vlaneseq
    %v2121 = vshrl.u32 %v2120, 7
    %v2122 = vsub.s32 %v2119, %v2121
    %v2123 = vrot.slane %v2109, %v2122
    %v2124 = vcombine.low %v2068, %v2100
    %v2125 = vcombine.high %v2068, %v2100
    %v2126 = vcombine.low %v2075, %v2107
    %v2127 = vcombine.high %v2075, %v2107
    %v2128 = vcombine.low %v2084, %v2116
    %v2129 = vcombine.high %v2084, %v2116
    %v2130 = vcombine.low %v2091, %v2123
    %v2131 = vcombine.high %v2091, %v2123
    %v2132 = vcombine.low %v1739, %v1755
    %v2133 = vcombine.high %v1739, %v1755
    %v2135 = vunpack.c.l.s4 1983009808
    %v2136 = vunpack.c.0.s8 %v2135
    %v2137 = vlaneseq
    %v2138 = vshrl.u32 %v2137, 7
    %v2139 = vsub.s32 %v2136, %v2138
    %v2140 = vrot.slane %v2132, %v2139
    %v2142 = vunpack.c.l.s4 1983009808
    %v2143 = vunpack.c.0.s8 %v2142
    %v2144 = vlaneseq
    %v2145 = vshrl.u32 %v2144, 7
    %v2146 = vsub.s32 %v2143, %v2145
    %v2147 = vrot.slane %v2133, %v2146
    %v2148 = vcombine.low %v1747, %v1763
    %v2149 = vcombine.high %v1747, %v1763
    %v2151 = vunpack.c.l.s4 1983009808
    %v2152 = vunpack.c.0.s8 %v2151
    %v2153 = vlaneseq
    %v2154 = vshrl.u32 %v2153, 7
    %v2155 = vsub.s32 %v2152, %v2154
    %v2156 = vrot.slane %v2148, %v2155
    %v2158 = vunpack.c.l.s4 1983009808
    %v2159 = vunpack.c.0.s8 %v2158
    %v2160 = vlaneseq
    %v2161 = vshrl.u32 %v2160, 7
    %v2162 = vsub.s32 %v2159, %v2161
    %v2163 = vrot.slane %v2149, %v2162
    %v2164 = vcombine.low %v1771, %v1787
    %v2165 = vcombine.high %v1771, %v1787
    %v2167 = vunpack.c.l.s4 1983009808
    %v2168 = vunpack.c.0.s8 %v2167
    %v2169 = vlaneseq
    %v2170 = vshrl.u32 %v2169, 7
    %v2171 = vsub.s32 %v2168, %v2170
    %v2172 = vrot.slane %v2164, %v2171
    %v2174 = vunpack.c.l.s4 1983009808
    %v2175 = vunpack.c.0.s8 %v2174
    %v2176 = vlaneseq
    %v2177 = vshrl.u32 %v2176, 7
    %v2178 = vsub.s32 %v2175, %v2177
    %v2179 = vrot.slane %v2165, %v2178
    %v2180 = vcombine.low %v1779, %v1795
    %v2181 = vcombine.high %v1779, %v1795
    %v2183 = vunpack.c.l.s4 1983009808
    %v2184 = vunpack.c.0.s8 %v2183
    %v2185 = vlaneseq
    %v2186 = vshrl.u32 %v2185, 7
    %v2187 = vsub.s32 %v2184, %v2186
    %v2188 = vrot.slane %v2180, %v2187
    %v2190 = vunpack.c.l.s4 1983009808
    %v2191 = vunpack.c.0.s8 %v2190
    %v2192 = vlaneseq
    %v2193 = vshrl.u32 %v2192, 7
    %v2194 = vsub.s32 %v2191, %v2193
    %v2195 = vrot.slane %v2181, %v2194
    %v2196 = vcombine.low %v2140, %v2156
    %v2197 = vcombine.high %v2140, %v2156
    %v2199 = vunpack.c.l.s4 1934713408
    %v2200 = vunpack.c.0.s8 %v2199
    %v2201 = vlaneseq
    %v2202 = vshrl.u32 %v2201, 7
    %v2203 = vsub.s32 %v2200, %v2202
    %v2204 = vrot.slane %v2196, %v2203
    %v2206 = vunpack.c.l.s4 1934713408
    %v2207 = vunpack.c.0.s8 %v2206
    %v2208 = vlaneseq
    %v2209 = vshrl.u32 %v2208, 7
    %v2210 = vsub.s32 %v2207, %v2209
    %v2211 = vrot.slane %v2197, %v2210
    %v2212 = vcombine.low %v2147, %v2163
    %v2213 = vcombine.high %v2147, %v2163
    %v2215 = vunpack.c.l.s4 1934713408
    %v2216 = vunpack.c.0.s8 %v2215
    %v2217 = vlaneseq
    %v2218 = vshrl.u32 %v2217, 7
    %v2219 = vsub.s32 %v2216, %v2218
    %v2220 = vrot.slane %v2212, %v2219
    %v2222 = vunpack.c.l.s4 1934713408
    %v2223 = vunpack.c.0.s8 %v2222
    %v2224 = vlaneseq
    %v2225 = vshrl.u32 %v2224, 7
    %v2226 = vsub.s32 %v2223, %v2225
    %v2227 = vrot.slane %v2213, %v2226
    %v2228 = vcombine.low %v2172, %v2188
    %v2229 = vcombine.high %v2172, %v2188
    %v2231 = vunpack.c.l.s4 1934713408
    %v2232 = vunpack.c.0.s8 %v2231
    %v2233 = vlaneseq
    %v2234 = vshrl.u32 %v2233, 7
    %v2235 = vsub.s32 %v2232, %v2234
    %v2236 = vrot.slane %v2228, %v2235
    %v2238 = vunpack.c.l.s4 1934713408
    %v2239 = vunpack.c.0.s8 %v2238
    %v2240 = vlaneseq
    %v2241 = vshrl.u32 %v2240, 7
    %v2242 = vsub.s32 %v2239, %v2241
    %v2243 = vrot.slane %v2229, %v2242
    %v2244 = vcombine.low %v2179, %v2195
    %v2245 = vcombine.high %v2179, %v2195
    %v2247 = vunpack.c.l.s4 1934713408
    %v2248 = vunpack.c.0.s8 %v2247
    %v2249 = vlaneseq
    %v2250 = vshrl.u32 %v2249, 7
    %v2251 = vsub.s32 %v2248, %v2250
    %v2252 = vrot.slane %v2244, %v2251
    %v2254 = vunpack.c.l.s4 1934713408
    %v2255 = vunpack.c.0.s8 %v2254
    %v2256 = vlaneseq
    %v2257 = vshrl.u32 %v2256, 7
    %v2258 = vsub.s32 %v2255, %v2257
    %v2259 = vrot.slane %v2245, %v2258
    %v2260 = vcombine.low %v2204, %v2236
    %v2261 = vcombine.high %v2204, %v2236
    %v2262 = vcombine.low %v2211, %v2243
    %v2263 = vcombine.high %v2211, %v2243
    %v2264 = vcombine.low %v2220, %v2252
    %v2265 = vcombine.high %v2220, %v2252
    %v2266 = vcombine.low %v2227, %v2259
    %v2267 = vcombine.high %v2227, %v2259
    %v2268 = vcombine.low %v1803, %v1819
    %v2269 = vcombine.high %v1803, %v1819
    %v2271 = vunpack.c.l.s4 1983009808
    %v2272 = vunpack.c.0.s8 %v2271
    %v2273 = vlaneseq
    %v2274 = vshrl.u32 %v2273, 7
    %v2275 = vsub.s32 %v2272, %v2274
    %v2276 = vrot.slane %v2268, %v2275
    %v2278 = vunpack.c.l.s4 1983009808
    %v2279 = vunpack.c.0.s8 %v2278
    %v2280 = vlaneseq
    %v2281 = vshrl.u32 %v2280, 7
    %v2282 = vsub.s32 %v2279, %v2281
    %v2283 = vrot.slane %v2269, %v2282
    %v2284 = vcombine.low %v1811, %v1827
    %v2285 = vcombine.high %v1811, %v1827
    %v2287 = vunpack.c.l.s4 1983009808
    %v2288 = vunpack.c.0.s8 %v2287
    %v2289 = vlaneseq
    %v2290 = vshrl.u32 %v2289, 7
    %v2291 = vsub.s32 %v2288, %v2290
    %v2292 = vrot.slane %v2284, %v2291
    %v2294 = vunpack.c.l.s4 1983009808
    %v2295 = vunpack.c.0.s8 %v2294
    %v2296 = vlaneseq
    %v2297 = vshrl.u32 %v2296, 7
    %v2298 = vsub.s32 %v2295, %v2297
    %v2299 = vrot.slane %v2285, %v2298
    %v2300 = vcombine.low %v1835, %v1851
    %v2301 = vcombine.high %v1835, %v1851
    %v2303 = vunpack.c.l.s4 1983009808
    %v2304 = vunpack.c.0.s8 %v2303
    %v2305 = vlaneseq
    %v2306 = vshrl.u32 %v2305, 7
    %v2307 = vsub.s32 %v2304, %v2306
    %v2308 = vrot.slane %v2300, %v2307
    %v2310 = vunpack.c.l.s4 1983009808
    %v2311 = vunpack.c.0.s8 %v2310
    %v2312 = vlaneseq
    %v2313 = vshrl.u32 %v2312, 7
    %v2314 = vsub.s32 %v2311, %v2313
    %v2315 = vrot.slane %v2301, %v2314
    %v2316 = vcombine.low %v1843, %v1859
    %v2317 = vcombine.high %v1843, %v1859
    %v2319 = vunpack.c.l.s4 1983009808
    %v2320 = vunpack.c.0.s8 %v2319
    %v2321 = vlaneseq
    %v2322 = vshrl.u32 %v2321, 7
    %v2323 = vsub.s32 %v2320, %v2322
    %v2324 = vrot.slane %v2316, %v2323
    %v2326 = vunpack.c.l.s4 1983009808
    %v2327 = vunpack.c.0.s8 %v2326
    %v2328 = vlaneseq
    %v2329 = vshrl.u32 %v2328, 7
    %v2330 = vsub.s32 %v2327, %v2329
    %v2331 = vrot.slane %v2317, %v2330
    %v2332 = vcombine.low %v2276, %v2292
    %v2333 = vcombine.high %v2276, %v2292
    %v2335 = vunpack.c.l.s4 1934713408
    %v2336 = vunpack.c.0.s8 %v2335
    %v2337 = vlaneseq
    %v2338 = vshrl.u32 %v2337, 7
    %v2339 = vsub.s32 %v2336, %v2338
    %v2340 = vrot.slane %v2332, %v2339
    %v2342 = vunpack.c.l.s4 1934713408
    %v2343 = vunpack.c.0.s8 %v2342
    %v2344 = vlaneseq
    %v2345 = vshrl.u32 %v2344, 7
    %v2346 = vsub.s32 %v2343, %v2345
    %v2347 = vrot.slane %v2333, %v2346
    %v2348 = vcombine.low %v2283, %v2299
    %v2349 = vcombine.high %v2283, %v2299
    %v2351 = vunpack.c.l.s4 1934713408
    %v2352 = vunpack.c.0.s8 %v2351
    %v2353 = vlaneseq
    %v2354 = vshrl.u32 %v2353, 7
    %v2355 = vsub.s32 %v2352, %v2354
    %v2356 = vrot.slane %v2348, %v2355
    %v2358 = vunpack.c.l.s4 1934713408
    %v2359 = vunpack.c.0.s8 %v2358
    %v2360 = vlaneseq
    %v2361 = vshrl.u32 %v2360, 7
    %v2362 = vsub.s32 %v2359, %v2361
    %v2363 = vrot.slane %v2349, %v2362
    %v2364 = vcombine.low %v2308, %v2324
    %v2365 = vcombine.high %v2308, %v2324
    %v2367 = vunpack.c.l.s4 1934713408
    %v2368 = vunpack.c.0.s8 %v2367
    %v2369 = vlaneseq
    %v2370 = vshrl.u32 %v2369, 7
    %v2371 = vsub.s32 %v2368, %v2370
    %v2372 = vrot.slane %v2364, %v2371
    %v2374 = vunpack.c.l.s4 1934713408
    %v2375 = vunpack.c.0.s8 %v2374
    %v2376 = vlaneseq
    %v2377 = vshrl.u32 %v2376, 7
    %v2378 = vsub.s32 %v2375, %v2377
    %v2379 = vrot.slane %v2365, %v2378
    %v2380 = vcombine.low %v2315, %v2331
    %v2381 = vcombine.high %v2315, %v2331
    %v2383 = vunpack.c.l.s4 1934713408
    %v2384 = vunpack.c.0.s8 %v2383
    %v2385 = vlaneseq
    %v2386 = vshrl.u32 %v2385, 7
    %v2387 = vsub.s32 %v2384, %v2386
    %v2388 = vrot.slane %v2380, %v2387
    %v2390 = vunpack.c.l.s4 1934713408
    %v2391 = vunpack.c.0.s8 %v2390
    %v2392 = vlaneseq
    %v2393 = vshrl.u32 %v2392, 7
    %v2394 = vsub.s32 %v2391, %v2393
    %v2395 = vrot.slane %v2381, %v2394
    %v2396 = vcombine.low %v2340, %v2372
    %v2397 = vcombine.high %v2340, %v2372
    %v2398 = vcombine.low %v2347, %v2379
    %v2399 = vcombine.high %v2347, %v2379
    %v2400 = vcombine.low %v2356, %v2388
    %v2401 = vcombine.high %v2356, %v2388
    %v2402 = vcombine.low %v2363, %v2395
    %v2403 = vcombine.high %v2363, %v2395
    %2406 = vrot.lane.b32.xlu0 %v1989, 2
    %v2407 = vpop.permute.xlu0 %2406
    %2408 = vrot.lane.b32.xlu0 %v2125, 2
    %v2409 = vpop.permute.xlu0 %2408
    %2414 = vrot.lane.b32.xlu0 %v1990, 4
    %v2415 = vpop.permute.xlu0 %2414
    %2416 = vrot.lane.b32.xlu0 %v2126, 4
    %v2417 = vpop.permute.xlu0 %2416
    %2422 = vrot.lane.b32.xlu0 %v1991, 6
    %v2423 = vpop.permute.xlu0 %2422
    %2424 = vrot.lane.b32.xlu0 %v2127, 6
    %v2425 = vpop.permute.xlu0 %2424
    %2430 = vrot.lane.b32.xlu0 %v1992, 8
    %v2431 = vpop.permute.xlu0 %2430
    %2432 = vrot.lane.b32.xlu0 %v2128, 8
    %v2433 = vpop.permute.xlu0 %2432
    %2438 = vrot.lane.b32.xlu0 %v1993, 10
    %v2439 = vpop.permute.xlu0 %2438
    %2440 = vrot.lane.b32.xlu0 %v2129, 10
    %v2441 = vpop.permute.xlu0 %2440
    %2446 = vrot.lane.b32.xlu0 %v1994, 12
    %v2447 = vpop.permute.xlu0 %2446
    %2448 = vrot.lane.b32.xlu0 %v2130, 12
    %v2449 = vpop.permute.xlu0 %2448
    %2454 = vrot.lane.b32.xlu0 %v1995, 14
    %v2455 = vpop.permute.xlu0 %2454
    %2456 = vrot.lane.b32.xlu0 %v2131, 14
    %v2457 = vpop.permute.xlu0 %2456
    %2462 = vrot.lane.b32.xlu0 %v2260, 16
    %v2463 = vpop.permute.xlu0 %2462
    %2464 = vrot.lane.b32.xlu0 %v2396, 16
    %v2465 = vpop.permute.xlu0 %2464
    %2470 = vrot.lane.b32.xlu0 %v2261, 18
    %v2471 = vpop.permute.xlu0 %2470
    %2472 = vrot.lane.b32.xlu0 %v2397, 18
    %v2473 = vpop.permute.xlu0 %2472
    %2478 = vrot.lane.b32.xlu0 %v2262, 20
    %v2479 = vpop.permute.xlu0 %2478
    %2480 = vrot.lane.b32.xlu0 %v2398, 20
    %v2481 = vpop.permute.xlu0 %2480
    %2486 = vrot.lane.b32.xlu0 %v2263, 22
    %v2487 = vpop.permute.xlu0 %2486
    %2488 = vrot.lane.b32.xlu0 %v2399, 22
    %v2489 = vpop.permute.xlu0 %2488
    %2494 = vrot.lane.b32.xlu0 %v2264, 24
    %v2495 = vpop.permute.xlu0 %2494
    %2496 = vrot.lane.b32.xlu0 %v2400, 24
    %v2497 = vpop.permute.xlu0 %2496
    %2502 = vrot.lane.b32.xlu0 %v2265, 26
    %v2503 = vpop.permute.xlu0 %2502
    %2504 = vrot.lane.b32.xlu0 %v2401, 26
    %v2505 = vpop.permute.xlu0 %2504
    %2510 = vrot.lane.b32.xlu0 %v2266, 28
    %v2511 = vpop.permute.xlu0 %2510
    %2512 = vrot.lane.b32.xlu0 %v2402, 28
    %v2513 = vpop.permute.xlu0 %2512
    %2518 = vrot.lane.b32.xlu0 %v2267, 30
    %v2519 = vpop.permute.xlu0 %2518
    %2520 = vrot.lane.b32.xlu0 %v2403, 30
    %v2521 = vpop.permute.xlu0 %2520
    %v2524 = vsel %vm865, %v1988, %v2407
    %v2525 = vsel %vm865, %v2124, %v2409
    %v2526 = vsel %vm868, %v2524, %v2415
    %v2527 = vsel %vm868, %v2525, %v2417
    %v2528 = vsel %vm871, %v2526, %v2423
    %v2529 = vsel %vm871, %v2527, %v2425
    %v2530 = vsel %vm874, %v2528, %v2431
    %v2531 = vsel %vm874, %v2529, %v2433
    %v2532 = vsel %vm877, %v2530, %v2439
    %v2533 = vsel %vm877, %v2531, %v2441
    %v2534 = vsel %vm880, %v2532, %v2447
    %v2535 = vsel %vm880, %v2533, %v2449
    %v2536 = vsel %vm883, %v2534, %v2455
    %v2537 = vsel %vm883, %v2535, %v2457
    %v2538 = vsel %vm886, %v2536, %v2463
    %v2539 = vsel %vm886, %v2537, %v2465
    %v2540 = vsel %vm889, %v2538, %v2471
    %v2541 = vsel %vm889, %v2539, %v2473
    %v2542 = vsel %vm892, %v2540, %v2479
    %v2543 = vsel %vm892, %v2541, %v2481
    %v2544 = vsel %vm895, %v2542, %v2487
    %v2545 = vsel %vm895, %v2543, %v2489
    %v2546 = vsel %vm898, %v2544, %v2495
    %v2547 = vsel %vm898, %v2545, %v2497
    %v2548 = vsel %vm901, %v2546, %v2503
    %v2549 = vsel %vm901, %v2547, %v2505
    %v2550 = vsel %vm904, %v2548, %v2511
    %v2551 = vsel %vm904, %v2549, %v2513
    %v2552 = vsel %vm907, %v2550, %v2519
    %v2553 = vsel %vm907, %v2551, %v2521
    %s2555 = sor.u32 256, 48
    %2556 = vbcast.lane.b32.xlu0 %v28, %s2555
    %v2557 = vpop.permute.xlu0 %2556
    %s2559 = sor.u32 256, 56
    %2560 = vbcast.lane.b32.xlu0 %v28, %s2559
    %v2561 = vpop.permute.xlu0 %2560
    %s2563 = sor.u32 256, 48
    %2564 = vbcast.lane.b32.xlu0 %v39, %s2563
    %v2565 = vpop.permute.xlu0 %2564
    %s2567 = sor.u32 256, 56
    %2568 = vbcast.lane.b32.xlu0 %v39, %s2567
    %v2569 = vpop.permute.xlu0 %2568
    %s2571 = sor.u32 256, 48
    %2572 = vbcast.lane.b32.xlu0 %v50, %s2571
    %v2573 = vpop.permute.xlu0 %2572
    %s2575 = sor.u32 256, 56
    %2576 = vbcast.lane.b32.xlu0 %v50, %s2575
    %v2577 = vpop.permute.xlu0 %2576
    %s2579 = sor.u32 256, 48
    %2580 = vbcast.lane.b32.xlu0 %v61, %s2579
    %v2581 = vpop.permute.xlu0 %2580
    %s2583 = sor.u32 256, 56
    %2584 = vbcast.lane.b32.xlu0 %v61, %s2583
    %v2585 = vpop.permute.xlu0 %2584
    %s2587 = sor.u32 256, 48
    %2588 = vbcast.lane.b32.xlu0 %v72, %s2587
    %v2589 = vpop.permute.xlu0 %2588
    %s2591 = sor.u32 256, 56
    %2592 = vbcast.lane.b32.xlu0 %v72, %s2591
    %v2593 = vpop.permute.xlu0 %2592
    %s2595 = sor.u32 256, 48
    %2596 = vbcast.lane.b32.xlu0 %v83, %s2595
    %v2597 = vpop.permute.xlu0 %2596
    %s2599 = sor.u32 256, 56
    %2600 = vbcast.lane.b32.xlu0 %v83, %s2599
    %v2601 = vpop.permute.xlu0 %2600
    %s2603 = sor.u32 256, 48
    %2604 = vbcast.lane.b32.xlu0 %v94, %s2603
    %v2605 = vpop.permute.xlu0 %2604
    %s2607 = sor.u32 256, 56
    %2608 = vbcast.lane.b32.xlu0 %v94, %s2607
    %v2609 = vpop.permute.xlu0 %2608
    %s2611 = sor.u32 256, 48
    %2612 = vbcast.lane.b32.xlu0 %v105, %s2611
    %v2613 = vpop.permute.xlu0 %2612
    %s2615 = sor.u32 256, 56
    %2616 = vbcast.lane.b32.xlu0 %v105, %s2615
    %v2617 = vpop.permute.xlu0 %2616
    %s2619 = sor.u32 256, 48
    %2620 = vbcast.lane.b32.xlu0 %v116, %s2619
    %v2621 = vpop.permute.xlu0 %2620
    %s2623 = sor.u32 256, 56
    %2624 = vbcast.lane.b32.xlu0 %v116, %s2623
    %v2625 = vpop.permute.xlu0 %2624
    %s2627 = sor.u32 256, 48
    %2628 = vbcast.lane.b32.xlu0 %v127, %s2627
    %v2629 = vpop.permute.xlu0 %2628
    %s2631 = sor.u32 256, 56
    %2632 = vbcast.lane.b32.xlu0 %v127, %s2631
    %v2633 = vpop.permute.xlu0 %2632
    %s2635 = sor.u32 256, 48
    %2636 = vbcast.lane.b32.xlu0 %v138, %s2635
    %v2637 = vpop.permute.xlu0 %2636
    %s2639 = sor.u32 256, 56
    %2640 = vbcast.lane.b32.xlu0 %v138, %s2639
    %v2641 = vpop.permute.xlu0 %2640
    %s2643 = sor.u32 256, 48
    %2644 = vbcast.lane.b32.xlu0 %v149, %s2643
    %v2645 = vpop.permute.xlu0 %2644
    %s2647 = sor.u32 256, 56
    %2648 = vbcast.lane.b32.xlu0 %v149, %s2647
    %v2649 = vpop.permute.xlu0 %2648
    %s2651 = sor.u32 256, 48
    %2652 = vbcast.lane.b32.xlu0 %v160, %s2651
    %v2653 = vpop.permute.xlu0 %2652
    %s2655 = sor.u32 256, 56
    %2656 = vbcast.lane.b32.xlu0 %v160, %s2655
    %v2657 = vpop.permute.xlu0 %2656
    %s2659 = sor.u32 256, 48
    %2660 = vbcast.lane.b32.xlu0 %v171, %s2659
    %v2661 = vpop.permute.xlu0 %2660
    %s2663 = sor.u32 256, 56
    %2664 = vbcast.lane.b32.xlu0 %v171, %s2663
    %v2665 = vpop.permute.xlu0 %2664
    %s2667 = sor.u32 256, 48
    %2668 = vbcast.lane.b32.xlu0 %v182, %s2667
    %v2669 = vpop.permute.xlu0 %2668
    %s2671 = sor.u32 256, 56
    %2672 = vbcast.lane.b32.xlu0 %v182, %s2671
    %v2673 = vpop.permute.xlu0 %2672
    %s2675 = sor.u32 256, 48
    %2676 = vbcast.lane.b32.xlu0 %v193, %s2675
    %v2677 = vpop.permute.xlu0 %2676
    %s2679 = sor.u32 256, 56
    %2680 = vbcast.lane.b32.xlu0 %v193, %s2679
    %v2681 = vpop.permute.xlu0 %2680
    %v2682 = vcombine.low %v2557, %v2573
    %v2683 = vcombine.high %v2557, %v2573
    %v2685 = vunpack.c.l.s4 1983009808
    %v2686 = vunpack.c.0.s8 %v2685
    %v2687 = vlaneseq
    %v2688 = vshrl.u32 %v2687, 7
    %v2689 = vsub.s32 %v2686, %v2688
    %v2690 = vrot.slane %v2682, %v2689
    %v2692 = vunpack.c.l.s4 1983009808
    %v2693 = vunpack.c.0.s8 %v2692
    %v2694 = vlaneseq
    %v2695 = vshrl.u32 %v2694, 7
    %v2696 = vsub.s32 %v2693, %v2695
    %v2697 = vrot.slane %v2683, %v2696
    %v2698 = vcombine.low %v2565, %v2581
    %v2699 = vcombine.high %v2565, %v2581
    %v2701 = vunpack.c.l.s4 1983009808
    %v2702 = vunpack.c.0.s8 %v2701
    %v2703 = vlaneseq
    %v2704 = vshrl.u32 %v2703, 7
    %v2705 = vsub.s32 %v2702, %v2704
    %v2706 = vrot.slane %v2698, %v2705
    %v2708 = vunpack.c.l.s4 1983009808
    %v2709 = vunpack.c.0.s8 %v2708
    %v2710 = vlaneseq
    %v2711 = vshrl.u32 %v2710, 7
    %v2712 = vsub.s32 %v2709, %v2711
    %v2713 = vrot.slane %v2699, %v2712
    %v2714 = vcombine.low %v2589, %v2605
    %v2715 = vcombine.high %v2589, %v2605
    %v2717 = vunpack.c.l.s4 1983009808
    %v2718 = vunpack.c.0.s8 %v2717
    %v2719 = vlaneseq
    %v2720 = vshrl.u32 %v2719, 7
    %v2721 = vsub.s32 %v2718, %v2720
    %v2722 = vrot.slane %v2714, %v2721
    %v2724 = vunpack.c.l.s4 1983009808
    %v2725 = vunpack.c.0.s8 %v2724
    %v2726 = vlaneseq
    %v2727 = vshrl.u32 %v2726, 7
    %v2728 = vsub.s32 %v2725, %v2727
    %v2729 = vrot.slane %v2715, %v2728
    %v2730 = vcombine.low %v2597, %v2613
    %v2731 = vcombine.high %v2597, %v2613
    %v2733 = vunpack.c.l.s4 1983009808
    %v2734 = vunpack.c.0.s8 %v2733
    %v2735 = vlaneseq
    %v2736 = vshrl.u32 %v2735, 7
    %v2737 = vsub.s32 %v2734, %v2736
    %v2738 = vrot.slane %v2730, %v2737
    %v2740 = vunpack.c.l.s4 1983009808
    %v2741 = vunpack.c.0.s8 %v2740
    %v2742 = vlaneseq
    %v2743 = vshrl.u32 %v2742, 7
    %v2744 = vsub.s32 %v2741, %v2743
    %v2745 = vrot.slane %v2731, %v2744
    %v2746 = vcombine.low %v2690, %v2706
    %v2747 = vcombine.high %v2690, %v2706
    %v2749 = vunpack.c.l.s4 1934713408
    %v2750 = vunpack.c.0.s8 %v2749
    %v2751 = vlaneseq
    %v2752 = vshrl.u32 %v2751, 7
    %v2753 = vsub.s32 %v2750, %v2752
    %v2754 = vrot.slane %v2746, %v2753
    %v2756 = vunpack.c.l.s4 1934713408
    %v2757 = vunpack.c.0.s8 %v2756
    %v2758 = vlaneseq
    %v2759 = vshrl.u32 %v2758, 7
    %v2760 = vsub.s32 %v2757, %v2759
    %v2761 = vrot.slane %v2747, %v2760
    %v2762 = vcombine.low %v2697, %v2713
    %v2763 = vcombine.high %v2697, %v2713
    %v2765 = vunpack.c.l.s4 1934713408
    %v2766 = vunpack.c.0.s8 %v2765
    %v2767 = vlaneseq
    %v2768 = vshrl.u32 %v2767, 7
    %v2769 = vsub.s32 %v2766, %v2768
    %v2770 = vrot.slane %v2762, %v2769
    %v2772 = vunpack.c.l.s4 1934713408
    %v2773 = vunpack.c.0.s8 %v2772
    %v2774 = vlaneseq
    %v2775 = vshrl.u32 %v2774, 7
    %v2776 = vsub.s32 %v2773, %v2775
    %v2777 = vrot.slane %v2763, %v2776
    %v2778 = vcombine.low %v2722, %v2738
    %v2779 = vcombine.high %v2722, %v2738
    %v2781 = vunpack.c.l.s4 1934713408
    %v2782 = vunpack.c.0.s8 %v2781
    %v2783 = vlaneseq
    %v2784 = vshrl.u32 %v2783, 7
    %v2785 = vsub.s32 %v2782, %v2784
    %v2786 = vrot.slane %v2778, %v2785
    %v2788 = vunpack.c.l.s4 1934713408
    %v2789 = vunpack.c.0.s8 %v2788
    %v2790 = vlaneseq
    %v2791 = vshrl.u32 %v2790, 7
    %v2792 = vsub.s32 %v2789, %v2791
    %v2793 = vrot.slane %v2779, %v2792
    %v2794 = vcombine.low %v2729, %v2745
    %v2795 = vcombine.high %v2729, %v2745
    %v2797 = vunpack.c.l.s4 1934713408
    %v2798 = vunpack.c.0.s8 %v2797
    %v2799 = vlaneseq
    %v2800 = vshrl.u32 %v2799, 7
    %v2801 = vsub.s32 %v2798, %v2800
    %v2802 = vrot.slane %v2794, %v2801
    %v2804 = vunpack.c.l.s4 1934713408
    %v2805 = vunpack.c.0.s8 %v2804
    %v2806 = vlaneseq
    %v2807 = vshrl.u32 %v2806, 7
    %v2808 = vsub.s32 %v2805, %v2807
    %v2809 = vrot.slane %v2795, %v2808
    %v2810 = vcombine.low %v2754, %v2786
    %v2811 = vcombine.high %v2754, %v2786
    %v2812 = vcombine.low %v2761, %v2793
    %v2813 = vcombine.high %v2761, %v2793
    %v2814 = vcombine.low %v2770, %v2802
    %v2815 = vcombine.high %v2770, %v2802
    %v2816 = vcombine.low %v2777, %v2809
    %v2817 = vcombine.high %v2777, %v2809
    %v2818 = vcombine.low %v2621, %v2637
    %v2819 = vcombine.high %v2621, %v2637
    %v2821 = vunpack.c.l.s4 1983009808
    %v2822 = vunpack.c.0.s8 %v2821
    %v2823 = vlaneseq
    %v2824 = vshrl.u32 %v2823, 7
    %v2825 = vsub.s32 %v2822, %v2824
    %v2826 = vrot.slane %v2818, %v2825
    %v2828 = vunpack.c.l.s4 1983009808
    %v2829 = vunpack.c.0.s8 %v2828
    %v2830 = vlaneseq
    %v2831 = vshrl.u32 %v2830, 7
    %v2832 = vsub.s32 %v2829, %v2831
    %v2833 = vrot.slane %v2819, %v2832
    %v2834 = vcombine.low %v2629, %v2645
    %v2835 = vcombine.high %v2629, %v2645
    %v2837 = vunpack.c.l.s4 1983009808
    %v2838 = vunpack.c.0.s8 %v2837
    %v2839 = vlaneseq
    %v2840 = vshrl.u32 %v2839, 7
    %v2841 = vsub.s32 %v2838, %v2840
    %v2842 = vrot.slane %v2834, %v2841
    %v2844 = vunpack.c.l.s4 1983009808
    %v2845 = vunpack.c.0.s8 %v2844
    %v2846 = vlaneseq
    %v2847 = vshrl.u32 %v2846, 7
    %v2848 = vsub.s32 %v2845, %v2847
    %v2849 = vrot.slane %v2835, %v2848
    %v2850 = vcombine.low %v2653, %v2669
    %v2851 = vcombine.high %v2653, %v2669
    %v2853 = vunpack.c.l.s4 1983009808
    %v2854 = vunpack.c.0.s8 %v2853
    %v2855 = vlaneseq
    %v2856 = vshrl.u32 %v2855, 7
    %v2857 = vsub.s32 %v2854, %v2856
    %v2858 = vrot.slane %v2850, %v2857
    %v2860 = vunpack.c.l.s4 1983009808
    %v2861 = vunpack.c.0.s8 %v2860
    %v2862 = vlaneseq
    %v2863 = vshrl.u32 %v2862, 7
    %v2864 = vsub.s32 %v2861, %v2863
    %v2865 = vrot.slane %v2851, %v2864
    %v2866 = vcombine.low %v2661, %v2677
    %v2867 = vcombine.high %v2661, %v2677
    %v2869 = vunpack.c.l.s4 1983009808
    %v2870 = vunpack.c.0.s8 %v2869
    %v2871 = vlaneseq
    %v2872 = vshrl.u32 %v2871, 7
    %v2873 = vsub.s32 %v2870, %v2872
    %v2874 = vrot.slane %v2866, %v2873
    %v2876 = vunpack.c.l.s4 1983009808
    %v2877 = vunpack.c.0.s8 %v2876
    %v2878 = vlaneseq
    %v2879 = vshrl.u32 %v2878, 7
    %v2880 = vsub.s32 %v2877, %v2879
    %v2881 = vrot.slane %v2867, %v2880
    %v2882 = vcombine.low %v2826, %v2842
    %v2883 = vcombine.high %v2826, %v2842
    %v2885 = vunpack.c.l.s4 1934713408
    %v2886 = vunpack.c.0.s8 %v2885
    %v2887 = vlaneseq
    %v2888 = vshrl.u32 %v2887, 7
    %v2889 = vsub.s32 %v2886, %v2888
    %v2890 = vrot.slane %v2882, %v2889
    %v2892 = vunpack.c.l.s4 1934713408
    %v2893 = vunpack.c.0.s8 %v2892
    %v2894 = vlaneseq
    %v2895 = vshrl.u32 %v2894, 7
    %v2896 = vsub.s32 %v2893, %v2895
    %v2897 = vrot.slane %v2883, %v2896
    %v2898 = vcombine.low %v2833, %v2849
    %v2899 = vcombine.high %v2833, %v2849
    %v2901 = vunpack.c.l.s4 1934713408
    %v2902 = vunpack.c.0.s8 %v2901
    %v2903 = vlaneseq
    %v2904 = vshrl.u32 %v2903, 7
    %v2905 = vsub.s32 %v2902, %v2904
    %v2906 = vrot.slane %v2898, %v2905
    %v2908 = vunpack.c.l.s4 1934713408
    %v2909 = vunpack.c.0.s8 %v2908
    %v2910 = vlaneseq
    %v2911 = vshrl.u32 %v2910, 7
    %v2912 = vsub.s32 %v2909, %v2911
    %v2913 = vrot.slane %v2899, %v2912
    %v2914 = vcombine.low %v2858, %v2874
    %v2915 = vcombine.high %v2858, %v2874
    %v2917 = vunpack.c.l.s4 1934713408
    %v2918 = vunpack.c.0.s8 %v2917
    %v2919 = vlaneseq
    %v2920 = vshrl.u32 %v2919, 7
    %v2921 = vsub.s32 %v2918, %v2920
    %v2922 = vrot.slane %v2914, %v2921
    %v2924 = vunpack.c.l.s4 1934713408
    %v2925 = vunpack.c.0.s8 %v2924
    %v2926 = vlaneseq
    %v2927 = vshrl.u32 %v2926, 7
    %v2928 = vsub.s32 %v2925, %v2927
    %v2929 = vrot.slane %v2915, %v2928
    %v2930 = vcombine.low %v2865, %v2881
    %v2931 = vcombine.high %v2865, %v2881
    %v2933 = vunpack.c.l.s4 1934713408
    %v2934 = vunpack.c.0.s8 %v2933
    %v2935 = vlaneseq
    %v2936 = vshrl.u32 %v2935, 7
    %v2937 = vsub.s32 %v2934, %v2936
    %v2938 = vrot.slane %v2930, %v2937
    %v2940 = vunpack.c.l.s4 1934713408
    %v2941 = vunpack.c.0.s8 %v2940
    %v2942 = vlaneseq
    %v2943 = vshrl.u32 %v2942, 7
    %v2944 = vsub.s32 %v2941, %v2943
    %v2945 = vrot.slane %v2931, %v2944
    %v2946 = vcombine.low %v2890, %v2922
    %v2947 = vcombine.high %v2890, %v2922
    %v2948 = vcombine.low %v2897, %v2929
    %v2949 = vcombine.high %v2897, %v2929
    %v2950 = vcombine.low %v2906, %v2938
    %v2951 = vcombine.high %v2906, %v2938
    %v2952 = vcombine.low %v2913, %v2945
    %v2953 = vcombine.high %v2913, %v2945
    %v2954 = vcombine.low %v2561, %v2577
    %v2955 = vcombine.high %v2561, %v2577
    %v2957 = vunpack.c.l.s4 1983009808
    %v2958 = vunpack.c.0.s8 %v2957
    %v2959 = vlaneseq
    %v2960 = vshrl.u32 %v2959, 7
    %v2961 = vsub.s32 %v2958, %v2960
    %v2962 = vrot.slane %v2954, %v2961
    %v2964 = vunpack.c.l.s4 1983009808
    %v2965 = vunpack.c.0.s8 %v2964
    %v2966 = vlaneseq
    %v2967 = vshrl.u32 %v2966, 7
    %v2968 = vsub.s32 %v2965, %v2967
    %v2969 = vrot.slane %v2955, %v2968
    %v2970 = vcombine.low %v2569, %v2585
    %v2971 = vcombine.high %v2569, %v2585
    %v2973 = vunpack.c.l.s4 1983009808
    %v2974 = vunpack.c.0.s8 %v2973
    %v2975 = vlaneseq
    %v2976 = vshrl.u32 %v2975, 7
    %v2977 = vsub.s32 %v2974, %v2976
    %v2978 = vrot.slane %v2970, %v2977
    %v2980 = vunpack.c.l.s4 1983009808
    %v2981 = vunpack.c.0.s8 %v2980
    %v2982 = vlaneseq
    %v2983 = vshrl.u32 %v2982, 7
    %v2984 = vsub.s32 %v2981, %v2983
    %v2985 = vrot.slane %v2971, %v2984
    %v2986 = vcombine.low %v2593, %v2609
    %v2987 = vcombine.high %v2593, %v2609
    %v2989 = vunpack.c.l.s4 1983009808
    %v2990 = vunpack.c.0.s8 %v2989
    %v2991 = vlaneseq
    %v2992 = vshrl.u32 %v2991, 7
    %v2993 = vsub.s32 %v2990, %v2992
    %v2994 = vrot.slane %v2986, %v2993
    %v2996 = vunpack.c.l.s4 1983009808
    %v2997 = vunpack.c.0.s8 %v2996
    %v2998 = vlaneseq
    %v2999 = vshrl.u32 %v2998, 7
    %v3000 = vsub.s32 %v2997, %v2999
    %v3001 = vrot.slane %v2987, %v3000
    %v3002 = vcombine.low %v2601, %v2617
    %v3003 = vcombine.high %v2601, %v2617
    %v3005 = vunpack.c.l.s4 1983009808
    %v3006 = vunpack.c.0.s8 %v3005
    %v3007 = vlaneseq
    %v3008 = vshrl.u32 %v3007, 7
    %v3009 = vsub.s32 %v3006, %v3008
    %v3010 = vrot.slane %v3002, %v3009
    %v3012 = vunpack.c.l.s4 1983009808
    %v3013 = vunpack.c.0.s8 %v3012
    %v3014 = vlaneseq
    %v3015 = vshrl.u32 %v3014, 7
    %v3016 = vsub.s32 %v3013, %v3015
    %v3017 = vrot.slane %v3003, %v3016
    %v3018 = vcombine.low %v2962, %v2978
    %v3019 = vcombine.high %v2962, %v2978
    %v3021 = vunpack.c.l.s4 1934713408
    %v3022 = vunpack.c.0.s8 %v3021
    %v3023 = vlaneseq
    %v3024 = vshrl.u32 %v3023, 7
    %v3025 = vsub.s32 %v3022, %v3024
    %v3026 = vrot.slane %v3018, %v3025
    %v3028 = vunpack.c.l.s4 1934713408
    %v3029 = vunpack.c.0.s8 %v3028
    %v3030 = vlaneseq
    %v3031 = vshrl.u32 %v3030, 7
    %v3032 = vsub.s32 %v3029, %v3031
    %v3033 = vrot.slane %v3019, %v3032
    %v3034 = vcombine.low %v2969, %v2985
    %v3035 = vcombine.high %v2969, %v2985
    %v3037 = vunpack.c.l.s4 1934713408
    %v3038 = vunpack.c.0.s8 %v3037
    %v3039 = vlaneseq
    %v3040 = vshrl.u32 %v3039, 7
    %v3041 = vsub.s32 %v3038, %v3040
    %v3042 = vrot.slane %v3034, %v3041
    %v3044 = vunpack.c.l.s4 1934713408
    %v3045 = vunpack.c.0.s8 %v3044
    %v3046 = vlaneseq
    %v3047 = vshrl.u32 %v3046, 7
    %v3048 = vsub.s32 %v3045, %v3047
    %v3049 = vrot.slane %v3035, %v3048
    %v3050 = vcombine.low %v2994, %v3010
    %v3051 = vcombine.high %v2994, %v3010
    %v3053 = vunpack.c.l.s4 1934713408
    %v3054 = vunpack.c.0.s8 %v3053
    %v3055 = vlaneseq
    %v3056 = vshrl.u32 %v3055, 7
    %v3057 = vsub.s32 %v3054, %v3056
    %v3058 = vrot.slane %v3050, %v3057
    %v3060 = vunpack.c.l.s4 1934713408
    %v3061 = vunpack.c.0.s8 %v3060
    %v3062 = vlaneseq
    %v3063 = vshrl.u32 %v3062, 7
    %v3064 = vsub.s32 %v3061, %v3063
    %v3065 = vrot.slane %v3051, %v3064
    %v3066 = vcombine.low %v3001, %v3017
    %v3067 = vcombine.high %v3001, %v3017
    %v3069 = vunpack.c.l.s4 1934713408
    %v3070 = vunpack.c.0.s8 %v3069
    %v3071 = vlaneseq
    %v3072 = vshrl.u32 %v3071, 7
    %v3073 = vsub.s32 %v3070, %v3072
    %v3074 = vrot.slane %v3066, %v3073
    %v3076 = vunpack.c.l.s4 1934713408
    %v3077 = vunpack.c.0.s8 %v3076
    %v3078 = vlaneseq
    %v3079 = vshrl.u32 %v3078, 7
    %v3080 = vsub.s32 %v3077, %v3079
    %v3081 = vrot.slane %v3067, %v3080
    %v3082 = vcombine.low %v3026, %v3058
    %v3083 = vcombine.high %v3026, %v3058
    %v3084 = vcombine.low %v3033, %v3065
    %v3085 = vcombine.high %v3033, %v3065
    %v3086 = vcombine.low %v3042, %v3074
    %v3087 = vcombine.high %v3042, %v3074
    %v3088 = vcombine.low %v3049, %v3081
    %v3089 = vcombine.high %v3049, %v3081
    %v3090 = vcombine.low %v2625, %v2641
    %v3091 = vcombine.high %v2625, %v2641
    %v3093 = vunpack.c.l.s4 1983009808
    %v3094 = vunpack.c.0.s8 %v3093
    %v3095 = vlaneseq
    %v3096 = vshrl.u32 %v3095, 7
    %v3097 = vsub.s32 %v3094, %v3096
    %v3098 = vrot.slane %v3090, %v3097
    %v3100 = vunpack.c.l.s4 1983009808
    %v3101 = vunpack.c.0.s8 %v3100
    %v3102 = vlaneseq
    %v3103 = vshrl.u32 %v3102, 7
    %v3104 = vsub.s32 %v3101, %v3103
    %v3105 = vrot.slane %v3091, %v3104
    %v3106 = vcombine.low %v2633, %v2649
    %v3107 = vcombine.high %v2633, %v2649
    %v3109 = vunpack.c.l.s4 1983009808
    %v3110 = vunpack.c.0.s8 %v3109
    %v3111 = vlaneseq
    %v3112 = vshrl.u32 %v3111, 7
    %v3113 = vsub.s32 %v3110, %v3112
    %v3114 = vrot.slane %v3106, %v3113
    %v3116 = vunpack.c.l.s4 1983009808
    %v3117 = vunpack.c.0.s8 %v3116
    %v3118 = vlaneseq
    %v3119 = vshrl.u32 %v3118, 7
    %v3120 = vsub.s32 %v3117, %v3119
    %v3121 = vrot.slane %v3107, %v3120
    %v3122 = vcombine.low %v2657, %v2673
    %v3123 = vcombine.high %v2657, %v2673
    %v3125 = vunpack.c.l.s4 1983009808
    %v3126 = vunpack.c.0.s8 %v3125
    %v3127 = vlaneseq
    %v3128 = vshrl.u32 %v3127, 7
    %v3129 = vsub.s32 %v3126, %v3128
    %v3130 = vrot.slane %v3122, %v3129
    %v3132 = vunpack.c.l.s4 1983009808
    %v3133 = vunpack.c.0.s8 %v3132
    %v3134 = vlaneseq
    %v3135 = vshrl.u32 %v3134, 7
    %v3136 = vsub.s32 %v3133, %v3135
    %v3137 = vrot.slane %v3123, %v3136
    %v3138 = vcombine.low %v2665, %v2681
    %v3139 = vcombine.high %v2665, %v2681
    %v3141 = vunpack.c.l.s4 1983009808
    %v3142 = vunpack.c.0.s8 %v3141
    %v3143 = vlaneseq
    %v3144 = vshrl.u32 %v3143, 7
    %v3145 = vsub.s32 %v3142, %v3144
    %v3146 = vrot.slane %v3138, %v3145
    %v3148 = vunpack.c.l.s4 1983009808
    %v3149 = vunpack.c.0.s8 %v3148
    %v3150 = vlaneseq
    %v3151 = vshrl.u32 %v3150, 7
    %v3152 = vsub.s32 %v3149, %v3151
    %v3153 = vrot.slane %v3139, %v3152
    %v3154 = vcombine.low %v3098, %v3114
    %v3155 = vcombine.high %v3098, %v3114
    %v3157 = vunpack.c.l.s4 1934713408
    %v3158 = vunpack.c.0.s8 %v3157
    %v3159 = vlaneseq
    %v3160 = vshrl.u32 %v3159, 7
    %v3161 = vsub.s32 %v3158, %v3160
    %v3162 = vrot.slane %v3154, %v3161
    %v3164 = vunpack.c.l.s4 1934713408
    %v3165 = vunpack.c.0.s8 %v3164
    %v3166 = vlaneseq
    %v3167 = vshrl.u32 %v3166, 7
    %v3168 = vsub.s32 %v3165, %v3167
    %v3169 = vrot.slane %v3155, %v3168
    %v3170 = vcombine.low %v3105, %v3121
    %v3171 = vcombine.high %v3105, %v3121
    %v3173 = vunpack.c.l.s4 1934713408
    %v3174 = vunpack.c.0.s8 %v3173
    %v3175 = vlaneseq
    %v3176 = vshrl.u32 %v3175, 7
    %v3177 = vsub.s32 %v3174, %v3176
    %v3178 = vrot.slane %v3170, %v3177
    %v3180 = vunpack.c.l.s4 1934713408
    %v3181 = vunpack.c.0.s8 %v3180
    %v3182 = vlaneseq
    %v3183 = vshrl.u32 %v3182, 7
    %v3184 = vsub.s32 %v3181, %v3183
    %v3185 = vrot.slane %v3171, %v3184
    %v3186 = vcombine.low %v3130, %v3146
    %v3187 = vcombine.high %v3130, %v3146
    %v3189 = vunpack.c.l.s4 1934713408
    %v3190 = vunpack.c.0.s8 %v3189
    %v3191 = vlaneseq
    %v3192 = vshrl.u32 %v3191, 7
    %v3193 = vsub.s32 %v3190, %v3192
    %v3194 = vrot.slane %v3186, %v3193
    %v3196 = vunpack.c.l.s4 1934713408
    %v3197 = vunpack.c.0.s8 %v3196
    %v3198 = vlaneseq
    %v3199 = vshrl.u32 %v3198, 7
    %v3200 = vsub.s32 %v3197, %v3199
    %v3201 = vrot.slane %v3187, %v3200
    %v3202 = vcombine.low %v3137, %v3153
    %v3203 = vcombine.high %v3137, %v3153
    %v3205 = vunpack.c.l.s4 1934713408
    %v3206 = vunpack.c.0.s8 %v3205
    %v3207 = vlaneseq
    %v3208 = vshrl.u32 %v3207, 7
    %v3209 = vsub.s32 %v3206, %v3208
    %v3210 = vrot.slane %v3202, %v3209
    %v3212 = vunpack.c.l.s4 1934713408
    %v3213 = vunpack.c.0.s8 %v3212
    %v3214 = vlaneseq
    %v3215 = vshrl.u32 %v3214, 7
    %v3216 = vsub.s32 %v3213, %v3215
    %v3217 = vrot.slane %v3203, %v3216
    %v3218 = vcombine.low %v3162, %v3194
    %v3219 = vcombine.high %v3162, %v3194
    %v3220 = vcombine.low %v3169, %v3201
    %v3221 = vcombine.high %v3169, %v3201
    %v3222 = vcombine.low %v3178, %v3210
    %v3223 = vcombine.high %v3178, %v3210
    %v3224 = vcombine.low %v3185, %v3217
    %v3225 = vcombine.high %v3185, %v3217
    %3228 = vrot.lane.b32.xlu0 %v2811, 2
    %v3229 = vpop.permute.xlu0 %3228
    %3230 = vrot.lane.b32.xlu0 %v2947, 2
    %v3231 = vpop.permute.xlu0 %3230
    %3236 = vrot.lane.b32.xlu0 %v2812, 4
    %v3237 = vpop.permute.xlu0 %3236
    %3238 = vrot.lane.b32.xlu0 %v2948, 4
    %v3239 = vpop.permute.xlu0 %3238
    %3244 = vrot.lane.b32.xlu0 %v2813, 6
    %v3245 = vpop.permute.xlu0 %3244
    %3246 = vrot.lane.b32.xlu0 %v2949, 6
    %v3247 = vpop.permute.xlu0 %3246
    %3252 = vrot.lane.b32.xlu0 %v2814, 8
    %v3253 = vpop.permute.xlu0 %3252
    %3254 = vrot.lane.b32.xlu0 %v2950, 8
    %v3255 = vpop.permute.xlu0 %3254
    %3260 = vrot.lane.b32.xlu0 %v2815, 10
    %v3261 = vpop.permute.xlu0 %3260
    %3262 = vrot.lane.b32.xlu0 %v2951, 10
    %v3263 = vpop.permute.xlu0 %3262
    %3268 = vrot.lane.b32.xlu0 %v2816, 12
    %v3269 = vpop.permute.xlu0 %3268
    %3270 = vrot.lane.b32.xlu0 %v2952, 12
    %v3271 = vpop.permute.xlu0 %3270
    %3276 = vrot.lane.b32.xlu0 %v2817, 14
    %v3277 = vpop.permute.xlu0 %3276
    %3278 = vrot.lane.b32.xlu0 %v2953, 14
    %v3279 = vpop.permute.xlu0 %3278
    %3284 = vrot.lane.b32.xlu0 %v3082, 16
    %v3285 = vpop.permute.xlu0 %3284
    %3286 = vrot.lane.b32.xlu0 %v3218, 16
    %v3287 = vpop.permute.xlu0 %3286
    %3292 = vrot.lane.b32.xlu0 %v3083, 18
    %v3293 = vpop.permute.xlu0 %3292
    %3294 = vrot.lane.b32.xlu0 %v3219, 18
    %v3295 = vpop.permute.xlu0 %3294
    %3300 = vrot.lane.b32.xlu0 %v3084, 20
    %v3301 = vpop.permute.xlu0 %3300
    %3302 = vrot.lane.b32.xlu0 %v3220, 20
    %v3303 = vpop.permute.xlu0 %3302
    %3308 = vrot.lane.b32.xlu0 %v3085, 22
    %v3309 = vpop.permute.xlu0 %3308
    %3310 = vrot.lane.b32.xlu0 %v3221, 22
    %v3311 = vpop.permute.xlu0 %3310
    %3316 = vrot.lane.b32.xlu0 %v3086, 24
    %v3317 = vpop.permute.xlu0 %3316
    %3318 = vrot.lane.b32.xlu0 %v3222, 24
    %v3319 = vpop.permute.xlu0 %3318
    %3324 = vrot.lane.b32.xlu0 %v3087, 26
    %v3325 = vpop.permute.xlu0 %3324
    %3326 = vrot.lane.b32.xlu0 %v3223, 26
    %v3327 = vpop.permute.xlu0 %3326
    %3332 = vrot.lane.b32.xlu0 %v3088, 28
    %v3333 = vpop.permute.xlu0 %3332
    %3334 = vrot.lane.b32.xlu0 %v3224, 28
    %v3335 = vpop.permute.xlu0 %3334
    %3340 = vrot.lane.b32.xlu0 %v3089, 30
    %v3341 = vpop.permute.xlu0 %3340
    %3342 = vrot.lane.b32.xlu0 %v3225, 30
    %v3343 = vpop.permute.xlu0 %3342
    %v3346 = vsel %vm865, %v2810, %v3229
    %v3347 = vsel %vm865, %v2946, %v3231
    %v3348 = vsel %vm868, %v3346, %v3237
    %v3349 = vsel %vm868, %v3347, %v3239
    %v3350 = vsel %vm871, %v3348, %v3245
    %v3351 = vsel %vm871, %v3349, %v3247
    %v3352 = vsel %vm874, %v3350, %v3253
    %v3353 = vsel %vm874, %v3351, %v3255
    %v3354 = vsel %vm877, %v3352, %v3261
    %v3355 = vsel %vm877, %v3353, %v3263
    %v3356 = vsel %vm880, %v3354, %v3269
    %v3357 = vsel %vm880, %v3355, %v3271
    %v3358 = vsel %vm883, %v3356, %v3277
    %v3359 = vsel %vm883, %v3357, %v3279
    %v3360 = vsel %vm886, %v3358, %v3285
    %v3361 = vsel %vm886, %v3359, %v3287
    %v3362 = vsel %vm889, %v3360, %v3293
    %v3363 = vsel %vm889, %v3361, %v3295
    %v3364 = vsel %vm892, %v3362, %v3301
    %v3365 = vsel %vm892, %v3363, %v3303
    %v3366 = vsel %vm895, %v3364, %v3309
    %v3367 = vsel %vm895, %v3365, %v3311
    %v3368 = vsel %vm898, %v3366, %v3317
    %v3369 = vsel %vm898, %v3367, %v3319
    %v3370 = vsel %vm901, %v3368, %v3325
    %v3371 = vsel %vm901, %v3369, %v3327
    %v3372 = vsel %vm904, %v3370, %v3333
    %v3373 = vsel %vm904, %v3371, %v3335
    %v3374 = vsel %vm907, %v3372, %v3341
    %v3375 = vsel %vm907, %v3373, %v3343
    %s3377 = sor.u32 256, 64
    %3378 = vbcast.lane.b32.xlu0 %v28, %s3377
    %v3379 = vpop.permute.xlu0 %3378
    %s3381 = sor.u32 256, 72
    %3382 = vbcast.lane.b32.xlu0 %v28, %s3381
    %v3383 = vpop.permute.xlu0 %3382
    %s3385 = sor.u32 256, 64
    %3386 = vbcast.lane.b32.xlu0 %v39, %s3385
    %v3387 = vpop.permute.xlu0 %3386
    %s3389 = sor.u32 256, 72
    %3390 = vbcast.lane.b32.xlu0 %v39, %s3389
    %v3391 = vpop.permute.xlu0 %3390
    %s3393 = sor.u32 256, 64
    %3394 = vbcast.lane.b32.xlu0 %v50, %s3393
    %v3395 = vpop.permute.xlu0 %3394
    %s3397 = sor.u32 256, 72
    %3398 = vbcast.lane.b32.xlu0 %v50, %s3397
    %v3399 = vpop.permute.xlu0 %3398
    %s3401 = sor.u32 256, 64
    %3402 = vbcast.lane.b32.xlu0 %v61, %s3401
    %v3403 = vpop.permute.xlu0 %3402
    %s3405 = sor.u32 256, 72
    %3406 = vbcast.lane.b32.xlu0 %v61, %s3405
    %v3407 = vpop.permute.xlu0 %3406
    %s3409 = sor.u32 256, 64
    %3410 = vbcast.lane.b32.xlu0 %v72, %s3409
    %v3411 = vpop.permute.xlu0 %3410
    %s3413 = sor.u32 256, 72
    %3414 = vbcast.lane.b32.xlu0 %v72, %s3413
    %v3415 = vpop.permute.xlu0 %3414
    %s3417 = sor.u32 256, 64
    %3418 = vbcast.lane.b32.xlu0 %v83, %s3417
    %v3419 = vpop.permute.xlu0 %3418
    %s3421 = sor.u32 256, 72
    %3422 = vbcast.lane.b32.xlu0 %v83, %s3421
    %v3423 = vpop.permute.xlu0 %3422
    %s3425 = sor.u32 256, 64
    %3426 = vbcast.lane.b32.xlu0 %v94, %s3425
    %v3427 = vpop.permute.xlu0 %3426
    %s3429 = sor.u32 256, 72
    %3430 = vbcast.lane.b32.xlu0 %v94, %s3429
    %v3431 = vpop.permute.xlu0 %3430
    %s3433 = sor.u32 256, 64
    %3434 = vbcast.lane.b32.xlu0 %v105, %s3433
    %v3435 = vpop.permute.xlu0 %3434
    %s3437 = sor.u32 256, 72
    %3438 = vbcast.lane.b32.xlu0 %v105, %s3437
    %v3439 = vpop.permute.xlu0 %3438
    %s3441 = sor.u32 256, 64
    %3442 = vbcast.lane.b32.xlu0 %v116, %s3441
    %v3443 = vpop.permute.xlu0 %3442
    %s3445 = sor.u32 256, 72
    %3446 = vbcast.lane.b32.xlu0 %v116, %s3445
    %v3447 = vpop.permute.xlu0 %3446
    %s3449 = sor.u32 256, 64
    %3450 = vbcast.lane.b32.xlu0 %v127, %s3449
    %v3451 = vpop.permute.xlu0 %3450
    %s3453 = sor.u32 256, 72
    %3454 = vbcast.lane.b32.xlu0 %v127, %s3453
    %v3455 = vpop.permute.xlu0 %3454
    %s3457 = sor.u32 256, 64
    %3458 = vbcast.lane.b32.xlu0 %v138, %s3457
    %v3459 = vpop.permute.xlu0 %3458
    %s3461 = sor.u32 256, 72
    %3462 = vbcast.lane.b32.xlu0 %v138, %s3461
    %v3463 = vpop.permute.xlu0 %3462
    %s3465 = sor.u32 256, 64
    %3466 = vbcast.lane.b32.xlu0 %v149, %s3465
    %v3467 = vpop.permute.xlu0 %3466
    %s3469 = sor.u32 256, 72
    %3470 = vbcast.lane.b32.xlu0 %v149, %s3469
    %v3471 = vpop.permute.xlu0 %3470
    %s3473 = sor.u32 256, 64
    %3474 = vbcast.lane.b32.xlu0 %v160, %s3473
    %v3475 = vpop.permute.xlu0 %3474
    %s3477 = sor.u32 256, 72
    %3478 = vbcast.lane.b32.xlu0 %v160, %s3477
    %v3479 = vpop.permute.xlu0 %3478
    %s3481 = sor.u32 256, 64
    %3482 = vbcast.lane.b32.xlu0 %v171, %s3481
    %v3483 = vpop.permute.xlu0 %3482
    %s3485 = sor.u32 256, 72
    %3486 = vbcast.lane.b32.xlu0 %v171, %s3485
    %v3487 = vpop.permute.xlu0 %3486
    %s3489 = sor.u32 256, 64
    %3490 = vbcast.lane.b32.xlu0 %v182, %s3489
    %v3491 = vpop.permute.xlu0 %3490
    %s3493 = sor.u32 256, 72
    %3494 = vbcast.lane.b32.xlu0 %v182, %s3493
    %v3495 = vpop.permute.xlu0 %3494
    %s3497 = sor.u32 256, 64
    %3498 = vbcast.lane.b32.xlu0 %v193, %s3497
    %v3499 = vpop.permute.xlu0 %3498
    %s3501 = sor.u32 256, 72
    %3502 = vbcast.lane.b32.xlu0 %v193, %s3501
    %v3503 = vpop.permute.xlu0 %3502
    %v3504 = vcombine.low %v3379, %v3395
    %v3505 = vcombine.high %v3379, %v3395
    %v3507 = vunpack.c.l.s4 1983009808
    %v3508 = vunpack.c.0.s8 %v3507
    %v3509 = vlaneseq
    %v3510 = vshrl.u32 %v3509, 7
    %v3511 = vsub.s32 %v3508, %v3510
    %v3512 = vrot.slane %v3504, %v3511
    %v3514 = vunpack.c.l.s4 1983009808
    %v3515 = vunpack.c.0.s8 %v3514
    %v3516 = vlaneseq
    %v3517 = vshrl.u32 %v3516, 7
    %v3518 = vsub.s32 %v3515, %v3517
    %v3519 = vrot.slane %v3505, %v3518
    %v3520 = vcombine.low %v3387, %v3403
    %v3521 = vcombine.high %v3387, %v3403
    %v3523 = vunpack.c.l.s4 1983009808
    %v3524 = vunpack.c.0.s8 %v3523
    %v3525 = vlaneseq
    %v3526 = vshrl.u32 %v3525, 7
    %v3527 = vsub.s32 %v3524, %v3526
    %v3528 = vrot.slane %v3520, %v3527
    %v3530 = vunpack.c.l.s4 1983009808
    %v3531 = vunpack.c.0.s8 %v3530
    %v3532 = vlaneseq
    %v3533 = vshrl.u32 %v3532, 7
    %v3534 = vsub.s32 %v3531, %v3533
    %v3535 = vrot.slane %v3521, %v3534
    %v3536 = vcombine.low %v3411, %v3427
    %v3537 = vcombine.high %v3411, %v3427
    %v3539 = vunpack.c.l.s4 1983009808
    %v3540 = vunpack.c.0.s8 %v3539
    %v3541 = vlaneseq
    %v3542 = vshrl.u32 %v3541, 7
    %v3543 = vsub.s32 %v3540, %v3542
    %v3544 = vrot.slane %v3536, %v3543
    %v3546 = vunpack.c.l.s4 1983009808
    %v3547 = vunpack.c.0.s8 %v3546
    %v3548 = vlaneseq
    %v3549 = vshrl.u32 %v3548, 7
    %v3550 = vsub.s32 %v3547, %v3549
    %v3551 = vrot.slane %v3537, %v3550
    %v3552 = vcombine.low %v3419, %v3435
    %v3553 = vcombine.high %v3419, %v3435
    %v3555 = vunpack.c.l.s4 1983009808
    %v3556 = vunpack.c.0.s8 %v3555
    %v3557 = vlaneseq
    %v3558 = vshrl.u32 %v3557, 7
    %v3559 = vsub.s32 %v3556, %v3558
    %v3560 = vrot.slane %v3552, %v3559
    %v3562 = vunpack.c.l.s4 1983009808
    %v3563 = vunpack.c.0.s8 %v3562
    %v3564 = vlaneseq
    %v3565 = vshrl.u32 %v3564, 7
    %v3566 = vsub.s32 %v3563, %v3565
    %v3567 = vrot.slane %v3553, %v3566
    %v3568 = vcombine.low %v3512, %v3528
    %v3569 = vcombine.high %v3512, %v3528
    %v3571 = vunpack.c.l.s4 1934713408
    %v3572 = vunpack.c.0.s8 %v3571
    %v3573 = vlaneseq
    %v3574 = vshrl.u32 %v3573, 7
    %v3575 = vsub.s32 %v3572, %v3574
    %v3576 = vrot.slane %v3568, %v3575
    %v3578 = vunpack.c.l.s4 1934713408
    %v3579 = vunpack.c.0.s8 %v3578
    %v3580 = vlaneseq
    %v3581 = vshrl.u32 %v3580, 7
    %v3582 = vsub.s32 %v3579, %v3581
    %v3583 = vrot.slane %v3569, %v3582
    %v3584 = vcombine.low %v3519, %v3535
    %v3585 = vcombine.high %v3519, %v3535
    %v3587 = vunpack.c.l.s4 1934713408
    %v3588 = vunpack.c.0.s8 %v3587
    %v3589 = vlaneseq
    %v3590 = vshrl.u32 %v3589, 7
    %v3591 = vsub.s32 %v3588, %v3590
    %v3592 = vrot.slane %v3584, %v3591
    %v3594 = vunpack.c.l.s4 1934713408
    %v3595 = vunpack.c.0.s8 %v3594
    %v3596 = vlaneseq
    %v3597 = vshrl.u32 %v3596, 7
    %v3598 = vsub.s32 %v3595, %v3597
    %v3599 = vrot.slane %v3585, %v3598
    %v3600 = vcombine.low %v3544, %v3560
    %v3601 = vcombine.high %v3544, %v3560
    %v3603 = vunpack.c.l.s4 1934713408
    %v3604 = vunpack.c.0.s8 %v3603
    %v3605 = vlaneseq
    %v3606 = vshrl.u32 %v3605, 7
    %v3607 = vsub.s32 %v3604, %v3606
    %v3608 = vrot.slane %v3600, %v3607
    %v3610 = vunpack.c.l.s4 1934713408
    %v3611 = vunpack.c.0.s8 %v3610
    %v3612 = vlaneseq
    %v3613 = vshrl.u32 %v3612, 7
    %v3614 = vsub.s32 %v3611, %v3613
    %v3615 = vrot.slane %v3601, %v3614
    %v3616 = vcombine.low %v3551, %v3567
    %v3617 = vcombine.high %v3551, %v3567
    %v3619 = vunpack.c.l.s4 1934713408
    %v3620 = vunpack.c.0.s8 %v3619
    %v3621 = vlaneseq
    %v3622 = vshrl.u32 %v3621, 7
    %v3623 = vsub.s32 %v3620, %v3622
    %v3624 = vrot.slane %v3616, %v3623
    %v3626 = vunpack.c.l.s4 1934713408
    %v3627 = vunpack.c.0.s8 %v3626
    %v3628 = vlaneseq
    %v3629 = vshrl.u32 %v3628, 7
    %v3630 = vsub.s32 %v3627, %v3629
    %v3631 = vrot.slane %v3617, %v3630
    %v3632 = vcombine.low %v3576, %v3608
    %v3633 = vcombine.high %v3576, %v3608
    %v3634 = vcombine.low %v3583, %v3615
    %v3635 = vcombine.high %v3583, %v3615
    %v3636 = vcombine.low %v3592, %v3624
    %v3637 = vcombine.high %v3592, %v3624
    %v3638 = vcombine.low %v3599, %v3631
    %v3639 = vcombine.high %v3599, %v3631
    %v3640 = vcombine.low %v3443, %v3459
    %v3641 = vcombine.high %v3443, %v3459
    %v3643 = vunpack.c.l.s4 1983009808
    %v3644 = vunpack.c.0.s8 %v3643
    %v3645 = vlaneseq
    %v3646 = vshrl.u32 %v3645, 7
    %v3647 = vsub.s32 %v3644, %v3646
    %v3648 = vrot.slane %v3640, %v3647
    %v3650 = vunpack.c.l.s4 1983009808
    %v3651 = vunpack.c.0.s8 %v3650
    %v3652 = vlaneseq
    %v3653 = vshrl.u32 %v3652, 7
    %v3654 = vsub.s32 %v3651, %v3653
    %v3655 = vrot.slane %v3641, %v3654
    %v3656 = vcombine.low %v3451, %v3467
    %v3657 = vcombine.high %v3451, %v3467
    %v3659 = vunpack.c.l.s4 1983009808
    %v3660 = vunpack.c.0.s8 %v3659
    %v3661 = vlaneseq
    %v3662 = vshrl.u32 %v3661, 7
    %v3663 = vsub.s32 %v3660, %v3662
    %v3664 = vrot.slane %v3656, %v3663
    %v3666 = vunpack.c.l.s4 1983009808
    %v3667 = vunpack.c.0.s8 %v3666
    %v3668 = vlaneseq
    %v3669 = vshrl.u32 %v3668, 7
    %v3670 = vsub.s32 %v3667, %v3669
    %v3671 = vrot.slane %v3657, %v3670
    %v3672 = vcombine.low %v3475, %v3491
    %v3673 = vcombine.high %v3475, %v3491
    %v3675 = vunpack.c.l.s4 1983009808
    %v3676 = vunpack.c.0.s8 %v3675
    %v3677 = vlaneseq
    %v3678 = vshrl.u32 %v3677, 7
    %v3679 = vsub.s32 %v3676, %v3678
    %v3680 = vrot.slane %v3672, %v3679
    %v3682 = vunpack.c.l.s4 1983009808
    %v3683 = vunpack.c.0.s8 %v3682
    %v3684 = vlaneseq
    %v3685 = vshrl.u32 %v3684, 7
    %v3686 = vsub.s32 %v3683, %v3685
    %v3687 = vrot.slane %v3673, %v3686
    %v3688 = vcombine.low %v3483, %v3499
    %v3689 = vcombine.high %v3483, %v3499
    %v3691 = vunpack.c.l.s4 1983009808
    %v3692 = vunpack.c.0.s8 %v3691
    %v3693 = vlaneseq
    %v3694 = vshrl.u32 %v3693, 7
    %v3695 = vsub.s32 %v3692, %v3694
    %v3696 = vrot.slane %v3688, %v3695
    %v3698 = vunpack.c.l.s4 1983009808
    %v3699 = vunpack.c.0.s8 %v3698
    %v3700 = vlaneseq
    %v3701 = vshrl.u32 %v3700, 7
    %v3702 = vsub.s32 %v3699, %v3701
    %v3703 = vrot.slane %v3689, %v3702
    %v3704 = vcombine.low %v3648, %v3664
    %v3705 = vcombine.high %v3648, %v3664
    %v3707 = vunpack.c.l.s4 1934713408
    %v3708 = vunpack.c.0.s8 %v3707
    %v3709 = vlaneseq
    %v3710 = vshrl.u32 %v3709, 7
    %v3711 = vsub.s32 %v3708, %v3710
    %v3712 = vrot.slane %v3704, %v3711
    %v3714 = vunpack.c.l.s4 1934713408
    %v3715 = vunpack.c.0.s8 %v3714
    %v3716 = vlaneseq
    %v3717 = vshrl.u32 %v3716, 7
    %v3718 = vsub.s32 %v3715, %v3717
    %v3719 = vrot.slane %v3705, %v3718
    %v3720 = vcombine.low %v3655, %v3671
    %v3721 = vcombine.high %v3655, %v3671
    %v3723 = vunpack.c.l.s4 1934713408
    %v3724 = vunpack.c.0.s8 %v3723
    %v3725 = vlaneseq
    %v3726 = vshrl.u32 %v3725, 7
    %v3727 = vsub.s32 %v3724, %v3726
    %v3728 = vrot.slane %v3720, %v3727
    %v3730 = vunpack.c.l.s4 1934713408
    %v3731 = vunpack.c.0.s8 %v3730
    %v3732 = vlaneseq
    %v3733 = vshrl.u32 %v3732, 7
    %v3734 = vsub.s32 %v3731, %v3733
    %v3735 = vrot.slane %v3721, %v3734
    %v3736 = vcombine.low %v3680, %v3696
    %v3737 = vcombine.high %v3680, %v3696
    %v3739 = vunpack.c.l.s4 1934713408
    %v3740 = vunpack.c.0.s8 %v3739
    %v3741 = vlaneseq
    %v3742 = vshrl.u32 %v3741, 7
    %v3743 = vsub.s32 %v3740, %v3742
    %v3744 = vrot.slane %v3736, %v3743
    %v3746 = vunpack.c.l.s4 1934713408
    %v3747 = vunpack.c.0.s8 %v3746
    %v3748 = vlaneseq
    %v3749 = vshrl.u32 %v3748, 7
    %v3750 = vsub.s32 %v3747, %v3749
    %v3751 = vrot.slane %v3737, %v3750
    %v3752 = vcombine.low %v3687, %v3703
    %v3753 = vcombine.high %v3687, %v3703
    %v3755 = vunpack.c.l.s4 1934713408
    %v3756 = vunpack.c.0.s8 %v3755
    %v3757 = vlaneseq
    %v3758 = vshrl.u32 %v3757, 7
    %v3759 = vsub.s32 %v3756, %v3758
    %v3760 = vrot.slane %v3752, %v3759
    %v3762 = vunpack.c.l.s4 1934713408
    %v3763 = vunpack.c.0.s8 %v3762
    %v3764 = vlaneseq
    %v3765 = vshrl.u32 %v3764, 7
    %v3766 = vsub.s32 %v3763, %v3765
    %v3767 = vrot.slane %v3753, %v3766
    %v3768 = vcombine.low %v3712, %v3744
    %v3769 = vcombine.high %v3712, %v3744
    %v3770 = vcombine.low %v3719, %v3751
    %v3771 = vcombine.high %v3719, %v3751
    %v3772 = vcombine.low %v3728, %v3760
    %v3773 = vcombine.high %v3728, %v3760
    %v3774 = vcombine.low %v3735, %v3767
    %v3775 = vcombine.high %v3735, %v3767
    %v3776 = vcombine.low %v3383, %v3399
    %v3777 = vcombine.high %v3383, %v3399
    %v3779 = vunpack.c.l.s4 1983009808
    %v3780 = vunpack.c.0.s8 %v3779
    %v3781 = vlaneseq
    %v3782 = vshrl.u32 %v3781, 7
    %v3783 = vsub.s32 %v3780, %v3782
    %v3784 = vrot.slane %v3776, %v3783
    %v3786 = vunpack.c.l.s4 1983009808
    %v3787 = vunpack.c.0.s8 %v3786
    %v3788 = vlaneseq
    %v3789 = vshrl.u32 %v3788, 7
    %v3790 = vsub.s32 %v3787, %v3789
    %v3791 = vrot.slane %v3777, %v3790
    %v3792 = vcombine.low %v3391, %v3407
    %v3793 = vcombine.high %v3391, %v3407
    %v3795 = vunpack.c.l.s4 1983009808
    %v3796 = vunpack.c.0.s8 %v3795
    %v3797 = vlaneseq
    %v3798 = vshrl.u32 %v3797, 7
    %v3799 = vsub.s32 %v3796, %v3798
    %v3800 = vrot.slane %v3792, %v3799
    %v3802 = vunpack.c.l.s4 1983009808
    %v3803 = vunpack.c.0.s8 %v3802
    %v3804 = vlaneseq
    %v3805 = vshrl.u32 %v3804, 7
    %v3806 = vsub.s32 %v3803, %v3805
    %v3807 = vrot.slane %v3793, %v3806
    %v3808 = vcombine.low %v3415, %v3431
    %v3809 = vcombine.high %v3415, %v3431
    %v3811 = vunpack.c.l.s4 1983009808
    %v3812 = vunpack.c.0.s8 %v3811
    %v3813 = vlaneseq
    %v3814 = vshrl.u32 %v3813, 7
    %v3815 = vsub.s32 %v3812, %v3814
    %v3816 = vrot.slane %v3808, %v3815
    %v3818 = vunpack.c.l.s4 1983009808
    %v3819 = vunpack.c.0.s8 %v3818
    %v3820 = vlaneseq
    %v3821 = vshrl.u32 %v3820, 7
    %v3822 = vsub.s32 %v3819, %v3821
    %v3823 = vrot.slane %v3809, %v3822
    %v3824 = vcombine.low %v3423, %v3439
    %v3825 = vcombine.high %v3423, %v3439
    %v3827 = vunpack.c.l.s4 1983009808
    %v3828 = vunpack.c.0.s8 %v3827
    %v3829 = vlaneseq
    %v3830 = vshrl.u32 %v3829, 7
    %v3831 = vsub.s32 %v3828, %v3830
    %v3832 = vrot.slane %v3824, %v3831
    %v3834 = vunpack.c.l.s4 1983009808
    %v3835 = vunpack.c.0.s8 %v3834
    %v3836 = vlaneseq
    %v3837 = vshrl.u32 %v3836, 7
    %v3838 = vsub.s32 %v3835, %v3837
    %v3839 = vrot.slane %v3825, %v3838
    %v3840 = vcombine.low %v3784, %v3800
    %v3841 = vcombine.high %v3784, %v3800
    %v3843 = vunpack.c.l.s4 1934713408
    %v3844 = vunpack.c.0.s8 %v3843
    %v3845 = vlaneseq
    %v3846 = vshrl.u32 %v3845, 7
    %v3847 = vsub.s32 %v3844, %v3846
    %v3848 = vrot.slane %v3840, %v3847
    %v3850 = vunpack.c.l.s4 1934713408
    %v3851 = vunpack.c.0.s8 %v3850
    %v3852 = vlaneseq
    %v3853 = vshrl.u32 %v3852, 7
    %v3854 = vsub.s32 %v3851, %v3853
    %v3855 = vrot.slane %v3841, %v3854
    %v3856 = vcombine.low %v3791, %v3807
    %v3857 = vcombine.high %v3791, %v3807
    %v3859 = vunpack.c.l.s4 1934713408
    %v3860 = vunpack.c.0.s8 %v3859
    %v3861 = vlaneseq
    %v3862 = vshrl.u32 %v3861, 7
    %v3863 = vsub.s32 %v3860, %v3862
    %v3864 = vrot.slane %v3856, %v3863
    %v3866 = vunpack.c.l.s4 1934713408
    %v3867 = vunpack.c.0.s8 %v3866
    %v3868 = vlaneseq
    %v3869 = vshrl.u32 %v3868, 7
    %v3870 = vsub.s32 %v3867, %v3869
    %v3871 = vrot.slane %v3857, %v3870
    %v3872 = vcombine.low %v3816, %v3832
    %v3873 = vcombine.high %v3816, %v3832
    %v3875 = vunpack.c.l.s4 1934713408
    %v3876 = vunpack.c.0.s8 %v3875
    %v3877 = vlaneseq
    %v3878 = vshrl.u32 %v3877, 7
    %v3879 = vsub.s32 %v3876, %v3878
    %v3880 = vrot.slane %v3872, %v3879
    %v3882 = vunpack.c.l.s4 1934713408
    %v3883 = vunpack.c.0.s8 %v3882
    %v3884 = vlaneseq
    %v3885 = vshrl.u32 %v3884, 7
    %v3886 = vsub.s32 %v3883, %v3885
    %v3887 = vrot.slane %v3873, %v3886
    %v3888 = vcombine.low %v3823, %v3839
    %v3889 = vcombine.high %v3823, %v3839
    %v3891 = vunpack.c.l.s4 1934713408
    %v3892 = vunpack.c.0.s8 %v3891
    %v3893 = vlaneseq
    %v3894 = vshrl.u32 %v3893, 7
    %v3895 = vsub.s32 %v3892, %v3894
    %v3896 = vrot.slane %v3888, %v3895
    %v3898 = vunpack.c.l.s4 1934713408
    %v3899 = vunpack.c.0.s8 %v3898
    %v3900 = vlaneseq
    %v3901 = vshrl.u32 %v3900, 7
    %v3902 = vsub.s32 %v3899, %v3901
    %v3903 = vrot.slane %v3889, %v3902
    %v3904 = vcombine.low %v3848, %v3880
    %v3905 = vcombine.high %v3848, %v3880
    %v3906 = vcombine.low %v3855, %v3887
    %v3907 = vcombine.high %v3855, %v3887
    %v3908 = vcombine.low %v3864, %v3896
    %v3909 = vcombine.high %v3864, %v3896
    %v3910 = vcombine.low %v3871, %v3903
    %v3911 = vcombine.high %v3871, %v3903
    %v3912 = vcombine.low %v3447, %v3463
    %v3913 = vcombine.high %v3447, %v3463
    %v3915 = vunpack.c.l.s4 1983009808
    %v3916 = vunpack.c.0.s8 %v3915
    %v3917 = vlaneseq
    %v3918 = vshrl.u32 %v3917, 7
    %v3919 = vsub.s32 %v3916, %v3918
    %v3920 = vrot.slane %v3912, %v3919
    %v3922 = vunpack.c.l.s4 1983009808
    %v3923 = vunpack.c.0.s8 %v3922
    %v3924 = vlaneseq
    %v3925 = vshrl.u32 %v3924, 7
    %v3926 = vsub.s32 %v3923, %v3925
    %v3927 = vrot.slane %v3913, %v3926
    %v3928 = vcombine.low %v3455, %v3471
    %v3929 = vcombine.high %v3455, %v3471
    %v3931 = vunpack.c.l.s4 1983009808
    %v3932 = vunpack.c.0.s8 %v3931
    %v3933 = vlaneseq
    %v3934 = vshrl.u32 %v3933, 7
    %v3935 = vsub.s32 %v3932, %v3934
    %v3936 = vrot.slane %v3928, %v3935
    %v3938 = vunpack.c.l.s4 1983009808
    %v3939 = vunpack.c.0.s8 %v3938
    %v3940 = vlaneseq
    %v3941 = vshrl.u32 %v3940, 7
    %v3942 = vsub.s32 %v3939, %v3941
    %v3943 = vrot.slane %v3929, %v3942
    %v3944 = vcombine.low %v3479, %v3495
    %v3945 = vcombine.high %v3479, %v3495
    %v3947 = vunpack.c.l.s4 1983009808
    %v3948 = vunpack.c.0.s8 %v3947
    %v3949 = vlaneseq
    %v3950 = vshrl.u32 %v3949, 7
    %v3951 = vsub.s32 %v3948, %v3950
    %v3952 = vrot.slane %v3944, %v3951
    %v3954 = vunpack.c.l.s4 1983009808
    %v3955 = vunpack.c.0.s8 %v3954
    %v3956 = vlaneseq
    %v3957 = vshrl.u32 %v3956, 7
    %v3958 = vsub.s32 %v3955, %v3957
    %v3959 = vrot.slane %v3945, %v3958
    %v3960 = vcombine.low %v3487, %v3503
    %v3961 = vcombine.high %v3487, %v3503
    %v3963 = vunpack.c.l.s4 1983009808
    %v3964 = vunpack.c.0.s8 %v3963
    %v3965 = vlaneseq
    %v3966 = vshrl.u32 %v3965, 7
    %v3967 = vsub.s32 %v3964, %v3966
    %v3968 = vrot.slane %v3960, %v3967
    %v3970 = vunpack.c.l.s4 1983009808
    %v3971 = vunpack.c.0.s8 %v3970
    %v3972 = vlaneseq
    %v3973 = vshrl.u32 %v3972, 7
    %v3974 = vsub.s32 %v3971, %v3973
    %v3975 = vrot.slane %v3961, %v3974
    %v3976 = vcombine.low %v3920, %v3936
    %v3977 = vcombine.high %v3920, %v3936
    %v3979 = vunpack.c.l.s4 1934713408
    %v3980 = vunpack.c.0.s8 %v3979
    %v3981 = vlaneseq
    %v3982 = vshrl.u32 %v3981, 7
    %v3983 = vsub.s32 %v3980, %v3982
    %v3984 = vrot.slane %v3976, %v3983
    %v3986 = vunpack.c.l.s4 1934713408
    %v3987 = vunpack.c.0.s8 %v3986
    %v3988 = vlaneseq
    %v3989 = vshrl.u32 %v3988, 7
    %v3990 = vsub.s32 %v3987, %v3989
    %v3991 = vrot.slane %v3977, %v3990
    %v3992 = vcombine.low %v3927, %v3943
    %v3993 = vcombine.high %v3927, %v3943
    %v3995 = vunpack.c.l.s4 1934713408
    %v3996 = vunpack.c.0.s8 %v3995
    %v3997 = vlaneseq
    %v3998 = vshrl.u32 %v3997, 7
    %v3999 = vsub.s32 %v3996, %v3998
    %v4000 = vrot.slane %v3992, %v3999
    %v4002 = vunpack.c.l.s4 1934713408
    %v4003 = vunpack.c.0.s8 %v4002
    %v4004 = vlaneseq
    %v4005 = vshrl.u32 %v4004, 7
    %v4006 = vsub.s32 %v4003, %v4005
    %v4007 = vrot.slane %v3993, %v4006
    %v4008 = vcombine.low %v3952, %v3968
    %v4009 = vcombine.high %v3952, %v3968
    %v4011 = vunpack.c.l.s4 1934713408
    %v4012 = vunpack.c.0.s8 %v4011
    %v4013 = vlaneseq
    %v4014 = vshrl.u32 %v4013, 7
    %v4015 = vsub.s32 %v4012, %v4014
    %v4016 = vrot.slane %v4008, %v4015
    %v4018 = vunpack.c.l.s4 1934713408
    %v4019 = vunpack.c.0.s8 %v4018
    %v4020 = vlaneseq
    %v4021 = vshrl.u32 %v4020, 7
    %v4022 = vsub.s32 %v4019, %v4021
    %v4023 = vrot.slane %v4009, %v4022
    %v4024 = vcombine.low %v3959, %v3975
    %v4025 = vcombine.high %v3959, %v3975
    %v4027 = vunpack.c.l.s4 1934713408
    %v4028 = vunpack.c.0.s8 %v4027
    %v4029 = vlaneseq
    %v4030 = vshrl.u32 %v4029, 7
    %v4031 = vsub.s32 %v4028, %v4030
    %v4032 = vrot.slane %v4024, %v4031
    %v4034 = vunpack.c.l.s4 1934713408
    %v4035 = vunpack.c.0.s8 %v4034
    %v4036 = vlaneseq
    %v4037 = vshrl.u32 %v4036, 7
    %v4038 = vsub.s32 %v4035, %v4037
    %v4039 = vrot.slane %v4025, %v4038
    %v4040 = vcombine.low %v3984, %v4016
    %v4041 = vcombine.high %v3984, %v4016
    %v4042 = vcombine.low %v3991, %v4023
    %v4043 = vcombine.high %v3991, %v4023
    %v4044 = vcombine.low %v4000, %v4032
    %v4045 = vcombine.high %v4000, %v4032
    %v4046 = vcombine.low %v4007, %v4039
    %v4047 = vcombine.high %v4007, %v4039
    %4050 = vrot.lane.b32.xlu0 %v3633, 2
    %v4051 = vpop.permute.xlu0 %4050
    %4052 = vrot.lane.b32.xlu0 %v3769, 2
    %v4053 = vpop.permute.xlu0 %4052
    %4058 = vrot.lane.b32.xlu0 %v3634, 4
    %v4059 = vpop.permute.xlu0 %4058
    %4060 = vrot.lane.b32.xlu0 %v3770, 4
    %v4061 = vpop.permute.xlu0 %4060
    %4066 = vrot.lane.b32.xlu0 %v3635, 6
    %v4067 = vpop.permute.xlu0 %4066
    %4068 = vrot.lane.b32.xlu0 %v3771, 6
    %v4069 = vpop.permute.xlu0 %4068
    %4074 = vrot.lane.b32.xlu0 %v3636, 8
    %v4075 = vpop.permute.xlu0 %4074
    %4076 = vrot.lane.b32.xlu0 %v3772, 8
    %v4077 = vpop.permute.xlu0 %4076
    %4082 = vrot.lane.b32.xlu0 %v3637, 10
    %v4083 = vpop.permute.xlu0 %4082
    %4084 = vrot.lane.b32.xlu0 %v3773, 10
    %v4085 = vpop.permute.xlu0 %4084
    %4090 = vrot.lane.b32.xlu0 %v3638, 12
    %v4091 = vpop.permute.xlu0 %4090
    %4092 = vrot.lane.b32.xlu0 %v3774, 12
    %v4093 = vpop.permute.xlu0 %4092
    %4098 = vrot.lane.b32.xlu0 %v3639, 14
    %v4099 = vpop.permute.xlu0 %4098
    %4100 = vrot.lane.b32.xlu0 %v3775, 14
    %v4101 = vpop.permute.xlu0 %4100
    %4106 = vrot.lane.b32.xlu0 %v3904, 16
    %v4107 = vpop.permute.xlu0 %4106
    %4108 = vrot.lane.b32.xlu0 %v4040, 16
    %v4109 = vpop.permute.xlu0 %4108
    %4114 = vrot.lane.b32.xlu0 %v3905, 18
    %v4115 = vpop.permute.xlu0 %4114
    %4116 = vrot.lane.b32.xlu0 %v4041, 18
    %v4117 = vpop.permute.xlu0 %4116
    %4122 = vrot.lane.b32.xlu0 %v3906, 20
    %v4123 = vpop.permute.xlu0 %4122
    %4124 = vrot.lane.b32.xlu0 %v4042, 20
    %v4125 = vpop.permute.xlu0 %4124
    %4130 = vrot.lane.b32.xlu0 %v3907, 22
    %v4131 = vpop.permute.xlu0 %4130
    %4132 = vrot.lane.b32.xlu0 %v4043, 22
    %v4133 = vpop.permute.xlu0 %4132
    %4138 = vrot.lane.b32.xlu0 %v3908, 24
    %v4139 = vpop.permute.xlu0 %4138
    %4140 = vrot.lane.b32.xlu0 %v4044, 24
    %v4141 = vpop.permute.xlu0 %4140
    %4146 = vrot.lane.b32.xlu0 %v3909, 26
    %v4147 = vpop.permute.xlu0 %4146
    %4148 = vrot.lane.b32.xlu0 %v4045, 26
    %v4149 = vpop.permute.xlu0 %4148
    %4154 = vrot.lane.b32.xlu0 %v3910, 28
    %v4155 = vpop.permute.xlu0 %4154
    %4156 = vrot.lane.b32.xlu0 %v4046, 28
    %v4157 = vpop.permute.xlu0 %4156
    %4162 = vrot.lane.b32.xlu0 %v3911, 30
    %v4163 = vpop.permute.xlu0 %4162
    %4164 = vrot.lane.b32.xlu0 %v4047, 30
    %v4165 = vpop.permute.xlu0 %4164
    %v4168 = vsel %vm865, %v3632, %v4051
    %v4169 = vsel %vm865, %v3768, %v4053
    %v4170 = vsel %vm868, %v4168, %v4059
    %v4171 = vsel %vm868, %v4169, %v4061
    %v4172 = vsel %vm871, %v4170, %v4067
    %v4173 = vsel %vm871, %v4171, %v4069
    %v4174 = vsel %vm874, %v4172, %v4075
    %v4175 = vsel %vm874, %v4173, %v4077
    %v4176 = vsel %vm877, %v4174, %v4083
    %v4177 = vsel %vm877, %v4175, %v4085
    %v4178 = vsel %vm880, %v4176, %v4091
    %v4179 = vsel %vm880, %v4177, %v4093
    %v4180 = vsel %vm883, %v4178, %v4099
    %v4181 = vsel %vm883, %v4179, %v4101
    %v4182 = vsel %vm886, %v4180, %v4107
    %v4183 = vsel %vm886, %v4181, %v4109
    %v4184 = vsel %vm889, %v4182, %v4115
    %v4185 = vsel %vm889, %v4183, %v4117
    %v4186 = vsel %vm892, %v4184, %v4123
    %v4187 = vsel %vm892, %v4185, %v4125
    %v4188 = vsel %vm895, %v4186, %v4131
    %v4189 = vsel %vm895, %v4187, %v4133
    %v4190 = vsel %vm898, %v4188, %v4139
    %v4191 = vsel %vm898, %v4189, %v4141
    %v4192 = vsel %vm901, %v4190, %v4147
    %v4193 = vsel %vm901, %v4191, %v4149
    %v4194 = vsel %vm904, %v4192, %v4155
    %v4195 = vsel %vm904, %v4193, %v4157
    %v4196 = vsel %vm907, %v4194, %v4163
    %v4197 = vsel %vm907, %v4195, %v4165
    %s4199 = sor.u32 256, 80
    %4200 = vbcast.lane.b32.xlu0 %v28, %s4199
    %v4201 = vpop.permute.xlu0 %4200
    %s4203 = sor.u32 256, 88
    %4204 = vbcast.lane.b32.xlu0 %v28, %s4203
    %v4205 = vpop.permute.xlu0 %4204
    %s4207 = sor.u32 256, 80
    %4208 = vbcast.lane.b32.xlu0 %v39, %s4207
    %v4209 = vpop.permute.xlu0 %4208
    %s4211 = sor.u32 256, 88
    %4212 = vbcast.lane.b32.xlu0 %v39, %s4211
    %v4213 = vpop.permute.xlu0 %4212
    %s4215 = sor.u32 256, 80
    %4216 = vbcast.lane.b32.xlu0 %v50, %s4215
    %v4217 = vpop.permute.xlu0 %4216
    %s4219 = sor.u32 256, 88
    %4220 = vbcast.lane.b32.xlu0 %v50, %s4219
    %v4221 = vpop.permute.xlu0 %4220
    %s4223 = sor.u32 256, 80
    %4224 = vbcast.lane.b32.xlu0 %v61, %s4223
    %v4225 = vpop.permute.xlu0 %4224
    %s4227 = sor.u32 256, 88
    %4228 = vbcast.lane.b32.xlu0 %v61, %s4227
    %v4229 = vpop.permute.xlu0 %4228
    %s4231 = sor.u32 256, 80
    %4232 = vbcast.lane.b32.xlu0 %v72, %s4231
    %v4233 = vpop.permute.xlu0 %4232
    %s4235 = sor.u32 256, 88
    %4236 = vbcast.lane.b32.xlu0 %v72, %s4235
    %v4237 = vpop.permute.xlu0 %4236
    %s4239 = sor.u32 256, 80
    %4240 = vbcast.lane.b32.xlu0 %v83, %s4239
    %v4241 = vpop.permute.xlu0 %4240
    %s4243 = sor.u32 256, 88
    %4244 = vbcast.lane.b32.xlu0 %v83, %s4243
    %v4245 = vpop.permute.xlu0 %4244
    %s4247 = sor.u32 256, 80
    %4248 = vbcast.lane.b32.xlu0 %v94, %s4247
    %v4249 = vpop.permute.xlu0 %4248
    %s4251 = sor.u32 256, 88
    %4252 = vbcast.lane.b32.xlu0 %v94, %s4251
    %v4253 = vpop.permute.xlu0 %4252
    %s4255 = sor.u32 256, 80
    %4256 = vbcast.lane.b32.xlu0 %v105, %s4255
    %v4257 = vpop.permute.xlu0 %4256
    %s4259 = sor.u32 256, 88
    %4260 = vbcast.lane.b32.xlu0 %v105, %s4259
    %v4261 = vpop.permute.xlu0 %4260
    %s4263 = sor.u32 256, 80
    %4264 = vbcast.lane.b32.xlu0 %v116, %s4263
    %v4265 = vpop.permute.xlu0 %4264
    %s4267 = sor.u32 256, 88
    %4268 = vbcast.lane.b32.xlu0 %v116, %s4267
    %v4269 = vpop.permute.xlu0 %4268
    %s4271 = sor.u32 256, 80
    %4272 = vbcast.lane.b32.xlu0 %v127, %s4271
    %v4273 = vpop.permute.xlu0 %4272
    %s4275 = sor.u32 256, 88
    %4276 = vbcast.lane.b32.xlu0 %v127, %s4275
    %v4277 = vpop.permute.xlu0 %4276
    %s4279 = sor.u32 256, 80
    %4280 = vbcast.lane.b32.xlu0 %v138, %s4279
    %v4281 = vpop.permute.xlu0 %4280
    %s4283 = sor.u32 256, 88
    %4284 = vbcast.lane.b32.xlu0 %v138, %s4283
    %v4285 = vpop.permute.xlu0 %4284
    %s4287 = sor.u32 256, 80
    %4288 = vbcast.lane.b32.xlu0 %v149, %s4287
    %v4289 = vpop.permute.xlu0 %4288
    %s4291 = sor.u32 256, 88
    %4292 = vbcast.lane.b32.xlu0 %v149, %s4291
    %v4293 = vpop.permute.xlu0 %4292
    %s4295 = sor.u32 256, 80
    %4296 = vbcast.lane.b32.xlu0 %v160, %s4295
    %v4297 = vpop.permute.xlu0 %4296
    %s4299 = sor.u32 256, 88
    %4300 = vbcast.lane.b32.xlu0 %v160, %s4299
    %v4301 = vpop.permute.xlu0 %4300
    %s4303 = sor.u32 256, 80
    %4304 = vbcast.lane.b32.xlu0 %v171, %s4303
    %v4305 = vpop.permute.xlu0 %4304
    %s4307 = sor.u32 256, 88
    %4308 = vbcast.lane.b32.xlu0 %v171, %s4307
    %v4309 = vpop.permute.xlu0 %4308
    %s4311 = sor.u32 256, 80
    %4312 = vbcast.lane.b32.xlu0 %v182, %s4311
    %v4313 = vpop.permute.xlu0 %4312
    %s4315 = sor.u32 256, 88
    %4316 = vbcast.lane.b32.xlu0 %v182, %s4315
    %v4317 = vpop.permute.xlu0 %4316
    %s4319 = sor.u32 256, 80
    %4320 = vbcast.lane.b32.xlu0 %v193, %s4319
    %v4321 = vpop.permute.xlu0 %4320
    %s4323 = sor.u32 256, 88
    %4324 = vbcast.lane.b32.xlu0 %v193, %s4323
    %v4325 = vpop.permute.xlu0 %4324
    %v4326 = vcombine.low %v4201, %v4217
    %v4327 = vcombine.high %v4201, %v4217
    %v4329 = vunpack.c.l.s4 1983009808
    %v4330 = vunpack.c.0.s8 %v4329
    %v4331 = vlaneseq
    %v4332 = vshrl.u32 %v4331, 7
    %v4333 = vsub.s32 %v4330, %v4332
    %v4334 = vrot.slane %v4326, %v4333
    %v4336 = vunpack.c.l.s4 1983009808
    %v4337 = vunpack.c.0.s8 %v4336
    %v4338 = vlaneseq
    %v4339 = vshrl.u32 %v4338, 7
    %v4340 = vsub.s32 %v4337, %v4339
    %v4341 = vrot.slane %v4327, %v4340
    %v4342 = vcombine.low %v4209, %v4225
    %v4343 = vcombine.high %v4209, %v4225
    %v4345 = vunpack.c.l.s4 1983009808
    %v4346 = vunpack.c.0.s8 %v4345
    %v4347 = vlaneseq
    %v4348 = vshrl.u32 %v4347, 7
    %v4349 = vsub.s32 %v4346, %v4348
    %v4350 = vrot.slane %v4342, %v4349
    %v4352 = vunpack.c.l.s4 1983009808
    %v4353 = vunpack.c.0.s8 %v4352
    %v4354 = vlaneseq
    %v4355 = vshrl.u32 %v4354, 7
    %v4356 = vsub.s32 %v4353, %v4355
    %v4357 = vrot.slane %v4343, %v4356
    %v4358 = vcombine.low %v4233, %v4249
    %v4359 = vcombine.high %v4233, %v4249
    %v4361 = vunpack.c.l.s4 1983009808
    %v4362 = vunpack.c.0.s8 %v4361
    %v4363 = vlaneseq
    %v4364 = vshrl.u32 %v4363, 7
    %v4365 = vsub.s32 %v4362, %v4364
    %v4366 = vrot.slane %v4358, %v4365
    %v4368 = vunpack.c.l.s4 1983009808
    %v4369 = vunpack.c.0.s8 %v4368
    %v4370 = vlaneseq
    %v4371 = vshrl.u32 %v4370, 7
    %v4372 = vsub.s32 %v4369, %v4371
    %v4373 = vrot.slane %v4359, %v4372
    %v4374 = vcombine.low %v4241, %v4257
    %v4375 = vcombine.high %v4241, %v4257
    %v4377 = vunpack.c.l.s4 1983009808
    %v4378 = vunpack.c.0.s8 %v4377
    %v4379 = vlaneseq
    %v4380 = vshrl.u32 %v4379, 7
    %v4381 = vsub.s32 %v4378, %v4380
    %v4382 = vrot.slane %v4374, %v4381
    %v4384 = vunpack.c.l.s4 1983009808
    %v4385 = vunpack.c.0.s8 %v4384
    %v4386 = vlaneseq
    %v4387 = vshrl.u32 %v4386, 7
    %v4388 = vsub.s32 %v4385, %v4387
    %v4389 = vrot.slane %v4375, %v4388
    %v4390 = vcombine.low %v4334, %v4350
    %v4391 = vcombine.high %v4334, %v4350
    %v4393 = vunpack.c.l.s4 1934713408
    %v4394 = vunpack.c.0.s8 %v4393
    %v4395 = vlaneseq
    %v4396 = vshrl.u32 %v4395, 7
    %v4397 = vsub.s32 %v4394, %v4396
    %v4398 = vrot.slane %v4390, %v4397
    %v4400 = vunpack.c.l.s4 1934713408
    %v4401 = vunpack.c.0.s8 %v4400
    %v4402 = vlaneseq
    %v4403 = vshrl.u32 %v4402, 7
    %v4404 = vsub.s32 %v4401, %v4403
    %v4405 = vrot.slane %v4391, %v4404
    %v4406 = vcombine.low %v4341, %v4357
    %v4407 = vcombine.high %v4341, %v4357
    %v4409 = vunpack.c.l.s4 1934713408
    %v4410 = vunpack.c.0.s8 %v4409
    %v4411 = vlaneseq
    %v4412 = vshrl.u32 %v4411, 7
    %v4413 = vsub.s32 %v4410, %v4412
    %v4414 = vrot.slane %v4406, %v4413
    %v4416 = vunpack.c.l.s4 1934713408
    %v4417 = vunpack.c.0.s8 %v4416
    %v4418 = vlaneseq
    %v4419 = vshrl.u32 %v4418, 7
    %v4420 = vsub.s32 %v4417, %v4419
    %v4421 = vrot.slane %v4407, %v4420
    %v4422 = vcombine.low %v4366, %v4382
    %v4423 = vcombine.high %v4366, %v4382
    %v4425 = vunpack.c.l.s4 1934713408
    %v4426 = vunpack.c.0.s8 %v4425
    %v4427 = vlaneseq
    %v4428 = vshrl.u32 %v4427, 7
    %v4429 = vsub.s32 %v4426, %v4428
    %v4430 = vrot.slane %v4422, %v4429
    %v4432 = vunpack.c.l.s4 1934713408
    %v4433 = vunpack.c.0.s8 %v4432
    %v4434 = vlaneseq
    %v4435 = vshrl.u32 %v4434, 7
    %v4436 = vsub.s32 %v4433, %v4435
    %v4437 = vrot.slane %v4423, %v4436
    %v4438 = vcombine.low %v4373, %v4389
    %v4439 = vcombine.high %v4373, %v4389
    %v4441 = vunpack.c.l.s4 1934713408
    %v4442 = vunpack.c.0.s8 %v4441
    %v4443 = vlaneseq
    %v4444 = vshrl.u32 %v4443, 7
    %v4445 = vsub.s32 %v4442, %v4444
    %v4446 = vrot.slane %v4438, %v4445
    %v4448 = vunpack.c.l.s4 1934713408
    %v4449 = vunpack.c.0.s8 %v4448
    %v4450 = vlaneseq
    %v4451 = vshrl.u32 %v4450, 7
    %v4452 = vsub.s32 %v4449, %v4451
    %v4453 = vrot.slane %v4439, %v4452
    %v4454 = vcombine.low %v4398, %v4430
    %v4455 = vcombine.high %v4398, %v4430
    %v4456 = vcombine.low %v4405, %v4437
    %v4457 = vcombine.high %v4405, %v4437
    %v4458 = vcombine.low %v4414, %v4446
    %v4459 = vcombine.high %v4414, %v4446
    %v4460 = vcombine.low %v4421, %v4453
    %v4461 = vcombine.high %v4421, %v4453
    %v4462 = vcombine.low %v4265, %v4281
    %v4463 = vcombine.high %v4265, %v4281
    %v4465 = vunpack.c.l.s4 1983009808
    %v4466 = vunpack.c.0.s8 %v4465
    %v4467 = vlaneseq
    %v4468 = vshrl.u32 %v4467, 7
    %v4469 = vsub.s32 %v4466, %v4468
    %v4470 = vrot.slane %v4462, %v4469
    %v4472 = vunpack.c.l.s4 1983009808
    %v4473 = vunpack.c.0.s8 %v4472
    %v4474 = vlaneseq
    %v4475 = vshrl.u32 %v4474, 7
    %v4476 = vsub.s32 %v4473, %v4475
    %v4477 = vrot.slane %v4463, %v4476
    %v4478 = vcombine.low %v4273, %v4289
    %v4479 = vcombine.high %v4273, %v4289
    %v4481 = vunpack.c.l.s4 1983009808
    %v4482 = vunpack.c.0.s8 %v4481
    %v4483 = vlaneseq
    %v4484 = vshrl.u32 %v4483, 7
    %v4485 = vsub.s32 %v4482, %v4484
    %v4486 = vrot.slane %v4478, %v4485
    %v4488 = vunpack.c.l.s4 1983009808
    %v4489 = vunpack.c.0.s8 %v4488
    %v4490 = vlaneseq
    %v4491 = vshrl.u32 %v4490, 7
    %v4492 = vsub.s32 %v4489, %v4491
    %v4493 = vrot.slane %v4479, %v4492
    %v4494 = vcombine.low %v4297, %v4313
    %v4495 = vcombine.high %v4297, %v4313
    %v4497 = vunpack.c.l.s4 1983009808
    %v4498 = vunpack.c.0.s8 %v4497
    %v4499 = vlaneseq
    %v4500 = vshrl.u32 %v4499, 7
    %v4501 = vsub.s32 %v4498, %v4500
    %v4502 = vrot.slane %v4494, %v4501
    %v4504 = vunpack.c.l.s4 1983009808
    %v4505 = vunpack.c.0.s8 %v4504
    %v4506 = vlaneseq
    %v4507 = vshrl.u32 %v4506, 7
    %v4508 = vsub.s32 %v4505, %v4507
    %v4509 = vrot.slane %v4495, %v4508
    %v4510 = vcombine.low %v4305, %v4321
    %v4511 = vcombine.high %v4305, %v4321
    %v4513 = vunpack.c.l.s4 1983009808
    %v4514 = vunpack.c.0.s8 %v4513
    %v4515 = vlaneseq
    %v4516 = vshrl.u32 %v4515, 7
    %v4517 = vsub.s32 %v4514, %v4516
    %v4518 = vrot.slane %v4510, %v4517
    %v4520 = vunpack.c.l.s4 1983009808
    %v4521 = vunpack.c.0.s8 %v4520
    %v4522 = vlaneseq
    %v4523 = vshrl.u32 %v4522, 7
    %v4524 = vsub.s32 %v4521, %v4523
    %v4525 = vrot.slane %v4511, %v4524
    %v4526 = vcombine.low %v4470, %v4486
    %v4527 = vcombine.high %v4470, %v4486
    %v4529 = vunpack.c.l.s4 1934713408
    %v4530 = vunpack.c.0.s8 %v4529
    %v4531 = vlaneseq
    %v4532 = vshrl.u32 %v4531, 7
    %v4533 = vsub.s32 %v4530, %v4532
    %v4534 = vrot.slane %v4526, %v4533
    %v4536 = vunpack.c.l.s4 1934713408
    %v4537 = vunpack.c.0.s8 %v4536
    %v4538 = vlaneseq
    %v4539 = vshrl.u32 %v4538, 7
    %v4540 = vsub.s32 %v4537, %v4539
    %v4541 = vrot.slane %v4527, %v4540
    %v4542 = vcombine.low %v4477, %v4493
    %v4543 = vcombine.high %v4477, %v4493
    %v4545 = vunpack.c.l.s4 1934713408
    %v4546 = vunpack.c.0.s8 %v4545
    %v4547 = vlaneseq
    %v4548 = vshrl.u32 %v4547, 7
    %v4549 = vsub.s32 %v4546, %v4548
    %v4550 = vrot.slane %v4542, %v4549
    %v4552 = vunpack.c.l.s4 1934713408
    %v4553 = vunpack.c.0.s8 %v4552
    %v4554 = vlaneseq
    %v4555 = vshrl.u32 %v4554, 7
    %v4556 = vsub.s32 %v4553, %v4555
    %v4557 = vrot.slane %v4543, %v4556
    %v4558 = vcombine.low %v4502, %v4518
    %v4559 = vcombine.high %v4502, %v4518
    %v4561 = vunpack.c.l.s4 1934713408
    %v4562 = vunpack.c.0.s8 %v4561
    %v4563 = vlaneseq
    %v4564 = vshrl.u32 %v4563, 7
    %v4565 = vsub.s32 %v4562, %v4564
    %v4566 = vrot.slane %v4558, %v4565
    %v4568 = vunpack.c.l.s4 1934713408
    %v4569 = vunpack.c.0.s8 %v4568
    %v4570 = vlaneseq
    %v4571 = vshrl.u32 %v4570, 7
    %v4572 = vsub.s32 %v4569, %v4571
    %v4573 = vrot.slane %v4559, %v4572
    %v4574 = vcombine.low %v4509, %v4525
    %v4575 = vcombine.high %v4509, %v4525
    %v4577 = vunpack.c.l.s4 1934713408
    %v4578 = vunpack.c.0.s8 %v4577
    %v4579 = vlaneseq
    %v4580 = vshrl.u32 %v4579, 7
    %v4581 = vsub.s32 %v4578, %v4580
    %v4582 = vrot.slane %v4574, %v4581
    %v4584 = vunpack.c.l.s4 1934713408
    %v4585 = vunpack.c.0.s8 %v4584
    %v4586 = vlaneseq
    %v4587 = vshrl.u32 %v4586, 7
    %v4588 = vsub.s32 %v4585, %v4587
    %v4589 = vrot.slane %v4575, %v4588
    %v4590 = vcombine.low %v4534, %v4566
    %v4591 = vcombine.high %v4534, %v4566
    %v4592 = vcombine.low %v4541, %v4573
    %v4593 = vcombine.high %v4541, %v4573
    %v4594 = vcombine.low %v4550, %v4582
    %v4595 = vcombine.high %v4550, %v4582
    %v4596 = vcombine.low %v4557, %v4589
    %v4597 = vcombine.high %v4557, %v4589
    %v4598 = vcombine.low %v4205, %v4221
    %v4599 = vcombine.high %v4205, %v4221
    %v4601 = vunpack.c.l.s4 1983009808
    %v4602 = vunpack.c.0.s8 %v4601
    %v4603 = vlaneseq
    %v4604 = vshrl.u32 %v4603, 7
    %v4605 = vsub.s32 %v4602, %v4604
    %v4606 = vrot.slane %v4598, %v4605
    %v4608 = vunpack.c.l.s4 1983009808
    %v4609 = vunpack.c.0.s8 %v4608
    %v4610 = vlaneseq
    %v4611 = vshrl.u32 %v4610, 7
    %v4612 = vsub.s32 %v4609, %v4611
    %v4613 = vrot.slane %v4599, %v4612
    %v4614 = vcombine.low %v4213, %v4229
    %v4615 = vcombine.high %v4213, %v4229
    %v4617 = vunpack.c.l.s4 1983009808
    %v4618 = vunpack.c.0.s8 %v4617
    %v4619 = vlaneseq
    %v4620 = vshrl.u32 %v4619, 7
    %v4621 = vsub.s32 %v4618, %v4620
    %v4622 = vrot.slane %v4614, %v4621
    %v4624 = vunpack.c.l.s4 1983009808
    %v4625 = vunpack.c.0.s8 %v4624
    %v4626 = vlaneseq
    %v4627 = vshrl.u32 %v4626, 7
    %v4628 = vsub.s32 %v4625, %v4627
    %v4629 = vrot.slane %v4615, %v4628
    %v4630 = vcombine.low %v4237, %v4253
    %v4631 = vcombine.high %v4237, %v4253
    %v4633 = vunpack.c.l.s4 1983009808
    %v4634 = vunpack.c.0.s8 %v4633
    %v4635 = vlaneseq
    %v4636 = vshrl.u32 %v4635, 7
    %v4637 = vsub.s32 %v4634, %v4636
    %v4638 = vrot.slane %v4630, %v4637
    %v4640 = vunpack.c.l.s4 1983009808
    %v4641 = vunpack.c.0.s8 %v4640
    %v4642 = vlaneseq
    %v4643 = vshrl.u32 %v4642, 7
    %v4644 = vsub.s32 %v4641, %v4643
    %v4645 = vrot.slane %v4631, %v4644
    %v4646 = vcombine.low %v4245, %v4261
    %v4647 = vcombine.high %v4245, %v4261
    %v4649 = vunpack.c.l.s4 1983009808
    %v4650 = vunpack.c.0.s8 %v4649
    %v4651 = vlaneseq
    %v4652 = vshrl.u32 %v4651, 7
    %v4653 = vsub.s32 %v4650, %v4652
    %v4654 = vrot.slane %v4646, %v4653
    %v4656 = vunpack.c.l.s4 1983009808
    %v4657 = vunpack.c.0.s8 %v4656
    %v4658 = vlaneseq
    %v4659 = vshrl.u32 %v4658, 7
    %v4660 = vsub.s32 %v4657, %v4659
    %v4661 = vrot.slane %v4647, %v4660
    %v4662 = vcombine.low %v4606, %v4622
    %v4663 = vcombine.high %v4606, %v4622
    %v4665 = vunpack.c.l.s4 1934713408
    %v4666 = vunpack.c.0.s8 %v4665
    %v4667 = vlaneseq
    %v4668 = vshrl.u32 %v4667, 7
    %v4669 = vsub.s32 %v4666, %v4668
    %v4670 = vrot.slane %v4662, %v4669
    %v4672 = vunpack.c.l.s4 1934713408
    %v4673 = vunpack.c.0.s8 %v4672
    %v4674 = vlaneseq
    %v4675 = vshrl.u32 %v4674, 7
    %v4676 = vsub.s32 %v4673, %v4675
    %v4677 = vrot.slane %v4663, %v4676
    %v4678 = vcombine.low %v4613, %v4629
    %v4679 = vcombine.high %v4613, %v4629
    %v4681 = vunpack.c.l.s4 1934713408
    %v4682 = vunpack.c.0.s8 %v4681
    %v4683 = vlaneseq
    %v4684 = vshrl.u32 %v4683, 7
    %v4685 = vsub.s32 %v4682, %v4684
    %v4686 = vrot.slane %v4678, %v4685
    %v4688 = vunpack.c.l.s4 1934713408
    %v4689 = vunpack.c.0.s8 %v4688
    %v4690 = vlaneseq
    %v4691 = vshrl.u32 %v4690, 7
    %v4692 = vsub.s32 %v4689, %v4691
    %v4693 = vrot.slane %v4679, %v4692
    %v4694 = vcombine.low %v4638, %v4654
    %v4695 = vcombine.high %v4638, %v4654
    %v4697 = vunpack.c.l.s4 1934713408
    %v4698 = vunpack.c.0.s8 %v4697
    %v4699 = vlaneseq
    %v4700 = vshrl.u32 %v4699, 7
    %v4701 = vsub.s32 %v4698, %v4700
    %v4702 = vrot.slane %v4694, %v4701
    %v4704 = vunpack.c.l.s4 1934713408
    %v4705 = vunpack.c.0.s8 %v4704
    %v4706 = vlaneseq
    %v4707 = vshrl.u32 %v4706, 7
    %v4708 = vsub.s32 %v4705, %v4707
    %v4709 = vrot.slane %v4695, %v4708
    %v4710 = vcombine.low %v4645, %v4661
    %v4711 = vcombine.high %v4645, %v4661
    %v4713 = vunpack.c.l.s4 1934713408
    %v4714 = vunpack.c.0.s8 %v4713
    %v4715 = vlaneseq
    %v4716 = vshrl.u32 %v4715, 7
    %v4717 = vsub.s32 %v4714, %v4716
    %v4718 = vrot.slane %v4710, %v4717
    %v4720 = vunpack.c.l.s4 1934713408
    %v4721 = vunpack.c.0.s8 %v4720
    %v4722 = vlaneseq
    %v4723 = vshrl.u32 %v4722, 7
    %v4724 = vsub.s32 %v4721, %v4723
    %v4725 = vrot.slane %v4711, %v4724
    %v4726 = vcombine.low %v4670, %v4702
    %v4727 = vcombine.high %v4670, %v4702
    %v4728 = vcombine.low %v4677, %v4709
    %v4729 = vcombine.high %v4677, %v4709
    %v4730 = vcombine.low %v4686, %v4718
    %v4731 = vcombine.high %v4686, %v4718
    %v4732 = vcombine.low %v4693, %v4725
    %v4733 = vcombine.high %v4693, %v4725
    %v4734 = vcombine.low %v4269, %v4285
    %v4735 = vcombine.high %v4269, %v4285
    %v4737 = vunpack.c.l.s4 1983009808
    %v4738 = vunpack.c.0.s8 %v4737
    %v4739 = vlaneseq
    %v4740 = vshrl.u32 %v4739, 7
    %v4741 = vsub.s32 %v4738, %v4740
    %v4742 = vrot.slane %v4734, %v4741
    %v4744 = vunpack.c.l.s4 1983009808
    %v4745 = vunpack.c.0.s8 %v4744
    %v4746 = vlaneseq
    %v4747 = vshrl.u32 %v4746, 7
    %v4748 = vsub.s32 %v4745, %v4747
    %v4749 = vrot.slane %v4735, %v4748
    %v4750 = vcombine.low %v4277, %v4293
    %v4751 = vcombine.high %v4277, %v4293
    %v4753 = vunpack.c.l.s4 1983009808
    %v4754 = vunpack.c.0.s8 %v4753
    %v4755 = vlaneseq
    %v4756 = vshrl.u32 %v4755, 7
    %v4757 = vsub.s32 %v4754, %v4756
    %v4758 = vrot.slane %v4750, %v4757
    %v4760 = vunpack.c.l.s4 1983009808
    %v4761 = vunpack.c.0.s8 %v4760
    %v4762 = vlaneseq
    %v4763 = vshrl.u32 %v4762, 7
    %v4764 = vsub.s32 %v4761, %v4763
    %v4765 = vrot.slane %v4751, %v4764
    %v4766 = vcombine.low %v4301, %v4317
    %v4767 = vcombine.high %v4301, %v4317
    %v4769 = vunpack.c.l.s4 1983009808
    %v4770 = vunpack.c.0.s8 %v4769
    %v4771 = vlaneseq
    %v4772 = vshrl.u32 %v4771, 7
    %v4773 = vsub.s32 %v4770, %v4772
    %v4774 = vrot.slane %v4766, %v4773
    %v4776 = vunpack.c.l.s4 1983009808
    %v4777 = vunpack.c.0.s8 %v4776
    %v4778 = vlaneseq
    %v4779 = vshrl.u32 %v4778, 7
    %v4780 = vsub.s32 %v4777, %v4779
    %v4781 = vrot.slane %v4767, %v4780
    %v4782 = vcombine.low %v4309, %v4325
    %v4783 = vcombine.high %v4309, %v4325
    %v4785 = vunpack.c.l.s4 1983009808
    %v4786 = vunpack.c.0.s8 %v4785
    %v4787 = vlaneseq
    %v4788 = vshrl.u32 %v4787, 7
    %v4789 = vsub.s32 %v4786, %v4788
    %v4790 = vrot.slane %v4782, %v4789
    %v4792 = vunpack.c.l.s4 1983009808
    %v4793 = vunpack.c.0.s8 %v4792
    %v4794 = vlaneseq
    %v4795 = vshrl.u32 %v4794, 7
    %v4796 = vsub.s32 %v4793, %v4795
    %v4797 = vrot.slane %v4783, %v4796
    %v4798 = vcombine.low %v4742, %v4758
    %v4799 = vcombine.high %v4742, %v4758
    %v4801 = vunpack.c.l.s4 1934713408
    %v4802 = vunpack.c.0.s8 %v4801
    %v4803 = vlaneseq
    %v4804 = vshrl.u32 %v4803, 7
    %v4805 = vsub.s32 %v4802, %v4804
    %v4806 = vrot.slane %v4798, %v4805
    %v4808 = vunpack.c.l.s4 1934713408
    %v4809 = vunpack.c.0.s8 %v4808
    %v4810 = vlaneseq
    %v4811 = vshrl.u32 %v4810, 7
    %v4812 = vsub.s32 %v4809, %v4811
    %v4813 = vrot.slane %v4799, %v4812
    %v4814 = vcombine.low %v4749, %v4765
    %v4815 = vcombine.high %v4749, %v4765
    %v4817 = vunpack.c.l.s4 1934713408
    %v4818 = vunpack.c.0.s8 %v4817
    %v4819 = vlaneseq
    %v4820 = vshrl.u32 %v4819, 7
    %v4821 = vsub.s32 %v4818, %v4820
    %v4822 = vrot.slane %v4814, %v4821
    %v4824 = vunpack.c.l.s4 1934713408
    %v4825 = vunpack.c.0.s8 %v4824
    %v4826 = vlaneseq
    %v4827 = vshrl.u32 %v4826, 7
    %v4828 = vsub.s32 %v4825, %v4827
    %v4829 = vrot.slane %v4815, %v4828
    %v4830 = vcombine.low %v4774, %v4790
    %v4831 = vcombine.high %v4774, %v4790
    %v4833 = vunpack.c.l.s4 1934713408
    %v4834 = vunpack.c.0.s8 %v4833
    %v4835 = vlaneseq
    %v4836 = vshrl.u32 %v4835, 7
    %v4837 = vsub.s32 %v4834, %v4836
    %v4838 = vrot.slane %v4830, %v4837
    %v4840 = vunpack.c.l.s4 1934713408
    %v4841 = vunpack.c.0.s8 %v4840
    %v4842 = vlaneseq
    %v4843 = vshrl.u32 %v4842, 7
    %v4844 = vsub.s32 %v4841, %v4843
    %v4845 = vrot.slane %v4831, %v4844
    %v4846 = vcombine.low %v4781, %v4797
    %v4847 = vcombine.high %v4781, %v4797
    %v4849 = vunpack.c.l.s4 1934713408
    %v4850 = vunpack.c.0.s8 %v4849
    %v4851 = vlaneseq
    %v4852 = vshrl.u32 %v4851, 7
    %v4853 = vsub.s32 %v4850, %v4852
    %v4854 = vrot.slane %v4846, %v4853
    %v4856 = vunpack.c.l.s4 1934713408
    %v4857 = vunpack.c.0.s8 %v4856
    %v4858 = vlaneseq
    %v4859 = vshrl.u32 %v4858, 7
    %v4860 = vsub.s32 %v4857, %v4859
    %v4861 = vrot.slane %v4847, %v4860
    %v4862 = vcombine.low %v4806, %v4838
    %v4863 = vcombine.high %v4806, %v4838
    %v4864 = vcombine.low %v4813, %v4845
    %v4865 = vcombine.high %v4813, %v4845
    %v4866 = vcombine.low %v4822, %v4854
    %v4867 = vcombine.high %v4822, %v4854
    %v4868 = vcombine.low %v4829, %v4861
    %v4869 = vcombine.high %v4829, %v4861
    %4872 = vrot.lane.b32.xlu0 %v4455, 2
    %v4873 = vpop.permute.xlu0 %4872
    %4874 = vrot.lane.b32.xlu0 %v4591, 2
    %v4875 = vpop.permute.xlu0 %4874
    %4880 = vrot.lane.b32.xlu0 %v4456, 4
    %v4881 = vpop.permute.xlu0 %4880
    %4882 = vrot.lane.b32.xlu0 %v4592, 4
    %v4883 = vpop.permute.xlu0 %4882
    %4888 = vrot.lane.b32.xlu0 %v4457, 6
    %v4889 = vpop.permute.xlu0 %4888
    %4890 = vrot.lane.b32.xlu0 %v4593, 6
    %v4891 = vpop.permute.xlu0 %4890
    %4896 = vrot.lane.b32.xlu0 %v4458, 8
    %v4897 = vpop.permute.xlu0 %4896
    %4898 = vrot.lane.b32.xlu0 %v4594, 8
    %v4899 = vpop.permute.xlu0 %4898
    %4904 = vrot.lane.b32.xlu0 %v4459, 10
    %v4905 = vpop.permute.xlu0 %4904
    %4906 = vrot.lane.b32.xlu0 %v4595, 10
    %v4907 = vpop.permute.xlu0 %4906
    %4912 = vrot.lane.b32.xlu0 %v4460, 12
    %v4913 = vpop.permute.xlu0 %4912
    %4914 = vrot.lane.b32.xlu0 %v4596, 12
    %v4915 = vpop.permute.xlu0 %4914
    %4920 = vrot.lane.b32.xlu0 %v4461, 14
    %v4921 = vpop.permute.xlu0 %4920
    %4922 = vrot.lane.b32.xlu0 %v4597, 14
    %v4923 = vpop.permute.xlu0 %4922
    %4928 = vrot.lane.b32.xlu0 %v4726, 16
    %v4929 = vpop.permute.xlu0 %4928
    %4930 = vrot.lane.b32.xlu0 %v4862, 16
    %v4931 = vpop.permute.xlu0 %4930
    %4936 = vrot.lane.b32.xlu0 %v4727, 18
    %v4937 = vpop.permute.xlu0 %4936
    %4938 = vrot.lane.b32.xlu0 %v4863, 18
    %v4939 = vpop.permute.xlu0 %4938
    %4944 = vrot.lane.b32.xlu0 %v4728, 20
    %v4945 = vpop.permute.xlu0 %4944
    %4946 = vrot.lane.b32.xlu0 %v4864, 20
    %v4947 = vpop.permute.xlu0 %4946
    %4952 = vrot.lane.b32.xlu0 %v4729, 22
    %v4953 = vpop.permute.xlu0 %4952
    %4954 = vrot.lane.b32.xlu0 %v4865, 22
    %v4955 = vpop.permute.xlu0 %4954
    %4960 = vrot.lane.b32.xlu0 %v4730, 24
    %v4961 = vpop.permute.xlu0 %4960
    %4962 = vrot.lane.b32.xlu0 %v4866, 24
    %v4963 = vpop.permute.xlu0 %4962
    %4968 = vrot.lane.b32.xlu0 %v4731, 26
    %v4969 = vpop.permute.xlu0 %4968
    %4970 = vrot.lane.b32.xlu0 %v4867, 26
    %v4971 = vpop.permute.xlu0 %4970
    %4976 = vrot.lane.b32.xlu0 %v4732, 28
    %v4977 = vpop.permute.xlu0 %4976
    %4978 = vrot.lane.b32.xlu0 %v4868, 28
    %v4979 = vpop.permute.xlu0 %4978
    %4984 = vrot.lane.b32.xlu0 %v4733, 30
    %v4985 = vpop.permute.xlu0 %4984
    %4986 = vrot.lane.b32.xlu0 %v4869, 30
    %v4987 = vpop.permute.xlu0 %4986
    %v4990 = vsel %vm865, %v4454, %v4873
    %v4991 = vsel %vm865, %v4590, %v4875
    %v4992 = vsel %vm868, %v4990, %v4881
    %v4993 = vsel %vm868, %v4991, %v4883
    %v4994 = vsel %vm871, %v4992, %v4889
    %v4995 = vsel %vm871, %v4993, %v4891
    %v4996 = vsel %vm874, %v4994, %v4897
    %v4997 = vsel %vm874, %v4995, %v4899
    %v4998 = vsel %vm877, %v4996, %v4905
    %v4999 = vsel %vm877, %v4997, %v4907
    %v5000 = vsel %vm880, %v4998, %v4913
    %v5001 = vsel %vm880, %v4999, %v4915
    %v5002 = vsel %vm883, %v5000, %v4921
    %v5003 = vsel %vm883, %v5001, %v4923
    %v5004 = vsel %vm886, %v5002, %v4929
    %v5005 = vsel %vm886, %v5003, %v4931
    %v5006 = vsel %vm889, %v5004, %v4937
    %v5007 = vsel %vm889, %v5005, %v4939
    %v5008 = vsel %vm892, %v5006, %v4945
    %v5009 = vsel %vm892, %v5007, %v4947
    %v5010 = vsel %vm895, %v5008, %v4953
    %v5011 = vsel %vm895, %v5009, %v4955
    %v5012 = vsel %vm898, %v5010, %v4961
    %v5013 = vsel %vm898, %v5011, %v4963
    %v5014 = vsel %vm901, %v5012, %v4969
    %v5015 = vsel %vm901, %v5013, %v4971
    %v5016 = vsel %vm904, %v5014, %v4977
    %v5017 = vsel %vm904, %v5015, %v4979
    %v5018 = vsel %vm907, %v5016, %v4985
    %v5019 = vsel %vm907, %v5017, %v4987
    %s5021 = sor.u32 256, 96
    %5022 = vbcast.lane.b32.xlu0 %v28, %s5021
    %v5023 = vpop.permute.xlu0 %5022
    %s5025 = sor.u32 256, 104
    %5026 = vbcast.lane.b32.xlu0 %v28, %s5025
    %v5027 = vpop.permute.xlu0 %5026
    %s5029 = sor.u32 256, 96
    %5030 = vbcast.lane.b32.xlu0 %v39, %s5029
    %v5031 = vpop.permute.xlu0 %5030
    %s5033 = sor.u32 256, 104
    %5034 = vbcast.lane.b32.xlu0 %v39, %s5033
    %v5035 = vpop.permute.xlu0 %5034
    %s5037 = sor.u32 256, 96
    %5038 = vbcast.lane.b32.xlu0 %v50, %s5037
    %v5039 = vpop.permute.xlu0 %5038
    %s5041 = sor.u32 256, 104
    %5042 = vbcast.lane.b32.xlu0 %v50, %s5041
    %v5043 = vpop.permute.xlu0 %5042
    %s5045 = sor.u32 256, 96
    %5046 = vbcast.lane.b32.xlu0 %v61, %s5045
    %v5047 = vpop.permute.xlu0 %5046
    %s5049 = sor.u32 256, 104
    %5050 = vbcast.lane.b32.xlu0 %v61, %s5049
    %v5051 = vpop.permute.xlu0 %5050
    %s5053 = sor.u32 256, 96
    %5054 = vbcast.lane.b32.xlu0 %v72, %s5053
    %v5055 = vpop.permute.xlu0 %5054
    %s5057 = sor.u32 256, 104
    %5058 = vbcast.lane.b32.xlu0 %v72, %s5057
    %v5059 = vpop.permute.xlu0 %5058
    %s5061 = sor.u32 256, 96
    %5062 = vbcast.lane.b32.xlu0 %v83, %s5061
    %v5063 = vpop.permute.xlu0 %5062
    %s5065 = sor.u32 256, 104
    %5066 = vbcast.lane.b32.xlu0 %v83, %s5065
    %v5067 = vpop.permute.xlu0 %5066
    %s5069 = sor.u32 256, 96
    %5070 = vbcast.lane.b32.xlu0 %v94, %s5069
    %v5071 = vpop.permute.xlu0 %5070
    %s5073 = sor.u32 256, 104
    %5074 = vbcast.lane.b32.xlu0 %v94, %s5073
    %v5075 = vpop.permute.xlu0 %5074
    %s5077 = sor.u32 256, 96
    %5078 = vbcast.lane.b32.xlu0 %v105, %s5077
    %v5079 = vpop.permute.xlu0 %5078
    %s5081 = sor.u32 256, 104
    %5082 = vbcast.lane.b32.xlu0 %v105, %s5081
    %v5083 = vpop.permute.xlu0 %5082
    %s5085 = sor.u32 256, 96
    %5086 = vbcast.lane.b32.xlu0 %v116, %s5085
    %v5087 = vpop.permute.xlu0 %5086
    %s5089 = sor.u32 256, 104
    %5090 = vbcast.lane.b32.xlu0 %v116, %s5089
    %v5091 = vpop.permute.xlu0 %5090
    %s5093 = sor.u32 256, 96
    %5094 = vbcast.lane.b32.xlu0 %v127, %s5093
    %v5095 = vpop.permute.xlu0 %5094
    %s5097 = sor.u32 256, 104
    %5098 = vbcast.lane.b32.xlu0 %v127, %s5097
    %v5099 = vpop.permute.xlu0 %5098
    %s5101 = sor.u32 256, 96
    %5102 = vbcast.lane.b32.xlu0 %v138, %s5101
    %v5103 = vpop.permute.xlu0 %5102
    %s5105 = sor.u32 256, 104
    %5106 = vbcast.lane.b32.xlu0 %v138, %s5105
    %v5107 = vpop.permute.xlu0 %5106
    %s5109 = sor.u32 256, 96
    %5110 = vbcast.lane.b32.xlu0 %v149, %s5109
    %v5111 = vpop.permute.xlu0 %5110
    %s5113 = sor.u32 256, 104
    %5114 = vbcast.lane.b32.xlu0 %v149, %s5113
    %v5115 = vpop.permute.xlu0 %5114
    %s5117 = sor.u32 256, 96
    %5118 = vbcast.lane.b32.xlu0 %v160, %s5117
    %v5119 = vpop.permute.xlu0 %5118
    %s5121 = sor.u32 256, 104
    %5122 = vbcast.lane.b32.xlu0 %v160, %s5121
    %v5123 = vpop.permute.xlu0 %5122
    %s5125 = sor.u32 256, 96
    %5126 = vbcast.lane.b32.xlu0 %v171, %s5125
    %v5127 = vpop.permute.xlu0 %5126
    %s5129 = sor.u32 256, 104
    %5130 = vbcast.lane.b32.xlu0 %v171, %s5129
    %v5131 = vpop.permute.xlu0 %5130
    %s5133 = sor.u32 256, 96
    %5134 = vbcast.lane.b32.xlu0 %v182, %s5133
    %v5135 = vpop.permute.xlu0 %5134
    %s5137 = sor.u32 256, 104
    %5138 = vbcast.lane.b32.xlu0 %v182, %s5137
    %v5139 = vpop.permute.xlu0 %5138
    %s5141 = sor.u32 256, 96
    %5142 = vbcast.lane.b32.xlu0 %v193, %s5141
    %v5143 = vpop.permute.xlu0 %5142
    %s5145 = sor.u32 256, 104
    %5146 = vbcast.lane.b32.xlu0 %v193, %s5145
    %v5147 = vpop.permute.xlu0 %5146
    %v5148 = vcombine.low %v5023, %v5039
    %v5149 = vcombine.high %v5023, %v5039
    %v5151 = vunpack.c.l.s4 1983009808
    %v5152 = vunpack.c.0.s8 %v5151
    %v5153 = vlaneseq
    %v5154 = vshrl.u32 %v5153, 7
    %v5155 = vsub.s32 %v5152, %v5154
    %v5156 = vrot.slane %v5148, %v5155
    %v5158 = vunpack.c.l.s4 1983009808
    %v5159 = vunpack.c.0.s8 %v5158
    %v5160 = vlaneseq
    %v5161 = vshrl.u32 %v5160, 7
    %v5162 = vsub.s32 %v5159, %v5161
    %v5163 = vrot.slane %v5149, %v5162
    %v5164 = vcombine.low %v5031, %v5047
    %v5165 = vcombine.high %v5031, %v5047
    %v5167 = vunpack.c.l.s4 1983009808
    %v5168 = vunpack.c.0.s8 %v5167
    %v5169 = vlaneseq
    %v5170 = vshrl.u32 %v5169, 7
    %v5171 = vsub.s32 %v5168, %v5170
    %v5172 = vrot.slane %v5164, %v5171
    %v5174 = vunpack.c.l.s4 1983009808
    %v5175 = vunpack.c.0.s8 %v5174
    %v5176 = vlaneseq
    %v5177 = vshrl.u32 %v5176, 7
    %v5178 = vsub.s32 %v5175, %v5177
    %v5179 = vrot.slane %v5165, %v5178
    %v5180 = vcombine.low %v5055, %v5071
    %v5181 = vcombine.high %v5055, %v5071
    %v5183 = vunpack.c.l.s4 1983009808
    %v5184 = vunpack.c.0.s8 %v5183
    %v5185 = vlaneseq
    %v5186 = vshrl.u32 %v5185, 7
    %v5187 = vsub.s32 %v5184, %v5186
    %v5188 = vrot.slane %v5180, %v5187
    %v5190 = vunpack.c.l.s4 1983009808
    %v5191 = vunpack.c.0.s8 %v5190
    %v5192 = vlaneseq
    %v5193 = vshrl.u32 %v5192, 7
    %v5194 = vsub.s32 %v5191, %v5193
    %v5195 = vrot.slane %v5181, %v5194
    %v5196 = vcombine.low %v5063, %v5079
    %v5197 = vcombine.high %v5063, %v5079
    %v5199 = vunpack.c.l.s4 1983009808
    %v5200 = vunpack.c.0.s8 %v5199
    %v5201 = vlaneseq
    %v5202 = vshrl.u32 %v5201, 7
    %v5203 = vsub.s32 %v5200, %v5202
    %v5204 = vrot.slane %v5196, %v5203
    %v5206 = vunpack.c.l.s4 1983009808
    %v5207 = vunpack.c.0.s8 %v5206
    %v5208 = vlaneseq
    %v5209 = vshrl.u32 %v5208, 7
    %v5210 = vsub.s32 %v5207, %v5209
    %v5211 = vrot.slane %v5197, %v5210
    %v5212 = vcombine.low %v5156, %v5172
    %v5213 = vcombine.high %v5156, %v5172
    %v5215 = vunpack.c.l.s4 1934713408
    %v5216 = vunpack.c.0.s8 %v5215
    %v5217 = vlaneseq
    %v5218 = vshrl.u32 %v5217, 7
    %v5219 = vsub.s32 %v5216, %v5218
    %v5220 = vrot.slane %v5212, %v5219
    %v5222 = vunpack.c.l.s4 1934713408
    %v5223 = vunpack.c.0.s8 %v5222
    %v5224 = vlaneseq
    %v5225 = vshrl.u32 %v5224, 7
    %v5226 = vsub.s32 %v5223, %v5225
    %v5227 = vrot.slane %v5213, %v5226
    %v5228 = vcombine.low %v5163, %v5179
    %v5229 = vcombine.high %v5163, %v5179
    %v5231 = vunpack.c.l.s4 1934713408
    %v5232 = vunpack.c.0.s8 %v5231
    %v5233 = vlaneseq
    %v5234 = vshrl.u32 %v5233, 7
    %v5235 = vsub.s32 %v5232, %v5234
    %v5236 = vrot.slane %v5228, %v5235
    %v5238 = vunpack.c.l.s4 1934713408
    %v5239 = vunpack.c.0.s8 %v5238
    %v5240 = vlaneseq
    %v5241 = vshrl.u32 %v5240, 7
    %v5242 = vsub.s32 %v5239, %v5241
    %v5243 = vrot.slane %v5229, %v5242
    %v5244 = vcombine.low %v5188, %v5204
    %v5245 = vcombine.high %v5188, %v5204
    %v5247 = vunpack.c.l.s4 1934713408
    %v5248 = vunpack.c.0.s8 %v5247
    %v5249 = vlaneseq
    %v5250 = vshrl.u32 %v5249, 7
    %v5251 = vsub.s32 %v5248, %v5250
    %v5252 = vrot.slane %v5244, %v5251
    %v5254 = vunpack.c.l.s4 1934713408
    %v5255 = vunpack.c.0.s8 %v5254
    %v5256 = vlaneseq
    %v5257 = vshrl.u32 %v5256, 7
    %v5258 = vsub.s32 %v5255, %v5257
    %v5259 = vrot.slane %v5245, %v5258
    %v5260 = vcombine.low %v5195, %v5211
    %v5261 = vcombine.high %v5195, %v5211
    %v5263 = vunpack.c.l.s4 1934713408
    %v5264 = vunpack.c.0.s8 %v5263
    %v5265 = vlaneseq
    %v5266 = vshrl.u32 %v5265, 7
    %v5267 = vsub.s32 %v5264, %v5266
    %v5268 = vrot.slane %v5260, %v5267
    %v5270 = vunpack.c.l.s4 1934713408
    %v5271 = vunpack.c.0.s8 %v5270
    %v5272 = vlaneseq
    %v5273 = vshrl.u32 %v5272, 7
    %v5274 = vsub.s32 %v5271, %v5273
    %v5275 = vrot.slane %v5261, %v5274
    %v5276 = vcombine.low %v5220, %v5252
    %v5277 = vcombine.high %v5220, %v5252
    %v5278 = vcombine.low %v5227, %v5259
    %v5279 = vcombine.high %v5227, %v5259
    %v5280 = vcombine.low %v5236, %v5268
    %v5281 = vcombine.high %v5236, %v5268
    %v5282 = vcombine.low %v5243, %v5275
    %v5283 = vcombine.high %v5243, %v5275
    %v5284 = vcombine.low %v5087, %v5103
    %v5285 = vcombine.high %v5087, %v5103
    %v5287 = vunpack.c.l.s4 1983009808
    %v5288 = vunpack.c.0.s8 %v5287
    %v5289 = vlaneseq
    %v5290 = vshrl.u32 %v5289, 7
    %v5291 = vsub.s32 %v5288, %v5290
    %v5292 = vrot.slane %v5284, %v5291
    %v5294 = vunpack.c.l.s4 1983009808
    %v5295 = vunpack.c.0.s8 %v5294
    %v5296 = vlaneseq
    %v5297 = vshrl.u32 %v5296, 7
    %v5298 = vsub.s32 %v5295, %v5297
    %v5299 = vrot.slane %v5285, %v5298
    %v5300 = vcombine.low %v5095, %v5111
    %v5301 = vcombine.high %v5095, %v5111
    %v5303 = vunpack.c.l.s4 1983009808
    %v5304 = vunpack.c.0.s8 %v5303
    %v5305 = vlaneseq
    %v5306 = vshrl.u32 %v5305, 7
    %v5307 = vsub.s32 %v5304, %v5306
    %v5308 = vrot.slane %v5300, %v5307
    %v5310 = vunpack.c.l.s4 1983009808
    %v5311 = vunpack.c.0.s8 %v5310
    %v5312 = vlaneseq
    %v5313 = vshrl.u32 %v5312, 7
    %v5314 = vsub.s32 %v5311, %v5313
    %v5315 = vrot.slane %v5301, %v5314
    %v5316 = vcombine.low %v5119, %v5135
    %v5317 = vcombine.high %v5119, %v5135
    %v5319 = vunpack.c.l.s4 1983009808
    %v5320 = vunpack.c.0.s8 %v5319
    %v5321 = vlaneseq
    %v5322 = vshrl.u32 %v5321, 7
    %v5323 = vsub.s32 %v5320, %v5322
    %v5324 = vrot.slane %v5316, %v5323
    %v5326 = vunpack.c.l.s4 1983009808
    %v5327 = vunpack.c.0.s8 %v5326
    %v5328 = vlaneseq
    %v5329 = vshrl.u32 %v5328, 7
    %v5330 = vsub.s32 %v5327, %v5329
    %v5331 = vrot.slane %v5317, %v5330
    %v5332 = vcombine.low %v5127, %v5143
    %v5333 = vcombine.high %v5127, %v5143
    %v5335 = vunpack.c.l.s4 1983009808
    %v5336 = vunpack.c.0.s8 %v5335
    %v5337 = vlaneseq
    %v5338 = vshrl.u32 %v5337, 7
    %v5339 = vsub.s32 %v5336, %v5338
    %v5340 = vrot.slane %v5332, %v5339
    %v5342 = vunpack.c.l.s4 1983009808
    %v5343 = vunpack.c.0.s8 %v5342
    %v5344 = vlaneseq
    %v5345 = vshrl.u32 %v5344, 7
    %v5346 = vsub.s32 %v5343, %v5345
    %v5347 = vrot.slane %v5333, %v5346
    %v5348 = vcombine.low %v5292, %v5308
    %v5349 = vcombine.high %v5292, %v5308
    %v5351 = vunpack.c.l.s4 1934713408
    %v5352 = vunpack.c.0.s8 %v5351
    %v5353 = vlaneseq
    %v5354 = vshrl.u32 %v5353, 7
    %v5355 = vsub.s32 %v5352, %v5354
    %v5356 = vrot.slane %v5348, %v5355
    %v5358 = vunpack.c.l.s4 1934713408
    %v5359 = vunpack.c.0.s8 %v5358
    %v5360 = vlaneseq
    %v5361 = vshrl.u32 %v5360, 7
    %v5362 = vsub.s32 %v5359, %v5361
    %v5363 = vrot.slane %v5349, %v5362
    %v5364 = vcombine.low %v5299, %v5315
    %v5365 = vcombine.high %v5299, %v5315
    %v5367 = vunpack.c.l.s4 1934713408
    %v5368 = vunpack.c.0.s8 %v5367
    %v5369 = vlaneseq
    %v5370 = vshrl.u32 %v5369, 7
    %v5371 = vsub.s32 %v5368, %v5370
    %v5372 = vrot.slane %v5364, %v5371
    %v5374 = vunpack.c.l.s4 1934713408
    %v5375 = vunpack.c.0.s8 %v5374
    %v5376 = vlaneseq
    %v5377 = vshrl.u32 %v5376, 7
    %v5378 = vsub.s32 %v5375, %v5377
    %v5379 = vrot.slane %v5365, %v5378
    %v5380 = vcombine.low %v5324, %v5340
    %v5381 = vcombine.high %v5324, %v5340
    %v5383 = vunpack.c.l.s4 1934713408
    %v5384 = vunpack.c.0.s8 %v5383
    %v5385 = vlaneseq
    %v5386 = vshrl.u32 %v5385, 7
    %v5387 = vsub.s32 %v5384, %v5386
    %v5388 = vrot.slane %v5380, %v5387
    %v5390 = vunpack.c.l.s4 1934713408
    %v5391 = vunpack.c.0.s8 %v5390
    %v5392 = vlaneseq
    %v5393 = vshrl.u32 %v5392, 7
    %v5394 = vsub.s32 %v5391, %v5393
    %v5395 = vrot.slane %v5381, %v5394
    %v5396 = vcombine.low %v5331, %v5347
    %v5397 = vcombine.high %v5331, %v5347
    %v5399 = vunpack.c.l.s4 1934713408
    %v5400 = vunpack.c.0.s8 %v5399
    %v5401 = vlaneseq
    %v5402 = vshrl.u32 %v5401, 7
    %v5403 = vsub.s32 %v5400, %v5402
    %v5404 = vrot.slane %v5396, %v5403
    %v5406 = vunpack.c.l.s4 1934713408
    %v5407 = vunpack.c.0.s8 %v5406
    %v5408 = vlaneseq
    %v5409 = vshrl.u32 %v5408, 7
    %v5410 = vsub.s32 %v5407, %v5409
    %v5411 = vrot.slane %v5397, %v5410
    %v5412 = vcombine.low %v5356, %v5388
    %v5413 = vcombine.high %v5356, %v5388
    %v5414 = vcombine.low %v5363, %v5395
    %v5415 = vcombine.high %v5363, %v5395
    %v5416 = vcombine.low %v5372, %v5404
    %v5417 = vcombine.high %v5372, %v5404
    %v5418 = vcombine.low %v5379, %v5411
    %v5419 = vcombine.high %v5379, %v5411
    %v5420 = vcombine.low %v5027, %v5043
    %v5421 = vcombine.high %v5027, %v5043
    %v5423 = vunpack.c.l.s4 1983009808
    %v5424 = vunpack.c.0.s8 %v5423
    %v5425 = vlaneseq
    %v5426 = vshrl.u32 %v5425, 7
    %v5427 = vsub.s32 %v5424, %v5426
    %v5428 = vrot.slane %v5420, %v5427
    %v5430 = vunpack.c.l.s4 1983009808
    %v5431 = vunpack.c.0.s8 %v5430
    %v5432 = vlaneseq
    %v5433 = vshrl.u32 %v5432, 7
    %v5434 = vsub.s32 %v5431, %v5433
    %v5435 = vrot.slane %v5421, %v5434
    %v5436 = vcombine.low %v5035, %v5051
    %v5437 = vcombine.high %v5035, %v5051
    %v5439 = vunpack.c.l.s4 1983009808
    %v5440 = vunpack.c.0.s8 %v5439
    %v5441 = vlaneseq
    %v5442 = vshrl.u32 %v5441, 7
    %v5443 = vsub.s32 %v5440, %v5442
    %v5444 = vrot.slane %v5436, %v5443
    %v5446 = vunpack.c.l.s4 1983009808
    %v5447 = vunpack.c.0.s8 %v5446
    %v5448 = vlaneseq
    %v5449 = vshrl.u32 %v5448, 7
    %v5450 = vsub.s32 %v5447, %v5449
    %v5451 = vrot.slane %v5437, %v5450
    %v5452 = vcombine.low %v5059, %v5075
    %v5453 = vcombine.high %v5059, %v5075
    %v5455 = vunpack.c.l.s4 1983009808
    %v5456 = vunpack.c.0.s8 %v5455
    %v5457 = vlaneseq
    %v5458 = vshrl.u32 %v5457, 7
    %v5459 = vsub.s32 %v5456, %v5458
    %v5460 = vrot.slane %v5452, %v5459
    %v5462 = vunpack.c.l.s4 1983009808
    %v5463 = vunpack.c.0.s8 %v5462
    %v5464 = vlaneseq
    %v5465 = vshrl.u32 %v5464, 7
    %v5466 = vsub.s32 %v5463, %v5465
    %v5467 = vrot.slane %v5453, %v5466
    %v5468 = vcombine.low %v5067, %v5083
    %v5469 = vcombine.high %v5067, %v5083
    %v5471 = vunpack.c.l.s4 1983009808
    %v5472 = vunpack.c.0.s8 %v5471
    %v5473 = vlaneseq
    %v5474 = vshrl.u32 %v5473, 7
    %v5475 = vsub.s32 %v5472, %v5474
    %v5476 = vrot.slane %v5468, %v5475
    %v5478 = vunpack.c.l.s4 1983009808
    %v5479 = vunpack.c.0.s8 %v5478
    %v5480 = vlaneseq
    %v5481 = vshrl.u32 %v5480, 7
    %v5482 = vsub.s32 %v5479, %v5481
    %v5483 = vrot.slane %v5469, %v5482
    %v5484 = vcombine.low %v5428, %v5444
    %v5485 = vcombine.high %v5428, %v5444
    %v5487 = vunpack.c.l.s4 1934713408
    %v5488 = vunpack.c.0.s8 %v5487
    %v5489 = vlaneseq
    %v5490 = vshrl.u32 %v5489, 7
    %v5491 = vsub.s32 %v5488, %v5490
    %v5492 = vrot.slane %v5484, %v5491
    %v5494 = vunpack.c.l.s4 1934713408
    %v5495 = vunpack.c.0.s8 %v5494
    %v5496 = vlaneseq
    %v5497 = vshrl.u32 %v5496, 7
    %v5498 = vsub.s32 %v5495, %v5497
    %v5499 = vrot.slane %v5485, %v5498
    %v5500 = vcombine.low %v5435, %v5451
    %v5501 = vcombine.high %v5435, %v5451
    %v5503 = vunpack.c.l.s4 1934713408
    %v5504 = vunpack.c.0.s8 %v5503
    %v5505 = vlaneseq
    %v5506 = vshrl.u32 %v5505, 7
    %v5507 = vsub.s32 %v5504, %v5506
    %v5508 = vrot.slane %v5500, %v5507
    %v5510 = vunpack.c.l.s4 1934713408
    %v5511 = vunpack.c.0.s8 %v5510
    %v5512 = vlaneseq
    %v5513 = vshrl.u32 %v5512, 7
    %v5514 = vsub.s32 %v5511, %v5513
    %v5515 = vrot.slane %v5501, %v5514
    %v5516 = vcombine.low %v5460, %v5476
    %v5517 = vcombine.high %v5460, %v5476
    %v5519 = vunpack.c.l.s4 1934713408
    %v5520 = vunpack.c.0.s8 %v5519
    %v5521 = vlaneseq
    %v5522 = vshrl.u32 %v5521, 7
    %v5523 = vsub.s32 %v5520, %v5522
    %v5524 = vrot.slane %v5516, %v5523
    %v5526 = vunpack.c.l.s4 1934713408
    %v5527 = vunpack.c.0.s8 %v5526
    %v5528 = vlaneseq
    %v5529 = vshrl.u32 %v5528, 7
    %v5530 = vsub.s32 %v5527, %v5529
    %v5531 = vrot.slane %v5517, %v5530
    %v5532 = vcombine.low %v5467, %v5483
    %v5533 = vcombine.high %v5467, %v5483
    %v5535 = vunpack.c.l.s4 1934713408
    %v5536 = vunpack.c.0.s8 %v5535
    %v5537 = vlaneseq
    %v5538 = vshrl.u32 %v5537, 7
    %v5539 = vsub.s32 %v5536, %v5538
    %v5540 = vrot.slane %v5532, %v5539
    %v5542 = vunpack.c.l.s4 1934713408
    %v5543 = vunpack.c.0.s8 %v5542
    %v5544 = vlaneseq
    %v5545 = vshrl.u32 %v5544, 7
    %v5546 = vsub.s32 %v5543, %v5545
    %v5547 = vrot.slane %v5533, %v5546
    %v5548 = vcombine.low %v5492, %v5524
    %v5549 = vcombine.high %v5492, %v5524
    %v5550 = vcombine.low %v5499, %v5531
    %v5551 = vcombine.high %v5499, %v5531
    %v5552 = vcombine.low %v5508, %v5540
    %v5553 = vcombine.high %v5508, %v5540
    %v5554 = vcombine.low %v5515, %v5547
    %v5555 = vcombine.high %v5515, %v5547
    %v5556 = vcombine.low %v5091, %v5107
    %v5557 = vcombine.high %v5091, %v5107
    %v5559 = vunpack.c.l.s4 1983009808
    %v5560 = vunpack.c.0.s8 %v5559
    %v5561 = vlaneseq
    %v5562 = vshrl.u32 %v5561, 7
    %v5563 = vsub.s32 %v5560, %v5562
    %v5564 = vrot.slane %v5556, %v5563
    %v5566 = vunpack.c.l.s4 1983009808
    %v5567 = vunpack.c.0.s8 %v5566
    %v5568 = vlaneseq
    %v5569 = vshrl.u32 %v5568, 7
    %v5570 = vsub.s32 %v5567, %v5569
    %v5571 = vrot.slane %v5557, %v5570
    %v5572 = vcombine.low %v5099, %v5115
    %v5573 = vcombine.high %v5099, %v5115
    %v5575 = vunpack.c.l.s4 1983009808
    %v5576 = vunpack.c.0.s8 %v5575
    %v5577 = vlaneseq
    %v5578 = vshrl.u32 %v5577, 7
    %v5579 = vsub.s32 %v5576, %v5578
    %v5580 = vrot.slane %v5572, %v5579
    %v5582 = vunpack.c.l.s4 1983009808
    %v5583 = vunpack.c.0.s8 %v5582
    %v5584 = vlaneseq
    %v5585 = vshrl.u32 %v5584, 7
    %v5586 = vsub.s32 %v5583, %v5585
    %v5587 = vrot.slane %v5573, %v5586
    %v5588 = vcombine.low %v5123, %v5139
    %v5589 = vcombine.high %v5123, %v5139
    %v5591 = vunpack.c.l.s4 1983009808
    %v5592 = vunpack.c.0.s8 %v5591
    %v5593 = vlaneseq
    %v5594 = vshrl.u32 %v5593, 7
    %v5595 = vsub.s32 %v5592, %v5594
    %v5596 = vrot.slane %v5588, %v5595
    %v5598 = vunpack.c.l.s4 1983009808
    %v5599 = vunpack.c.0.s8 %v5598
    %v5600 = vlaneseq
    %v5601 = vshrl.u32 %v5600, 7
    %v5602 = vsub.s32 %v5599, %v5601
    %v5603 = vrot.slane %v5589, %v5602
    %v5604 = vcombine.low %v5131, %v5147
    %v5605 = vcombine.high %v5131, %v5147
    %v5607 = vunpack.c.l.s4 1983009808
    %v5608 = vunpack.c.0.s8 %v5607
    %v5609 = vlaneseq
    %v5610 = vshrl.u32 %v5609, 7
    %v5611 = vsub.s32 %v5608, %v5610
    %v5612 = vrot.slane %v5604, %v5611
    %v5614 = vunpack.c.l.s4 1983009808
    %v5615 = vunpack.c.0.s8 %v5614
    %v5616 = vlaneseq
    %v5617 = vshrl.u32 %v5616, 7
    %v5618 = vsub.s32 %v5615, %v5617
    %v5619 = vrot.slane %v5605, %v5618
    %v5620 = vcombine.low %v5564, %v5580
    %v5621 = vcombine.high %v5564, %v5580
    %v5623 = vunpack.c.l.s4 1934713408
    %v5624 = vunpack.c.0.s8 %v5623
    %v5625 = vlaneseq
    %v5626 = vshrl.u32 %v5625, 7
    %v5627 = vsub.s32 %v5624, %v5626
    %v5628 = vrot.slane %v5620, %v5627
    %v5630 = vunpack.c.l.s4 1934713408
    %v5631 = vunpack.c.0.s8 %v5630
    %v5632 = vlaneseq
    %v5633 = vshrl.u32 %v5632, 7
    %v5634 = vsub.s32 %v5631, %v5633
    %v5635 = vrot.slane %v5621, %v5634
    %v5636 = vcombine.low %v5571, %v5587
    %v5637 = vcombine.high %v5571, %v5587
    %v5639 = vunpack.c.l.s4 1934713408
    %v5640 = vunpack.c.0.s8 %v5639
    %v5641 = vlaneseq
    %v5642 = vshrl.u32 %v5641, 7
    %v5643 = vsub.s32 %v5640, %v5642
    %v5644 = vrot.slane %v5636, %v5643
    %v5646 = vunpack.c.l.s4 1934713408
    %v5647 = vunpack.c.0.s8 %v5646
    %v5648 = vlaneseq
    %v5649 = vshrl.u32 %v5648, 7
    %v5650 = vsub.s32 %v5647, %v5649
    %v5651 = vrot.slane %v5637, %v5650
    %v5652 = vcombine.low %v5596, %v5612
    %v5653 = vcombine.high %v5596, %v5612
    %v5655 = vunpack.c.l.s4 1934713408
    %v5656 = vunpack.c.0.s8 %v5655
    %v5657 = vlaneseq
    %v5658 = vshrl.u32 %v5657, 7
    %v5659 = vsub.s32 %v5656, %v5658
    %v5660 = vrot.slane %v5652, %v5659
    %v5662 = vunpack.c.l.s4 1934713408
    %v5663 = vunpack.c.0.s8 %v5662
    %v5664 = vlaneseq
    %v5665 = vshrl.u32 %v5664, 7
    %v5666 = vsub.s32 %v5663, %v5665
    %v5667 = vrot.slane %v5653, %v5666
    %v5668 = vcombine.low %v5603, %v5619
    %v5669 = vcombine.high %v5603, %v5619
    %v5671 = vunpack.c.l.s4 1934713408
    %v5672 = vunpack.c.0.s8 %v5671
    %v5673 = vlaneseq
    %v5674 = vshrl.u32 %v5673, 7
    %v5675 = vsub.s32 %v5672, %v5674
    %v5676 = vrot.slane %v5668, %v5675
    %v5678 = vunpack.c.l.s4 1934713408
    %v5679 = vunpack.c.0.s8 %v5678
    %v5680 = vlaneseq
    %v5681 = vshrl.u32 %v5680, 7
    %v5682 = vsub.s32 %v5679, %v5681
    %v5683 = vrot.slane %v5669, %v5682
    %v5684 = vcombine.low %v5628, %v5660
    %v5685 = vcombine.high %v5628, %v5660
    %v5686 = vcombine.low %v5635, %v5667
    %v5687 = vcombine.high %v5635, %v5667
    %v5688 = vcombine.low %v5644, %v5676
    %v5689 = vcombine.high %v5644, %v5676
    %v5690 = vcombine.low %v5651, %v5683
    %v5691 = vcombine.high %v5651, %v5683
    %5694 = vrot.lane.b32.xlu0 %v5277, 2
    %v5695 = vpop.permute.xlu0 %5694
    %5696 = vrot.lane.b32.xlu0 %v5413, 2
    %v5697 = vpop.permute.xlu0 %5696
    %5702 = vrot.lane.b32.xlu0 %v5278, 4
    %v5703 = vpop.permute.xlu0 %5702
    %5704 = vrot.lane.b32.xlu0 %v5414, 4
    %v5705 = vpop.permute.xlu0 %5704
    %5710 = vrot.lane.b32.xlu0 %v5279, 6
    %v5711 = vpop.permute.xlu0 %5710
    %5712 = vrot.lane.b32.xlu0 %v5415, 6
    %v5713 = vpop.permute.xlu0 %5712
    %5718 = vrot.lane.b32.xlu0 %v5280, 8
    %v5719 = vpop.permute.xlu0 %5718
    %5720 = vrot.lane.b32.xlu0 %v5416, 8
    %v5721 = vpop.permute.xlu0 %5720
    %5726 = vrot.lane.b32.xlu0 %v5281, 10
    %v5727 = vpop.permute.xlu0 %5726
    %5728 = vrot.lane.b32.xlu0 %v5417, 10
    %v5729 = vpop.permute.xlu0 %5728
    %5734 = vrot.lane.b32.xlu0 %v5282, 12
    %v5735 = vpop.permute.xlu0 %5734
    %5736 = vrot.lane.b32.xlu0 %v5418, 12
    %v5737 = vpop.permute.xlu0 %5736
    %5742 = vrot.lane.b32.xlu0 %v5283, 14
    %v5743 = vpop.permute.xlu0 %5742
    %5744 = vrot.lane.b32.xlu0 %v5419, 14
    %v5745 = vpop.permute.xlu0 %5744
    %5750 = vrot.lane.b32.xlu0 %v5548, 16
    %v5751 = vpop.permute.xlu0 %5750
    %5752 = vrot.lane.b32.xlu0 %v5684, 16
    %v5753 = vpop.permute.xlu0 %5752
    %5758 = vrot.lane.b32.xlu0 %v5549, 18
    %v5759 = vpop.permute.xlu0 %5758
    %5760 = vrot.lane.b32.xlu0 %v5685, 18
    %v5761 = vpop.permute.xlu0 %5760
    %5766 = vrot.lane.b32.xlu0 %v5550, 20
    %v5767 = vpop.permute.xlu0 %5766
    %5768 = vrot.lane.b32.xlu0 %v5686, 20
    %v5769 = vpop.permute.xlu0 %5768
    %5774 = vrot.lane.b32.xlu0 %v5551, 22
    %v5775 = vpop.permute.xlu0 %5774
    %5776 = vrot.lane.b32.xlu0 %v5687, 22
    %v5777 = vpop.permute.xlu0 %5776
    %5782 = vrot.lane.b32.xlu0 %v5552, 24
    %v5783 = vpop.permute.xlu0 %5782
    %5784 = vrot.lane.b32.xlu0 %v5688, 24
    %v5785 = vpop.permute.xlu0 %5784
    %5790 = vrot.lane.b32.xlu0 %v5553, 26
    %v5791 = vpop.permute.xlu0 %5790
    %5792 = vrot.lane.b32.xlu0 %v5689, 26
    %v5793 = vpop.permute.xlu0 %5792
    %5798 = vrot.lane.b32.xlu0 %v5554, 28
    %v5799 = vpop.permute.xlu0 %5798
    %5800 = vrot.lane.b32.xlu0 %v5690, 28
    %v5801 = vpop.permute.xlu0 %5800
    %5806 = vrot.lane.b32.xlu0 %v5555, 30
    %v5807 = vpop.permute.xlu0 %5806
    %5808 = vrot.lane.b32.xlu0 %v5691, 30
    %v5809 = vpop.permute.xlu0 %5808
    %v5812 = vsel %vm865, %v5276, %v5695
    %v5813 = vsel %vm865, %v5412, %v5697
    %v5814 = vsel %vm868, %v5812, %v5703
    %v5815 = vsel %vm868, %v5813, %v5705
    %v5816 = vsel %vm871, %v5814, %v5711
    %v5817 = vsel %vm871, %v5815, %v5713
    %v5818 = vsel %vm874, %v5816, %v5719
    %v5819 = vsel %vm874, %v5817, %v5721
    %v5820 = vsel %vm877, %v5818, %v5727
    %v5821 = vsel %vm877, %v5819, %v5729
    %v5822 = vsel %vm880, %v5820, %v5735
    %v5823 = vsel %vm880, %v5821, %v5737
    %v5824 = vsel %vm883, %v5822, %v5743
    %v5825 = vsel %vm883, %v5823, %v5745
    %v5826 = vsel %vm886, %v5824, %v5751
    %v5827 = vsel %vm886, %v5825, %v5753
    %v5828 = vsel %vm889, %v5826, %v5759
    %v5829 = vsel %vm889, %v5827, %v5761
    %v5830 = vsel %vm892, %v5828, %v5767
    %v5831 = vsel %vm892, %v5829, %v5769
    %v5832 = vsel %vm895, %v5830, %v5775
    %v5833 = vsel %vm895, %v5831, %v5777
    %v5834 = vsel %vm898, %v5832, %v5783
    %v5835 = vsel %vm898, %v5833, %v5785
    %v5836 = vsel %vm901, %v5834, %v5791
    %v5837 = vsel %vm901, %v5835, %v5793
    %v5838 = vsel %vm904, %v5836, %v5799
    %v5839 = vsel %vm904, %v5837, %v5801
    %v5840 = vsel %vm907, %v5838, %v5807
    %v5841 = vsel %vm907, %v5839, %v5809
    %s5843 = sor.u32 256, 112
    %5844 = vbcast.lane.b32.xlu0 %v28, %s5843
    %v5845 = vpop.permute.xlu0 %5844
    %s5847 = sor.u32 256, 120
    %5848 = vbcast.lane.b32.xlu0 %v28, %s5847
    %v5849 = vpop.permute.xlu0 %5848
    %s5851 = sor.u32 256, 112
    %5852 = vbcast.lane.b32.xlu0 %v39, %s5851
    %v5853 = vpop.permute.xlu0 %5852
    %s5855 = sor.u32 256, 120
    %5856 = vbcast.lane.b32.xlu0 %v39, %s5855
    %v5857 = vpop.permute.xlu0 %5856
    %s5859 = sor.u32 256, 112
    %5860 = vbcast.lane.b32.xlu0 %v50, %s5859
    %v5861 = vpop.permute.xlu0 %5860
    %s5863 = sor.u32 256, 120
    %5864 = vbcast.lane.b32.xlu0 %v50, %s5863
    %v5865 = vpop.permute.xlu0 %5864
    %s5867 = sor.u32 256, 112
    %5868 = vbcast.lane.b32.xlu0 %v61, %s5867
    %v5869 = vpop.permute.xlu0 %5868
    %s5871 = sor.u32 256, 120
    %5872 = vbcast.lane.b32.xlu0 %v61, %s5871
    %v5873 = vpop.permute.xlu0 %5872
    %s5875 = sor.u32 256, 112
    %5876 = vbcast.lane.b32.xlu0 %v72, %s5875
    %v5877 = vpop.permute.xlu0 %5876
    %s5879 = sor.u32 256, 120
    %5880 = vbcast.lane.b32.xlu0 %v72, %s5879
    %v5881 = vpop.permute.xlu0 %5880
    %s5883 = sor.u32 256, 112
    %5884 = vbcast.lane.b32.xlu0 %v83, %s5883
    %v5885 = vpop.permute.xlu0 %5884
    %s5887 = sor.u32 256, 120
    %5888 = vbcast.lane.b32.xlu0 %v83, %s5887
    %v5889 = vpop.permute.xlu0 %5888
    %s5891 = sor.u32 256, 112
    %5892 = vbcast.lane.b32.xlu0 %v94, %s5891
    %v5893 = vpop.permute.xlu0 %5892
    %s5895 = sor.u32 256, 120
    %5896 = vbcast.lane.b32.xlu0 %v94, %s5895
    %v5897 = vpop.permute.xlu0 %5896
    %s5899 = sor.u32 256, 112
    %5900 = vbcast.lane.b32.xlu0 %v105, %s5899
    %v5901 = vpop.permute.xlu0 %5900
    %s5903 = sor.u32 256, 120
    %5904 = vbcast.lane.b32.xlu0 %v105, %s5903
    %v5905 = vpop.permute.xlu0 %5904
    %s5907 = sor.u32 256, 112
    %5908 = vbcast.lane.b32.xlu0 %v116, %s5907
    %v5909 = vpop.permute.xlu0 %5908
    %s5911 = sor.u32 256, 120
    %5912 = vbcast.lane.b32.xlu0 %v116, %s5911
    %v5913 = vpop.permute.xlu0 %5912
    %s5915 = sor.u32 256, 112
    %5916 = vbcast.lane.b32.xlu0 %v127, %s5915
    %v5917 = vpop.permute.xlu0 %5916
    %s5919 = sor.u32 256, 120
    %5920 = vbcast.lane.b32.xlu0 %v127, %s5919
    %v5921 = vpop.permute.xlu0 %5920
    %s5923 = sor.u32 256, 112
    %5924 = vbcast.lane.b32.xlu0 %v138, %s5923
    %v5925 = vpop.permute.xlu0 %5924
    %s5927 = sor.u32 256, 120
    %5928 = vbcast.lane.b32.xlu0 %v138, %s5927
    %v5929 = vpop.permute.xlu0 %5928
    %s5931 = sor.u32 256, 112
    %5932 = vbcast.lane.b32.xlu0 %v149, %s5931
    %v5933 = vpop.permute.xlu0 %5932
    %s5935 = sor.u32 256, 120
    %5936 = vbcast.lane.b32.xlu0 %v149, %s5935
    %v5937 = vpop.permute.xlu0 %5936
    %s5939 = sor.u32 256, 112
    %5940 = vbcast.lane.b32.xlu0 %v160, %s5939
    %v5941 = vpop.permute.xlu0 %5940
    %s5943 = sor.u32 256, 120
    %5944 = vbcast.lane.b32.xlu0 %v160, %s5943
    %v5945 = vpop.permute.xlu0 %5944
    %s5947 = sor.u32 256, 112
    %5948 = vbcast.lane.b32.xlu0 %v171, %s5947
    %v5949 = vpop.permute.xlu0 %5948
    %s5951 = sor.u32 256, 120
    %5952 = vbcast.lane.b32.xlu0 %v171, %s5951
    %v5953 = vpop.permute.xlu0 %5952
    %s5955 = sor.u32 256, 112
    %5956 = vbcast.lane.b32.xlu0 %v182, %s5955
    %v5957 = vpop.permute.xlu0 %5956
    %s5959 = sor.u32 256, 120
    %5960 = vbcast.lane.b32.xlu0 %v182, %s5959
    %v5961 = vpop.permute.xlu0 %5960
    %s5963 = sor.u32 256, 112
    %5964 = vbcast.lane.b32.xlu0 %v193, %s5963
    %v5965 = vpop.permute.xlu0 %5964
    %s5967 = sor.u32 256, 120
    %5968 = vbcast.lane.b32.xlu0 %v193, %s5967
    %v5969 = vpop.permute.xlu0 %5968
    %v5970 = vcombine.low %v5845, %v5861
    %v5971 = vcombine.high %v5845, %v5861
    %v5973 = vunpack.c.l.s4 1983009808
    %v5974 = vunpack.c.0.s8 %v5973
    %v5975 = vlaneseq
    %v5976 = vshrl.u32 %v5975, 7
    %v5977 = vsub.s32 %v5974, %v5976
    %v5978 = vrot.slane %v5970, %v5977
    %v5980 = vunpack.c.l.s4 1983009808
    %v5981 = vunpack.c.0.s8 %v5980
    %v5982 = vlaneseq
    %v5983 = vshrl.u32 %v5982, 7
    %v5984 = vsub.s32 %v5981, %v5983
    %v5985 = vrot.slane %v5971, %v5984
    %v5986 = vcombine.low %v5853, %v5869
    %v5987 = vcombine.high %v5853, %v5869
    %v5989 = vunpack.c.l.s4 1983009808
    %v5990 = vunpack.c.0.s8 %v5989
    %v5991 = vlaneseq
    %v5992 = vshrl.u32 %v5991, 7
    %v5993 = vsub.s32 %v5990, %v5992
    %v5994 = vrot.slane %v5986, %v5993
    %v5996 = vunpack.c.l.s4 1983009808
    %v5997 = vunpack.c.0.s8 %v5996
    %v5998 = vlaneseq
    %v5999 = vshrl.u32 %v5998, 7
    %v6000 = vsub.s32 %v5997, %v5999
    %v6001 = vrot.slane %v5987, %v6000
    %v6002 = vcombine.low %v5877, %v5893
    %v6003 = vcombine.high %v5877, %v5893
    %v6005 = vunpack.c.l.s4 1983009808
    %v6006 = vunpack.c.0.s8 %v6005
    %v6007 = vlaneseq
    %v6008 = vshrl.u32 %v6007, 7
    %v6009 = vsub.s32 %v6006, %v6008
    %v6010 = vrot.slane %v6002, %v6009
    %v6012 = vunpack.c.l.s4 1983009808
    %v6013 = vunpack.c.0.s8 %v6012
    %v6014 = vlaneseq
    %v6015 = vshrl.u32 %v6014, 7
    %v6016 = vsub.s32 %v6013, %v6015
    %v6017 = vrot.slane %v6003, %v6016
    %v6018 = vcombine.low %v5885, %v5901
    %v6019 = vcombine.high %v5885, %v5901
    %v6021 = vunpack.c.l.s4 1983009808
    %v6022 = vunpack.c.0.s8 %v6021
    %v6023 = vlaneseq
    %v6024 = vshrl.u32 %v6023, 7
    %v6025 = vsub.s32 %v6022, %v6024
    %v6026 = vrot.slane %v6018, %v6025
    %v6028 = vunpack.c.l.s4 1983009808
    %v6029 = vunpack.c.0.s8 %v6028
    %v6030 = vlaneseq
    %v6031 = vshrl.u32 %v6030, 7
    %v6032 = vsub.s32 %v6029, %v6031
    %v6033 = vrot.slane %v6019, %v6032
    %v6034 = vcombine.low %v5978, %v5994
    %v6035 = vcombine.high %v5978, %v5994
    %v6037 = vunpack.c.l.s4 1934713408
    %v6038 = vunpack.c.0.s8 %v6037
    %v6039 = vlaneseq
    %v6040 = vshrl.u32 %v6039, 7
    %v6041 = vsub.s32 %v6038, %v6040
    %v6042 = vrot.slane %v6034, %v6041
    %v6044 = vunpack.c.l.s4 1934713408
    %v6045 = vunpack.c.0.s8 %v6044
    %v6046 = vlaneseq
    %v6047 = vshrl.u32 %v6046, 7
    %v6048 = vsub.s32 %v6045, %v6047
    %v6049 = vrot.slane %v6035, %v6048
    %v6050 = vcombine.low %v5985, %v6001
    %v6051 = vcombine.high %v5985, %v6001
    %v6053 = vunpack.c.l.s4 1934713408
    %v6054 = vunpack.c.0.s8 %v6053
    %v6055 = vlaneseq
    %v6056 = vshrl.u32 %v6055, 7
    %v6057 = vsub.s32 %v6054, %v6056
    %v6058 = vrot.slane %v6050, %v6057
    %v6060 = vunpack.c.l.s4 1934713408
    %v6061 = vunpack.c.0.s8 %v6060
    %v6062 = vlaneseq
    %v6063 = vshrl.u32 %v6062, 7
    %v6064 = vsub.s32 %v6061, %v6063
    %v6065 = vrot.slane %v6051, %v6064
    %v6066 = vcombine.low %v6010, %v6026
    %v6067 = vcombine.high %v6010, %v6026
    %v6069 = vunpack.c.l.s4 1934713408
    %v6070 = vunpack.c.0.s8 %v6069
    %v6071 = vlaneseq
    %v6072 = vshrl.u32 %v6071, 7
    %v6073 = vsub.s32 %v6070, %v6072
    %v6074 = vrot.slane %v6066, %v6073
    %v6076 = vunpack.c.l.s4 1934713408
    %v6077 = vunpack.c.0.s8 %v6076
    %v6078 = vlaneseq
    %v6079 = vshrl.u32 %v6078, 7
    %v6080 = vsub.s32 %v6077, %v6079
    %v6081 = vrot.slane %v6067, %v6080
    %v6082 = vcombine.low %v6017, %v6033
    %v6083 = vcombine.high %v6017, %v6033
    %v6085 = vunpack.c.l.s4 1934713408
    %v6086 = vunpack.c.0.s8 %v6085
    %v6087 = vlaneseq
    %v6088 = vshrl.u32 %v6087, 7
    %v6089 = vsub.s32 %v6086, %v6088
    %v6090 = vrot.slane %v6082, %v6089
    %v6092 = vunpack.c.l.s4 1934713408
    %v6093 = vunpack.c.0.s8 %v6092
    %v6094 = vlaneseq
    %v6095 = vshrl.u32 %v6094, 7
    %v6096 = vsub.s32 %v6093, %v6095
    %v6097 = vrot.slane %v6083, %v6096
    %v6098 = vcombine.low %v6042, %v6074
    %v6099 = vcombine.high %v6042, %v6074
    %v6100 = vcombine.low %v6049, %v6081
    %v6101 = vcombine.high %v6049, %v6081
    %v6102 = vcombine.low %v6058, %v6090
    %v6103 = vcombine.high %v6058, %v6090
    %v6104 = vcombine.low %v6065, %v6097
    %v6105 = vcombine.high %v6065, %v6097
    %v6106 = vcombine.low %v5909, %v5925
    %v6107 = vcombine.high %v5909, %v5925
    %v6109 = vunpack.c.l.s4 1983009808
    %v6110 = vunpack.c.0.s8 %v6109
    %v6111 = vlaneseq
    %v6112 = vshrl.u32 %v6111, 7
    %v6113 = vsub.s32 %v6110, %v6112
    %v6114 = vrot.slane %v6106, %v6113
    %v6116 = vunpack.c.l.s4 1983009808
    %v6117 = vunpack.c.0.s8 %v6116
    %v6118 = vlaneseq
    %v6119 = vshrl.u32 %v6118, 7
    %v6120 = vsub.s32 %v6117, %v6119
    %v6121 = vrot.slane %v6107, %v6120
    %v6122 = vcombine.low %v5917, %v5933
    %v6123 = vcombine.high %v5917, %v5933
    %v6125 = vunpack.c.l.s4 1983009808
    %v6126 = vunpack.c.0.s8 %v6125
    %v6127 = vlaneseq
    %v6128 = vshrl.u32 %v6127, 7
    %v6129 = vsub.s32 %v6126, %v6128
    %v6130 = vrot.slane %v6122, %v6129
    %v6132 = vunpack.c.l.s4 1983009808
    %v6133 = vunpack.c.0.s8 %v6132
    %v6134 = vlaneseq
    %v6135 = vshrl.u32 %v6134, 7
    %v6136 = vsub.s32 %v6133, %v6135
    %v6137 = vrot.slane %v6123, %v6136
    %v6138 = vcombine.low %v5941, %v5957
    %v6139 = vcombine.high %v5941, %v5957
    %v6141 = vunpack.c.l.s4 1983009808
    %v6142 = vunpack.c.0.s8 %v6141
    %v6143 = vlaneseq
    %v6144 = vshrl.u32 %v6143, 7
    %v6145 = vsub.s32 %v6142, %v6144
    %v6146 = vrot.slane %v6138, %v6145
    %v6148 = vunpack.c.l.s4 1983009808
    %v6149 = vunpack.c.0.s8 %v6148
    %v6150 = vlaneseq
    %v6151 = vshrl.u32 %v6150, 7
    %v6152 = vsub.s32 %v6149, %v6151
    %v6153 = vrot.slane %v6139, %v6152
    %v6154 = vcombine.low %v5949, %v5965
    %v6155 = vcombine.high %v5949, %v5965
    %v6157 = vunpack.c.l.s4 1983009808
    %v6158 = vunpack.c.0.s8 %v6157
    %v6159 = vlaneseq
    %v6160 = vshrl.u32 %v6159, 7
    %v6161 = vsub.s32 %v6158, %v6160
    %v6162 = vrot.slane %v6154, %v6161
    %v6164 = vunpack.c.l.s4 1983009808
    %v6165 = vunpack.c.0.s8 %v6164
    %v6166 = vlaneseq
    %v6167 = vshrl.u32 %v6166, 7
    %v6168 = vsub.s32 %v6165, %v6167
    %v6169 = vrot.slane %v6155, %v6168
    %v6170 = vcombine.low %v6114, %v6130
    %v6171 = vcombine.high %v6114, %v6130
    %v6173 = vunpack.c.l.s4 1934713408
    %v6174 = vunpack.c.0.s8 %v6173
    %v6175 = vlaneseq
    %v6176 = vshrl.u32 %v6175, 7
    %v6177 = vsub.s32 %v6174, %v6176
    %v6178 = vrot.slane %v6170, %v6177
    %v6180 = vunpack.c.l.s4 1934713408
    %v6181 = vunpack.c.0.s8 %v6180
    %v6182 = vlaneseq
    %v6183 = vshrl.u32 %v6182, 7
    %v6184 = vsub.s32 %v6181, %v6183
    %v6185 = vrot.slane %v6171, %v6184
    %v6186 = vcombine.low %v6121, %v6137
    %v6187 = vcombine.high %v6121, %v6137
    %v6189 = vunpack.c.l.s4 1934713408
    %v6190 = vunpack.c.0.s8 %v6189
    %v6191 = vlaneseq
    %v6192 = vshrl.u32 %v6191, 7
    %v6193 = vsub.s32 %v6190, %v6192
    %v6194 = vrot.slane %v6186, %v6193
    %v6196 = vunpack.c.l.s4 1934713408
    %v6197 = vunpack.c.0.s8 %v6196
    %v6198 = vlaneseq
    %v6199 = vshrl.u32 %v6198, 7
    %v6200 = vsub.s32 %v6197, %v6199
    %v6201 = vrot.slane %v6187, %v6200
    %v6202 = vcombine.low %v6146, %v6162
    %v6203 = vcombine.high %v6146, %v6162
    %v6205 = vunpack.c.l.s4 1934713408
    %v6206 = vunpack.c.0.s8 %v6205
    %v6207 = vlaneseq
    %v6208 = vshrl.u32 %v6207, 7
    %v6209 = vsub.s32 %v6206, %v6208
    %v6210 = vrot.slane %v6202, %v6209
    %v6212 = vunpack.c.l.s4 1934713408
    %v6213 = vunpack.c.0.s8 %v6212
    %v6214 = vlaneseq
    %v6215 = vshrl.u32 %v6214, 7
    %v6216 = vsub.s32 %v6213, %v6215
    %v6217 = vrot.slane %v6203, %v6216
    %v6218 = vcombine.low %v6153, %v6169
    %v6219 = vcombine.high %v6153, %v6169
    %v6221 = vunpack.c.l.s4 1934713408
    %v6222 = vunpack.c.0.s8 %v6221
    %v6223 = vlaneseq
    %v6224 = vshrl.u32 %v6223, 7
    %v6225 = vsub.s32 %v6222, %v6224
    %v6226 = vrot.slane %v6218, %v6225
    %v6228 = vunpack.c.l.s4 1934713408
    %v6229 = vunpack.c.0.s8 %v6228
    %v6230 = vlaneseq
    %v6231 = vshrl.u32 %v6230, 7
    %v6232 = vsub.s32 %v6229, %v6231
    %v6233 = vrot.slane %v6219, %v6232
    %v6234 = vcombine.low %v6178, %v6210
    %v6235 = vcombine.high %v6178, %v6210
    %v6236 = vcombine.low %v6185, %v6217
    %v6237 = vcombine.high %v6185, %v6217
    %v6238 = vcombine.low %v6194, %v6226
    %v6239 = vcombine.high %v6194, %v6226
    %v6240 = vcombine.low %v6201, %v6233
    %v6241 = vcombine.high %v6201, %v6233
    %v6242 = vcombine.low %v5849, %v5865
    %v6243 = vcombine.high %v5849, %v5865
    %v6245 = vunpack.c.l.s4 1983009808
    %v6246 = vunpack.c.0.s8 %v6245
    %v6247 = vlaneseq
    %v6248 = vshrl.u32 %v6247, 7
    %v6249 = vsub.s32 %v6246, %v6248
    %v6250 = vrot.slane %v6242, %v6249
    %v6252 = vunpack.c.l.s4 1983009808
    %v6253 = vunpack.c.0.s8 %v6252
    %v6254 = vlaneseq
    %v6255 = vshrl.u32 %v6254, 7
    %v6256 = vsub.s32 %v6253, %v6255
    %v6257 = vrot.slane %v6243, %v6256
    %v6258 = vcombine.low %v5857, %v5873
    %v6259 = vcombine.high %v5857, %v5873
    %v6261 = vunpack.c.l.s4 1983009808
    %v6262 = vunpack.c.0.s8 %v6261
    %v6263 = vlaneseq
    %v6264 = vshrl.u32 %v6263, 7
    %v6265 = vsub.s32 %v6262, %v6264
    %v6266 = vrot.slane %v6258, %v6265
    %v6268 = vunpack.c.l.s4 1983009808
    %v6269 = vunpack.c.0.s8 %v6268
    %v6270 = vlaneseq
    %v6271 = vshrl.u32 %v6270, 7
    %v6272 = vsub.s32 %v6269, %v6271
    %v6273 = vrot.slane %v6259, %v6272
    %v6274 = vcombine.low %v5881, %v5897
    %v6275 = vcombine.high %v5881, %v5897
    %v6277 = vunpack.c.l.s4 1983009808
    %v6278 = vunpack.c.0.s8 %v6277
    %v6279 = vlaneseq
    %v6280 = vshrl.u32 %v6279, 7
    %v6281 = vsub.s32 %v6278, %v6280
    %v6282 = vrot.slane %v6274, %v6281
    %v6284 = vunpack.c.l.s4 1983009808
    %v6285 = vunpack.c.0.s8 %v6284
    %v6286 = vlaneseq
    %v6287 = vshrl.u32 %v6286, 7
    %v6288 = vsub.s32 %v6285, %v6287
    %v6289 = vrot.slane %v6275, %v6288
    %v6290 = vcombine.low %v5889, %v5905
    %v6291 = vcombine.high %v5889, %v5905
    %v6293 = vunpack.c.l.s4 1983009808
    %v6294 = vunpack.c.0.s8 %v6293
    %v6295 = vlaneseq
    %v6296 = vshrl.u32 %v6295, 7
    %v6297 = vsub.s32 %v6294, %v6296
    %v6298 = vrot.slane %v6290, %v6297
    %v6300 = vunpack.c.l.s4 1983009808
    %v6301 = vunpack.c.0.s8 %v6300
    %v6302 = vlaneseq
    %v6303 = vshrl.u32 %v6302, 7
    %v6304 = vsub.s32 %v6301, %v6303
    %v6305 = vrot.slane %v6291, %v6304
    %v6306 = vcombine.low %v6250, %v6266
    %v6307 = vcombine.high %v6250, %v6266
    %v6309 = vunpack.c.l.s4 1934713408
    %v6310 = vunpack.c.0.s8 %v6309
    %v6311 = vlaneseq
    %v6312 = vshrl.u32 %v6311, 7
    %v6313 = vsub.s32 %v6310, %v6312
    %v6314 = vrot.slane %v6306, %v6313
    %v6316 = vunpack.c.l.s4 1934713408
    %v6317 = vunpack.c.0.s8 %v6316
    %v6318 = vlaneseq
    %v6319 = vshrl.u32 %v6318, 7
    %v6320 = vsub.s32 %v6317, %v6319
    %v6321 = vrot.slane %v6307, %v6320
    %v6322 = vcombine.low %v6257, %v6273
    %v6323 = vcombine.high %v6257, %v6273
    %v6325 = vunpack.c.l.s4 1934713408
    %v6326 = vunpack.c.0.s8 %v6325
    %v6327 = vlaneseq
    %v6328 = vshrl.u32 %v6327, 7
    %v6329 = vsub.s32 %v6326, %v6328
    %v6330 = vrot.slane %v6322, %v6329
    %v6332 = vunpack.c.l.s4 1934713408
    %v6333 = vunpack.c.0.s8 %v6332
    %v6334 = vlaneseq
    %v6335 = vshrl.u32 %v6334, 7
    %v6336 = vsub.s32 %v6333, %v6335
    %v6337 = vrot.slane %v6323, %v6336
    %v6338 = vcombine.low %v6282, %v6298
    %v6339 = vcombine.high %v6282, %v6298
    %v6341 = vunpack.c.l.s4 1934713408
    %v6342 = vunpack.c.0.s8 %v6341
    %v6343 = vlaneseq
    %v6344 = vshrl.u32 %v6343, 7
    %v6345 = vsub.s32 %v6342, %v6344
    %v6346 = vrot.slane %v6338, %v6345
    %v6348 = vunpack.c.l.s4 1934713408
    %v6349 = vunpack.c.0.s8 %v6348
    %v6350 = vlaneseq
    %v6351 = vshrl.u32 %v6350, 7
    %v6352 = vsub.s32 %v6349, %v6351
    %v6353 = vrot.slane %v6339, %v6352
    %v6354 = vcombine.low %v6289, %v6305
    %v6355 = vcombine.high %v6289, %v6305
    %v6357 = vunpack.c.l.s4 1934713408
    %v6358 = vunpack.c.0.s8 %v6357
    %v6359 = vlaneseq
    %v6360 = vshrl.u32 %v6359, 7
    %v6361 = vsub.s32 %v6358, %v6360
    %v6362 = vrot.slane %v6354, %v6361
    %v6364 = vunpack.c.l.s4 1934713408
    %v6365 = vunpack.c.0.s8 %v6364
    %v6366 = vlaneseq
    %v6367 = vshrl.u32 %v6366, 7
    %v6368 = vsub.s32 %v6365, %v6367
    %v6369 = vrot.slane %v6355, %v6368
    %v6370 = vcombine.low %v6314, %v6346
    %v6371 = vcombine.high %v6314, %v6346
    %v6372 = vcombine.low %v6321, %v6353
    %v6373 = vcombine.high %v6321, %v6353
    %v6374 = vcombine.low %v6330, %v6362
    %v6375 = vcombine.high %v6330, %v6362
    %v6376 = vcombine.low %v6337, %v6369
    %v6377 = vcombine.high %v6337, %v6369
    %v6378 = vcombine.low %v5913, %v5929
    %v6379 = vcombine.high %v5913, %v5929
    %v6381 = vunpack.c.l.s4 1983009808
    %v6382 = vunpack.c.0.s8 %v6381
    %v6383 = vlaneseq
    %v6384 = vshrl.u32 %v6383, 7
    %v6385 = vsub.s32 %v6382, %v6384
    %v6386 = vrot.slane %v6378, %v6385
    %v6388 = vunpack.c.l.s4 1983009808
    %v6389 = vunpack.c.0.s8 %v6388
    %v6390 = vlaneseq
    %v6391 = vshrl.u32 %v6390, 7
    %v6392 = vsub.s32 %v6389, %v6391
    %v6393 = vrot.slane %v6379, %v6392
    %v6394 = vcombine.low %v5921, %v5937
    %v6395 = vcombine.high %v5921, %v5937
    %v6397 = vunpack.c.l.s4 1983009808
    %v6398 = vunpack.c.0.s8 %v6397
    %v6399 = vlaneseq
    %v6400 = vshrl.u32 %v6399, 7
    %v6401 = vsub.s32 %v6398, %v6400
    %v6402 = vrot.slane %v6394, %v6401
    %v6404 = vunpack.c.l.s4 1983009808
    %v6405 = vunpack.c.0.s8 %v6404
    %v6406 = vlaneseq
    %v6407 = vshrl.u32 %v6406, 7
    %v6408 = vsub.s32 %v6405, %v6407
    %v6409 = vrot.slane %v6395, %v6408
    %v6410 = vcombine.low %v5945, %v5961
    %v6411 = vcombine.high %v5945, %v5961
    %v6413 = vunpack.c.l.s4 1983009808
    %v6414 = vunpack.c.0.s8 %v6413
    %v6415 = vlaneseq
    %v6416 = vshrl.u32 %v6415, 7
    %v6417 = vsub.s32 %v6414, %v6416
    %v6418 = vrot.slane %v6410, %v6417
    %v6420 = vunpack.c.l.s4 1983009808
    %v6421 = vunpack.c.0.s8 %v6420
    %v6422 = vlaneseq
    %v6423 = vshrl.u32 %v6422, 7
    %v6424 = vsub.s32 %v6421, %v6423
    %v6425 = vrot.slane %v6411, %v6424
    %v6426 = vcombine.low %v5953, %v5969
    %v6427 = vcombine.high %v5953, %v5969
    %v6429 = vunpack.c.l.s4 1983009808
    %v6430 = vunpack.c.0.s8 %v6429
    %v6431 = vlaneseq
    %v6432 = vshrl.u32 %v6431, 7
    %v6433 = vsub.s32 %v6430, %v6432
    %v6434 = vrot.slane %v6426, %v6433
    %v6436 = vunpack.c.l.s4 1983009808
    %v6437 = vunpack.c.0.s8 %v6436
    %v6438 = vlaneseq
    %v6439 = vshrl.u32 %v6438, 7
    %v6440 = vsub.s32 %v6437, %v6439
    %v6441 = vrot.slane %v6427, %v6440
    %v6442 = vcombine.low %v6386, %v6402
    %v6443 = vcombine.high %v6386, %v6402
    %v6445 = vunpack.c.l.s4 1934713408
    %v6446 = vunpack.c.0.s8 %v6445
    %v6447 = vlaneseq
    %v6448 = vshrl.u32 %v6447, 7
    %v6449 = vsub.s32 %v6446, %v6448
    %v6450 = vrot.slane %v6442, %v6449
    %v6452 = vunpack.c.l.s4 1934713408
    %v6453 = vunpack.c.0.s8 %v6452
    %v6454 = vlaneseq
    %v6455 = vshrl.u32 %v6454, 7
    %v6456 = vsub.s32 %v6453, %v6455
    %v6457 = vrot.slane %v6443, %v6456
    %v6458 = vcombine.low %v6393, %v6409
    %v6459 = vcombine.high %v6393, %v6409
    %v6461 = vunpack.c.l.s4 1934713408
    %v6462 = vunpack.c.0.s8 %v6461
    %v6463 = vlaneseq
    %v6464 = vshrl.u32 %v6463, 7
    %v6465 = vsub.s32 %v6462, %v6464
    %v6466 = vrot.slane %v6458, %v6465
    %v6468 = vunpack.c.l.s4 1934713408
    %v6469 = vunpack.c.0.s8 %v6468
    %v6470 = vlaneseq
    %v6471 = vshrl.u32 %v6470, 7
    %v6472 = vsub.s32 %v6469, %v6471
    %v6473 = vrot.slane %v6459, %v6472
    %v6474 = vcombine.low %v6418, %v6434
    %v6475 = vcombine.high %v6418, %v6434
    %v6477 = vunpack.c.l.s4 1934713408
    %v6478 = vunpack.c.0.s8 %v6477
    %v6479 = vlaneseq
    %v6480 = vshrl.u32 %v6479, 7
    %v6481 = vsub.s32 %v6478, %v6480
    %v6482 = vrot.slane %v6474, %v6481
    %v6484 = vunpack.c.l.s4 1934713408
    %v6485 = vunpack.c.0.s8 %v6484
    %v6486 = vlaneseq
    %v6487 = vshrl.u32 %v6486, 7
    %v6488 = vsub.s32 %v6485, %v6487
    %v6489 = vrot.slane %v6475, %v6488
    %v6490 = vcombine.low %v6425, %v6441
    %v6491 = vcombine.high %v6425, %v6441
    %v6493 = vunpack.c.l.s4 1934713408
    %v6494 = vunpack.c.0.s8 %v6493
    %v6495 = vlaneseq
    %v6496 = vshrl.u32 %v6495, 7
    %v6497 = vsub.s32 %v6494, %v6496
    %v6498 = vrot.slane %v6490, %v6497
    %v6500 = vunpack.c.l.s4 1934713408
    %v6501 = vunpack.c.0.s8 %v6500
    %v6502 = vlaneseq
    %v6503 = vshrl.u32 %v6502, 7
    %v6504 = vsub.s32 %v6501, %v6503
    %v6505 = vrot.slane %v6491, %v6504
    %v6506 = vcombine.low %v6450, %v6482
    %v6507 = vcombine.high %v6450, %v6482
    %v6508 = vcombine.low %v6457, %v6489
    %v6509 = vcombine.high %v6457, %v6489
    %v6510 = vcombine.low %v6466, %v6498
    %v6511 = vcombine.high %v6466, %v6498
    %v6512 = vcombine.low %v6473, %v6505
    %v6513 = vcombine.high %v6473, %v6505
    %6516 = vrot.lane.b32.xlu0 %v6099, 2
    %v6517 = vpop.permute.xlu0 %6516
    %6518 = vrot.lane.b32.xlu0 %v6235, 2
    %v6519 = vpop.permute.xlu0 %6518
    %6524 = vrot.lane.b32.xlu0 %v6100, 4
    %v6525 = vpop.permute.xlu0 %6524
    %6526 = vrot.lane.b32.xlu0 %v6236, 4
    %v6527 = vpop.permute.xlu0 %6526
    %6532 = vrot.lane.b32.xlu0 %v6101, 6
    %v6533 = vpop.permute.xlu0 %6532
    %6534 = vrot.lane.b32.xlu0 %v6237, 6
    %v6535 = vpop.permute.xlu0 %6534
    %6540 = vrot.lane.b32.xlu0 %v6102, 8
    %v6541 = vpop.permute.xlu0 %6540
    %6542 = vrot.lane.b32.xlu0 %v6238, 8
    %v6543 = vpop.permute.xlu0 %6542
    %6548 = vrot.lane.b32.xlu0 %v6103, 10
    %v6549 = vpop.permute.xlu0 %6548
    %6550 = vrot.lane.b32.xlu0 %v6239, 10
    %v6551 = vpop.permute.xlu0 %6550
    %6556 = vrot.lane.b32.xlu0 %v6104, 12
    %v6557 = vpop.permute.xlu0 %6556
    %6558 = vrot.lane.b32.xlu0 %v6240, 12
    %v6559 = vpop.permute.xlu0 %6558
    %6564 = vrot.lane.b32.xlu0 %v6105, 14
    %v6565 = vpop.permute.xlu0 %6564
    %6566 = vrot.lane.b32.xlu0 %v6241, 14
    %v6567 = vpop.permute.xlu0 %6566
    %6572 = vrot.lane.b32.xlu0 %v6370, 16
    %v6573 = vpop.permute.xlu0 %6572
    %6574 = vrot.lane.b32.xlu0 %v6506, 16
    %v6575 = vpop.permute.xlu0 %6574
    %6580 = vrot.lane.b32.xlu0 %v6371, 18
    %v6581 = vpop.permute.xlu0 %6580
    %6582 = vrot.lane.b32.xlu0 %v6507, 18
    %v6583 = vpop.permute.xlu0 %6582
    %6588 = vrot.lane.b32.xlu0 %v6372, 20
    %v6589 = vpop.permute.xlu0 %6588
    %6590 = vrot.lane.b32.xlu0 %v6508, 20
    %v6591 = vpop.permute.xlu0 %6590
    %6596 = vrot.lane.b32.xlu0 %v6373, 22
    %v6597 = vpop.permute.xlu0 %6596
    %6598 = vrot.lane.b32.xlu0 %v6509, 22
    %v6599 = vpop.permute.xlu0 %6598
    %6604 = vrot.lane.b32.xlu0 %v6374, 24
    %v6605 = vpop.permute.xlu0 %6604
    %6606 = vrot.lane.b32.xlu0 %v6510, 24
    %v6607 = vpop.permute.xlu0 %6606
    %6612 = vrot.lane.b32.xlu0 %v6375, 26
    %v6613 = vpop.permute.xlu0 %6612
    %6614 = vrot.lane.b32.xlu0 %v6511, 26
    %v6615 = vpop.permute.xlu0 %6614
    %6620 = vrot.lane.b32.xlu0 %v6376, 28
    %v6621 = vpop.permute.xlu0 %6620
    %6622 = vrot.lane.b32.xlu0 %v6512, 28
    %v6623 = vpop.permute.xlu0 %6622
    %6628 = vrot.lane.b32.xlu0 %v6377, 30
    %v6629 = vpop.permute.xlu0 %6628
    %6630 = vrot.lane.b32.xlu0 %v6513, 30
    %v6631 = vpop.permute.xlu0 %6630
    %v6634 = vsel %vm865, %v6098, %v6517
    %v6635 = vsel %vm865, %v6234, %v6519
    %v6636 = vsel %vm868, %v6634, %v6525
    %v6637 = vsel %vm868, %v6635, %v6527
    %v6638 = vsel %vm871, %v6636, %v6533
    %v6639 = vsel %vm871, %v6637, %v6535
    %v6640 = vsel %vm874, %v6638, %v6541
    %v6641 = vsel %vm874, %v6639, %v6543
    %v6642 = vsel %vm877, %v6640, %v6549
    %v6643 = vsel %vm877, %v6641, %v6551
    %v6644 = vsel %vm880, %v6642, %v6557
    %v6645 = vsel %vm880, %v6643, %v6559
    %v6646 = vsel %vm883, %v6644, %v6565
    %v6647 = vsel %vm883, %v6645, %v6567
    %v6648 = vsel %vm886, %v6646, %v6573
    %v6649 = vsel %vm886, %v6647, %v6575
    %v6650 = vsel %vm889, %v6648, %v6581
    %v6651 = vsel %vm889, %v6649, %v6583
    %v6652 = vsel %vm892, %v6650, %v6589
    %v6653 = vsel %vm892, %v6651, %v6591
    %v6654 = vsel %vm895, %v6652, %v6597
    %v6655 = vsel %vm895, %v6653, %v6599
    %v6656 = vsel %vm898, %v6654, %v6605
    %v6657 = vsel %vm898, %v6655, %v6607
    %v6658 = vsel %vm901, %v6656, %v6613
    %v6659 = vsel %vm901, %v6657, %v6615
    %v6660 = vsel %vm904, %v6658, %v6621
    %v6661 = vsel %vm904, %v6659, %v6623
    %v6662 = vsel %vm907, %v6660, %v6629
    %v6663 = vsel %vm907, %v6661, %v6631
    %6666 = vrot.lane.b32.xlu0 %v908, 32
    %v6667 = vpop.permute.xlu0 %6666
    %6668 = vrot.lane.b32.xlu0 %v909, 32
    %v6669 = vpop.permute.xlu0 %6668
    %6674 = vrot.lane.b32.xlu0 %v1730, 64
    %v6675 = vpop.permute.xlu0 %6674
    %6676 = vrot.lane.b32.xlu0 %v1731, 64
    %v6677 = vpop.permute.xlu0 %6676
    %6680 = vrot.lane.b32.xlu0 %v1730, 96
    %v6681 = vpop.permute.xlu0 %6680
    %6682 = vrot.lane.b32.xlu0 %v1731, 96
    %v6683 = vpop.permute.xlu0 %6682
    %6688 = vrot.lane.b32.xlu0 %v2552, 32
    %v6689 = vpop.permute.xlu0 %6688
    %6690 = vrot.lane.b32.xlu0 %v2553, 32
    %v6691 = vpop.permute.xlu0 %6690
    %6696 = vrot.lane.b32.xlu0 %v3374, 64
    %v6697 = vpop.permute.xlu0 %6696
    %6698 = vrot.lane.b32.xlu0 %v3375, 64
    %v6699 = vpop.permute.xlu0 %6698
    %6702 = vrot.lane.b32.xlu0 %v3374, 96
    %v6703 = vpop.permute.xlu0 %6702
    %6704 = vrot.lane.b32.xlu0 %v3375, 96
    %v6705 = vpop.permute.xlu0 %6704
    %6710 = vrot.lane.b32.xlu0 %v4196, 32
    %v6711 = vpop.permute.xlu0 %6710
    %6712 = vrot.lane.b32.xlu0 %v4197, 32
    %v6713 = vpop.permute.xlu0 %6712
    %6718 = vrot.lane.b32.xlu0 %v5018, 64
    %v6719 = vpop.permute.xlu0 %6718
    %6720 = vrot.lane.b32.xlu0 %v5019, 64
    %v6721 = vpop.permute.xlu0 %6720
    %6724 = vrot.lane.b32.xlu0 %v5018, 96
    %v6725 = vpop.permute.xlu0 %6724
    %6726 = vrot.lane.b32.xlu0 %v5019, 96
    %v6727 = vpop.permute.xlu0 %6726
    %6732 = vrot.lane.b32.xlu0 %v5840, 32
    %v6733 = vpop.permute.xlu0 %6732
    %6734 = vrot.lane.b32.xlu0 %v5841, 32
    %v6735 = vpop.permute.xlu0 %6734
    %6740 = vrot.lane.b32.xlu0 %v6662, 64
    %v6741 = vpop.permute.xlu0 %6740
    %6742 = vrot.lane.b32.xlu0 %v6663, 64
    %v6743 = vpop.permute.xlu0 %6742
    %6746 = vrot.lane.b32.xlu0 %v6662, 96
    %v6747 = vpop.permute.xlu0 %6746
    %6748 = vrot.lane.b32.xlu0 %v6663, 96
    %v6749 = vpop.permute.xlu0 %6748
    %vm6752 = vcmask 261120
    %v6753 = vsel %vm6752, %v908, %v6667
    %v6754 = vsel %vm6752, %v909, %v6669
    %vm6755 = vcmask 523264
    %v6756 = vsel %vm6755, %v6753, %v6675
    %v6757 = vsel %vm6755, %v6754, %v6677
    %vm6758 = vcmask 785408
    %v6759 = vsel %vm6758, %v6756, %v6681
    %v6760 = vsel %vm6758, %v6757, %v6683
    %v6761 = vsel %vm6752, %v2552, %v6689
    %v6762 = vsel %vm6752, %v2553, %v6691
    %v6763 = vsel %vm6755, %v6761, %v6697
    %v6764 = vsel %vm6755, %v6762, %v6699
    %v6765 = vsel %vm6758, %v6763, %v6703
    %v6766 = vsel %vm6758, %v6764, %v6705
    %v6767 = vsel %vm6752, %v4196, %v6711
    %v6768 = vsel %vm6752, %v4197, %v6713
    %v6769 = vsel %vm6755, %v6767, %v6719
    %v6770 = vsel %vm6755, %v6768, %v6721
    %v6771 = vsel %vm6758, %v6769, %v6725
    %v6772 = vsel %vm6758, %v6770, %v6727
    %v6773 = vsel %vm6752, %v5840, %v6733
    %v6774 = vsel %vm6752, %v5841, %v6735
    %v6775 = vsel %vm6755, %v6773, %v6741
    %v6776 = vsel %vm6755, %v6774, %v6743
    %v6777 = vsel %vm6758, %v6775, %v6747
    %v6778 = vsel %vm6758, %v6776, %v6749
    %6779 = vst [vmem:[#allocation5] sm:$0xff] %v6759
    %6780 = vst [vmem:[#allocation5 + $0x8] sm:$0xff] %v6765
    %6781 = vst [vmem:[#allocation5 + $0x10] sm:$0xff] %v6771
    %6782 = vst [vmem:[#allocation5 + $0x18] sm:$0xff] %v6777
    %6783 = vst [vmem:[#allocation5 + $0x20] sm:$0xff] %v6760
    %6784 = vst [vmem:[#allocation5 + $0x28] sm:$0xff] %v6766
    %6785 = vst [vmem:[#allocation5 + $0x30] sm:$0xff] %v6772
    %6786 = vst [vmem:[#allocation5 + $0x38] sm:$0xff] %v6778
    // Predicated region
    $region10: #{tpu_custom_call.1} parent=1 // pred_check
      _
    $region11: #{tpu_custom_call.1} parent=1 // pred_check_branch
      %6788 = sbr.rel (0) target = $region13
    $region12: #{tpu_custom_call.1} parent=1 // pred_region
      %s6790 = ssub.s32 1024, 1024
      %6791 = vsyncadd [#allocation4], %s6790
      %s6792 = sshll.u32 [#allocation5], 4
      %s6793 = int_to_ptr.vmem [resolvable:$true] %s6792
      %6798 = dma.vmem_to_hbm [thread:$0]  %s6793, 1024, %s1, [#allocation4], 512, 512, 32
    $region13: #{tpu_custom_call.1} parent=1 // pred_fallthru
      _
    // Predicated region
    $region14: #{tpu_custom_call.1} parent=1 // pred_check
      _
    $region15: #{tpu_custom_call.1} parent=1 // pred_check_branch
      %6800 = sbr.rel (0) target = $region17
    $region16: #{tpu_custom_call.1} parent=1 // pred_region
      %6801 = dma.done [#allocation4], 1024
    $region17: #{tpu_custom_call.1} parent=1 // pred_fallthru
      _
    %6802 = vsyncpa [#allocation3], 1
    %6803 = vsyncpa [#allocation4], 1

</llo_original>
